<compile_context>
chip_gen: v7x
topology: tpu7x:2x2x1
jax: 0.10.0
libtpu: 0.0.40
codegen_flags: <defaults>
</compile_context>

<pallas_src>
import math

import jax
import jax.numpy as jnp
from jax.experimental import pallas as pl
from jax.experimental.pallas import tpu as pltpu


def _pisu_kernel(c_ref, q_ref, wkv_ref, bkv_ref, wd_ref, bd_ref, o_ref):
    """One block of Bblk batches of PISU (ensemble dim already dropped).

    c_ref   : (Bb, I, D)     content, bf16
    q_ref   : (H, Oi, Hw)    learned query parameter, bf16
    wkv_ref : (D, 2*H*Hw)    fused key|value projection weight, bf16
    bkv_ref : (1, 2*H*Hw)    fused key|value projection bias, f32
    wd_ref  : (H*Hw, Dop)    dehead weight, zero-padded to lane-dense Dop, bf16
    bd_ref  : (1, Dop)       dehead bias (zero-padded), f32
    o_ref   : (Bb*Oi, Dop)   output, f32, lane dense
    """
    Bb, I, D = c_ref.shape
    H, Oi, Hw = q_ref.shape
    HD = H * Hw
    Dop = o_ref.shape[-1]

    # ---- fused K|V projection: a single MXU pass over the content block ----
    x = c_ref[...].reshape(Bb * I, D)                                # (Bb*I, D)
    kv = jnp.dot(x, wkv_ref[...], preferred_element_type=jnp.float32)
    kv = (kv + bkv_ref[...]).astype(jnp.bfloat16)                    # (Bb*I, 2*HD)
    kv = kv.reshape(Bb, I, 2 * HD)                                   # leading-dim split

    inv_sqrt = 1.0 / math.sqrt(Hw)
    wd = wd_ref[...]                                                 # (HD, Dop)

    # ---- per-head attention, batched over the Bb batch rows ----------------
    # H is small and static; every dot below is either a 2-D matmul or the
    # documented 3-D batched-matmul form (no .T, no lane concatenate).
    # NOTE: the h*Hw lane slices are lane-aligned whenever Hw % 128 == 0.
    acc = jnp.zeros((Bb * Oi, Dop), jnp.float32)
    for h in range(H):
        kh = kv[:, :, h * Hw:(h + 1) * Hw]                           # (Bb, I, Hw)
        vh = kv[:, :, HD + h * Hw:HD + (h + 1) * Hw]                 # (Bb, I, Hw)
        qh = jnp.broadcast_to(q_ref[h], (Bb, Oi, Hw))                # (Bb, Oi, Hw)

        # logits are NOT pre-scaled (matches _dot_product_attention)
        logits = jnp.einsum('bqw,bkw->bqk', qh, kh,
                            preferred_element_type=jnp.float32)      # (Bb, Oi, I)
        logits = logits - jnp.max(logits, axis=-1, keepdims=True)
        p = jnp.exp(logits)
        p = p * pl.reciprocal(jnp.sum(p, axis=-1, keepdims=True), approx=True)

        # attention output, scaled by 1/sqrt(head_width) AFTER score @ value
        ah = jnp.einsum('bqk,bkw->bqw', p.astype(jnp.bfloat16), vh,
                        preferred_element_type=jnp.float32)          # (Bb, Oi, Hw)
        ah = (ah * inv_sqrt).reshape(Bb * Oi, Hw).astype(jnp.bfloat16)

        # dehead accumulation: out += ah_h @ Wd[h*Hw:(h+1)*Hw, :]
        acc = acc + jnp.dot(ah, wd[h * Hw:(h + 1) * Hw, :],
                            preferred_element_type=jnp.float32)

    o_ref[...] = (acc + bd_ref[...]).astype(o_ref.dtype)


def pisu_forward(content, params, *, batch_block=8):
    """content: (B, items, d_model) -> (B, output_items, d_output)."""
    query, wk, bk, wv, bv, wd, bd = params
    E, H, Oi, Hw = query.shape
    HD = H * Hw
    Do = wd.shape[-1]
    B, I, D = content.shape
    assert D == HD and E == 1        # ensembles=None path; d_model == heads*head_width

    Bb = batch_block
    n_blk = -(-B // Bb)              # cdiv
    B_pad = n_blk * Bb
    # (8,128) rule for the 2-D output block when there is more than one block
    assert n_blk == 1 or (Bb * Oi) % 8 == 0, "pick batch_block so Bblk*Oi % 8 == 0"
    Dop = -(-Do // 128) * 128        # lane-dense (>=128, multiple of 128) output width

    if B_pad != B:                   # zero-pad batch; padded rows are sliced away
        content = jnp.pad(content, ((0, B_pad - B), (0, 0), (0, 0)))

    # bf16 operands for the MXU; biases stay f32 (accumulation stays f32)
    c_b = content.astype(jnp.bfloat16)
    q_b = query[0].astype(jnp.bfloat16)                                   # (H, Oi, Hw)
    wkv = jnp.concatenate([wk[0], wv[0]], axis=-1).astype(jnp.bfloat16)   # (D, 2*HD)
    bkv = jnp.concatenate([bk[0], bv[0]], axis=-1)                        # (1, 2*HD)
    wd_p = jnp.zeros((HD, Dop), jnp.float32).at[:, :Do].set(wd[0]).astype(jnp.bfloat16)
    bd_p = jnp.zeros((1, Dop), jnp.float32).at[:, :Do].set(bd[0])

    out = pl.pallas_call(
        _pisu_kernel,
        out_shape=jax.ShapeDtypeStruct((B_pad * Oi, Dop), jnp.float32),
        grid=(n_blk,),                                      # even #blocks -> megacore-friendly
        in_specs=[
            pl.BlockSpec((Bb, I, D), lambda b: (b, 0, 0)),      # content (blocked batch)
            pl.BlockSpec((H, Oi, Hw), lambda b: (0, 0, 0)),     # query       (grid-invariant)
            pl.BlockSpec((D, 2 * HD), lambda b: (0, 0)),        # fused Wk|Wv (grid-invariant)
            pl.BlockSpec((1, 2 * HD), lambda b: (0, 0)),        # fused bk|bv (grid-invariant)
            pl.BlockSpec((HD, Dop), lambda b: (0, 0)),          # dehead W, lane-padded
            pl.BlockSpec((1, Dop), lambda b: (0, 0)),           # dehead b, lane-padded
        ],
        out_specs=pl.BlockSpec((Bb * Oi, Dop), lambda b: (b, 0)),
        compiler_params=pltpu.CompilerParams(
            dimension_semantics=("parallel",)),
    )(c_b, q_b, wkv, bkv, wd_p, bd_p)

    return out.reshape(B_pad, Oi, Dop)[:B, :, :Do]


def init_pisu_params(key, d_model, d_output, output_items, heads, ensembles=1):
    """Deterministic, kaiming-uniform-style parameter init (synthetic)."""
    head_width = d_model // heads
    ks = jax.random.split(key, 7)

    fan_in_q = heads * output_items * head_width
    bq = math.sqrt(6.0 / fan_in_q)
    query = jax.random.uniform(
        ks[0], (ensembles, heads, output_items, head_width), jnp.float32, -bq, bq)

    bw = math.sqrt(6.0 / d_model)
    wk = jax.random.uniform(ks[1], (ensembles, d_model, d_model), jnp.float32, -bw, bw)
    bk = jax.random.uniform(ks[2], (ensembles, 1, d_model), jnp.float32, -bw, bw)
    wv = jax.random.uniform(ks[3], (ensembles, d_model, d_model), jnp.float32, -bw, bw)
    bv = jax.random.uniform(ks[4], (ensembles, 1, d_model), jnp.float32, -bw, bw)
    wd = jax.random.uniform(ks[5], (ensembles, d_model, d_output), jnp.float32, -bw, bw)
    bd = jax.random.uniform(ks[6], (ensembles, 1, d_output), jnp.float32, -bw, bw)
    return (query, wk, bk, wv, bv, wd, bd)


def pisu_reference(content, params):
    """Pure-JAX reference mirroring PISU.forward (module op order) with the
    same mixed-precision policy as the kernel: bf16 matmul operands, f32
    accumulation, f32 softmax (exact division)."""
    query, wk, bk, wv, bv, wd, bd = params
    E, H, Oi, Hw = query.shape
    B, I, D = content.shape
    Do = wd.shape[-1]

    cb = content.astype(jnp.bfloat16)
    k = jnp.einsum('bid,df->bif', cb, wk[0].astype(jnp.bfloat16),
                   preferred_element_type=jnp.float32) + bk[0]
    v = jnp.einsum('bid,df->bif', cb, wv[0].astype(jnp.bfloat16),
                   preferred_element_type=jnp.float32) + bv[0]
    k = k.astype(jnp.bfloat16).reshape(B, I, H, Hw)
    v = v.astype(jnp.bfloat16).reshape(B, I, H, Hw)

    qb = query[0].astype(jnp.bfloat16)
    logits = jnp.einsum('hqw,bihw->bhqi', qb, k,
                        preferred_element_type=jnp.float32)          # no pre-scale
    p = jax.nn.softmax(logits, axis=-1)
    attn = jnp.einsum('bhqi,bihw->bhqw', p.astype(jnp.bfloat16), v,
                      preferred_element_type=jnp.float32) / math.sqrt(Hw)
    out = jnp.einsum('bhqw,hwo->bqo', attn.astype(jnp.bfloat16),
                     wd[0].reshape(H, Hw, Do).astype(jnp.bfloat16),
                     preferred_element_type=jnp.float32) + bd[0]
    return out


if __name__ == "__main__":
    d_model, d_output, output_items, heads = 32, 16, 4, 4
    B, items = 16, 8          # 16 batches -> 2 grid blocks of 8

    key = jax.random.PRNGKey(0)
    kp, kc = jax.random.split(key)
    params = init_pisu_params(kp, d_model, d_output, output_items, heads)
    content = jax.random.normal(kc, (B, items, d_model), jnp.float32)

    out = pisu_forward(content, params, batch_block=8)
    out = jax.block_until_ready(out)

    ref = pisu_reference(content, params)
    assert out.shape == (B, output_items, d_output), out.shape
    # bf16 matmul operands + EUP approx reciprocal in the softmax -> modest tolerance
    assert jnp.allclose(out, ref, atol=2e-2, rtol=2e-2), \
        float(jnp.max(jnp.abs(out - ref)))

    print("KERNEL_OK")
</pallas_src>

<mosaic_0001>
module attributes {stable_mosaic.version = 11 : i64} {
  func.func @_pisu_kernel(%arg0: i32, %arg1: memref<8x8x32xbf16, #tpu.memory_space<vmem>>, %arg2: memref<4x4x8xbf16, #tpu.memory_space<vmem>>, %arg3: memref<32x64xbf16, #tpu.memory_space<vmem>>, %arg4: memref<1x64xf32, #tpu.memory_space<vmem>>, %arg5: memref<32x128xbf16, #tpu.memory_space<vmem>>, %arg6: memref<1x128xf32, #tpu.memory_space<vmem>>, %arg7: memref<32x128xf32, #tpu.memory_space<vmem>>) attributes {dimension_semantics = [#tpu.dimension_semantics<parallel>], iteration_bounds = array<i64: 2>, scalar_prefetch = 0 : i64, scratch_operands = 0 : i64, tpu.core_type = #tpu.core_type<tc>, window_params = [{transform_indices = @transform_0, window_bounds = array<i64: 8, 8, 32>}, {pipeline_mode = #tpu.pipeline_mode<synchronous>, transform_indices = @transform_1, window_bounds = array<i64: 4, 4, 8>}, {pipeline_mode = #tpu.pipeline_mode<synchronous>, transform_indices = @transform_2, window_bounds = array<i64: 32, 64>}, {pipeline_mode = #tpu.pipeline_mode<synchronous>, transform_indices = @transform_3, window_bounds = array<i64: 1, 64>}, {pipeline_mode = #tpu.pipeline_mode<synchronous>, transform_indices = @transform_4, window_bounds = array<i64: 32, 128>}, {pipeline_mode = #tpu.pipeline_mode<synchronous>, transform_indices = @transform_5, window_bounds = array<i64: 1, 128>}, {transform_indices = @transform_6, window_bounds = array<i64: 32, 128>}]} {
    %c0 = arith.constant 0 : index
    %c0_0 = arith.constant 0 : index
    %c0_1 = arith.constant 0 : index
    %0 = vector.load %arg1[%c0, %c0_0, %c0_1] : memref<8x8x32xbf16, #tpu.memory_space<vmem>>, vector<8x8x32xbf16>
    %1 = vector.shape_cast %0 : vector<8x8x32xbf16> to vector<64x32xbf16>
    %c0_2 = arith.constant 0 : index
    %c0_3 = arith.constant 0 : index
    %2 = vector.load %arg3[%c0_2, %c0_3] : memref<32x64xbf16, #tpu.memory_space<vmem>>, vector<32x64xbf16>
    %cst = arith.constant dense<0.000000e+00> : vector<64x64xf32>
    %3 = tpu.matmul %1, %2, %cst {dimension_numbers = #tpu.dot_dimension_numbers<[1], [0], [0], [1], [0, 0, 1, 1], [], []>} : vector<64x32xbf16>, vector<32x64xbf16>, vector<64x64xf32> -> vector<64x64xf32>
    %c0_4 = arith.constant 0 : index
    %c0_5 = arith.constant 0 : index
    %4 = vector.load %arg4[%c0_4, %c0_5] : memref<1x64xf32, #tpu.memory_space<vmem>>, vector<1x64xf32>
    %5 = vector.broadcast %4 : vector<1x64xf32> to vector<64x64xf32>
    %6 = arith.addf %3, %5 : vector<64x64xf32>
    %7 = arith.truncf %6 : vector<64x64xf32> to vector<64x64xbf16>
    %8 = vector.shape_cast %7 : vector<64x64xbf16> to vector<8x8x64xbf16>
    %c0_6 = arith.constant 0 : index
    %c0_7 = arith.constant 0 : index
    %9 = vector.load %arg5[%c0_6, %c0_7] : memref<32x128xbf16, #tpu.memory_space<vmem>>, vector<32x128xbf16>
    %cst_8 = arith.constant 0.000000e+00 : f32
    %10 = vector.broadcast %cst_8 : f32 to vector<32x128xf32>
    %11 = vector.extract_strided_slice %8 {offsets = [0, 0, 0], sizes = [8, 8, 8], strides = [1, 1, 1]} : vector<8x8x64xbf16> to vector<8x8x8xbf16>
    %12 = vector.extract_strided_slice %8 {offsets = [0, 0, 32], sizes = [8, 8, 8], strides = [1, 1, 1]} : vector<8x8x64xbf16> to vector<8x8x8xbf16>
    %c0_9 = arith.constant 0 : index
    %c0_10 = arith.constant 0 : index
    %c0_11 = arith.constant 0 : index
    %13 = vector.load %arg2[%c0_9, %c0_10, %c0_11] : memref<4x4x8xbf16, #tpu.memory_space<vmem>>, vector<1x4x8xbf16>
    %14 = vector.shape_cast %13 : vector<1x4x8xbf16> to vector<4x8xbf16>
    %15 = vector.shape_cast %14 : vector<4x8xbf16> to vector<1x4x8xbf16>
    %16 = vector.broadcast %15 : vector<1x4x8xbf16> to vector<8x4x8xbf16>
    "tpu.trace_start"() <{level = 10 : i32, message = "bqw,bkw->bqk"}> : () -> ()
    %cst_12 = arith.constant dense<0.000000e+00> : vector<8x4x8xf32>
    %17 = tpu.matmul %16, %11, %cst_12 {dimension_numbers = #tpu.dot_dimension_numbers<[2], [2], [1], [1], [0, 0, 0, 1, 1, 1], [0], [0]>} : vector<8x4x8xbf16>, vector<8x8x8xbf16>, vector<8x4x8xf32> -> vector<8x4x8xf32>
    "tpu.trace_stop"() : () -> ()
    %cst_13 = arith.constant dense<0xFF800000> : vector<8x4xf32>
    %18 = vector.multi_reduction <maximumf>, %17, %cst_13 [2] : vector<8x4x8xf32> to vector<8x4xf32>
    %19 = vector.shape_cast %18 : vector<8x4xf32> to vector<8x4x1xf32>
    %20 = vector.broadcast %19 : vector<8x4x1xf32> to vector<8x4x8xf32>
    %21 = arith.subf %17, %20 : vector<8x4x8xf32>
    %22 = math.exp %21 : vector<8x4x8xf32>
    %cst_14 = arith.constant dense<0.000000e+00> : vector<8x4xf32>
    %23 = vector.multi_reduction <add>, %22, %cst_14 [2] : vector<8x4x8xf32> to vector<8x4xf32>
    %24 = vector.shape_cast %23 : vector<8x4xf32> to vector<8x4x1xf32>
    %25 = tpu.reciprocal %24 {approx = true} : vector<8x4x1xf32> -> vector<8x4x1xf32>
    %26 = vector.broadcast %25 : vector<8x4x1xf32> to vector<8x4x8xf32>
    %27 = arith.mulf %22, %26 : vector<8x4x8xf32>
    %28 = arith.truncf %27 : vector<8x4x8xf32> to vector<8x4x8xbf16>
    "tpu.trace_start"() <{level = 10 : i32, message = "bqk,bkw->bqw"}> : () -> ()
    %cst_15 = arith.constant dense<0.000000e+00> : vector<8x4x8xf32>
    %29 = tpu.matmul %28, %12, %cst_15 {dimension_numbers = #tpu.dot_dimension_numbers<[2], [1], [1], [2], [0, 0, 0, 1, 1, 2], [0], [0]>} : vector<8x4x8xbf16>, vector<8x8x8xbf16>, vector<8x4x8xf32> -> vector<8x4x8xf32>
    "tpu.trace_stop"() : () -> ()
    %cst_16 = arith.constant 0.353553385 : f32
    %30 = vector.broadcast %cst_16 : f32 to vector<8x4x8xf32>
    %31 = arith.mulf %29, %30 : vector<8x4x8xf32>
    %32 = vector.shape_cast %31 : vector<8x4x8xf32> to vector<32x8xf32>
    %33 = arith.truncf %32 : vector<32x8xf32> to vector<32x8xbf16>
    %34 = vector.extract_strided_slice %9 {offsets = [0, 0], sizes = [8, 128], strides = [1, 1]} : vector<32x128xbf16> to vector<8x128xbf16>
    %cst_17 = arith.constant dense<0.000000e+00> : vector<32x128xf32>
    %35 = tpu.matmul %33, %34, %cst_17 {dimension_numbers = #tpu.dot_dimension_numbers<[1], [0], [0], [1], [0, 0, 1, 1], [], []>} : vector<32x8xbf16>, vector<8x128xbf16>, vector<32x128xf32> -> vector<32x128xf32>
    %36 = arith.addf %10, %35 : vector<32x128xf32>
    %37 = vector.extract_strided_slice %8 {offsets = [0, 0, 8], sizes = [8, 8, 8], strides = [1, 1, 1]} : vector<8x8x64xbf16> to vector<8x8x8xbf16>
    %38 = vector.extract_strided_slice %8 {offsets = [0, 0, 40], sizes = [8, 8, 8], strides = [1, 1, 1]} : vector<8x8x64xbf16> to vector<8x8x8xbf16>
    %c1 = arith.constant 1 : index
    %c0_18 = arith.constant 0 : index
    %c0_19 = arith.constant 0 : index
    %39 = vector.load %arg2[%c1, %c0_18, %c0_19] : memref<4x4x8xbf16, #tpu.memory_space<vmem>>, vector<1x4x8xbf16>
    %40 = vector.shape_cast %39 : vector<1x4x8xbf16> to vector<4x8xbf16>
    %41 = vector.shape_cast %40 : vector<4x8xbf16> to vector<1x4x8xbf16>
    %42 = vector.broadcast %41 : vector<1x4x8xbf16> to vector<8x4x8xbf16>
    "tpu.trace_start"() <{level = 10 : i32, message = "bqw,bkw->bqk"}> : () -> ()
    %cst_20 = arith.constant dense<0.000000e+00> : vector<8x4x8xf32>
    %43 = tpu.matmul %42, %37, %cst_20 {dimension_numbers = #tpu.dot_dimension_numbers<[2], [2], [1], [1], [0, 0, 0, 1, 1, 1], [0], [0]>} : vector<8x4x8xbf16>, vector<8x8x8xbf16>, vector<8x4x8xf32> -> vector<8x4x8xf32>
    "tpu.trace_stop"() : () -> ()
    %cst_21 = arith.constant dense<0xFF800000> : vector<8x4xf32>
    %44 = vector.multi_reduction <maximumf>, %43, %cst_21 [2] : vector<8x4x8xf32> to vector<8x4xf32>
    %45 = vector.shape_cast %44 : vector<8x4xf32> to vector<8x4x1xf32>
    %46 = vector.broadcast %45 : vector<8x4x1xf32> to vector<8x4x8xf32>
    %47 = arith.subf %43, %46 : vector<8x4x8xf32>
    %48 = math.exp %47 : vector<8x4x8xf32>
    %cst_22 = arith.constant dense<0.000000e+00> : vector<8x4xf32>
    %49 = vector.multi_reduction <add>, %48, %cst_22 [2] : vector<8x4x8xf32> to vector<8x4xf32>
    %50 = vector.shape_cast %49 : vector<8x4xf32> to vector<8x4x1xf32>
    %51 = tpu.reciprocal %50 {approx = true} : vector<8x4x1xf32> -> vector<8x4x1xf32>
    %52 = vector.broadcast %51 : vector<8x4x1xf32> to vector<8x4x8xf32>
    %53 = arith.mulf %48, %52 : vector<8x4x8xf32>
    %54 = arith.truncf %53 : vector<8x4x8xf32> to vector<8x4x8xbf16>
    "tpu.trace_start"() <{level = 10 : i32, message = "bqk,bkw->bqw"}> : () -> ()
    %cst_23 = arith.constant dense<0.000000e+00> : vector<8x4x8xf32>
    %55 = tpu.matmul %54, %38, %cst_23 {dimension_numbers = #tpu.dot_dimension_numbers<[2], [1], [1], [2], [0, 0, 0, 1, 1, 2], [0], [0]>} : vector<8x4x8xbf16>, vector<8x8x8xbf16>, vector<8x4x8xf32> -> vector<8x4x8xf32>
    "tpu.trace_stop"() : () -> ()
    %cst_24 = arith.constant 0.353553385 : f32
    %56 = vector.broadcast %cst_24 : f32 to vector<8x4x8xf32>
    %57 = arith.mulf %55, %56 : vector<8x4x8xf32>
    %58 = vector.shape_cast %57 : vector<8x4x8xf32> to vector<32x8xf32>
    %59 = arith.truncf %58 : vector<32x8xf32> to vector<32x8xbf16>
    %60 = vector.extract_strided_slice %9 {offsets = [8, 0], sizes = [8, 128], strides = [1, 1]} : vector<32x128xbf16> to vector<8x128xbf16>
    %cst_25 = arith.constant dense<0.000000e+00> : vector<32x128xf32>
    %61 = tpu.matmul %59, %60, %cst_25 {dimension_numbers = #tpu.dot_dimension_numbers<[1], [0], [0], [1], [0, 0, 1, 1], [], []>} : vector<32x8xbf16>, vector<8x128xbf16>, vector<32x128xf32> -> vector<32x128xf32>
    %62 = arith.addf %36, %61 : vector<32x128xf32>
    %63 = vector.extract_strided_slice %8 {offsets = [0, 0, 16], sizes = [8, 8, 8], strides = [1, 1, 1]} : vector<8x8x64xbf16> to vector<8x8x8xbf16>
    %64 = vector.extract_strided_slice %8 {offsets = [0, 0, 48], sizes = [8, 8, 8], strides = [1, 1, 1]} : vector<8x8x64xbf16> to vector<8x8x8xbf16>
    %c2 = arith.constant 2 : index
    %c0_26 = arith.constant 0 : index
    %c0_27 = arith.constant 0 : index
    %65 = vector.load %arg2[%c2, %c0_26, %c0_27] : memref<4x4x8xbf16, #tpu.memory_space<vmem>>, vector<1x4x8xbf16>
    %66 = vector.shape_cast %65 : vector<1x4x8xbf16> to vector<4x8xbf16>
    %67 = vector.shape_cast %66 : vector<4x8xbf16> to vector<1x4x8xbf16>
    %68 = vector.broadcast %67 : vector<1x4x8xbf16> to vector<8x4x8xbf16>
    "tpu.trace_start"() <{level = 10 : i32, message = "bqw,bkw->bqk"}> : () -> ()
    %cst_28 = arith.constant dense<0.000000e+00> : vector<8x4x8xf32>
    %69 = tpu.matmul %68, %63, %cst_28 {dimension_numbers = #tpu.dot_dimension_numbers<[2], [2], [1], [1], [0, 0, 0, 1, 1, 1], [0], [0]>} : vector<8x4x8xbf16>, vector<8x8x8xbf16>, vector<8x4x8xf32> -> vector<8x4x8xf32>
    "tpu.trace_stop"() : () -> ()
    %cst_29 = arith.constant dense<0xFF800000> : vector<8x4xf32>
    %70 = vector.multi_reduction <maximumf>, %69, %cst_29 [2] : vector<8x4x8xf32> to vector<8x4xf32>
    %71 = vector.shape_cast %70 : vector<8x4xf32> to vector<8x4x1xf32>
    %72 = vector.broadcast %71 : vector<8x4x1xf32> to vector<8x4x8xf32>
    %73 = arith.subf %69, %72 : vector<8x4x8xf32>
    %74 = math.exp %73 : vector<8x4x8xf32>
    %cst_30 = arith.constant dense<0.000000e+00> : vector<8x4xf32>
    %75 = vector.multi_reduction <add>, %74, %cst_30 [2] : vector<8x4x8xf32> to vector<8x4xf32>
    %76 = vector.shape_cast %75 : vector<8x4xf32> to vector<8x4x1xf32>
    %77 = tpu.reciprocal %76 {approx = true} : vector<8x4x1xf32> -> vector<8x4x1xf32>
    %78 = vector.broadcast %77 : vector<8x4x1xf32> to vector<8x4x8xf32>
    %79 = arith.mulf %74, %78 : vector<8x4x8xf32>
    %80 = arith.truncf %79 : vector<8x4x8xf32> to vector<8x4x8xbf16>
    "tpu.trace_start"() <{level = 10 : i32, message = "bqk,bkw->bqw"}> : () -> ()
    %cst_31 = arith.constant dense<0.000000e+00> : vector<8x4x8xf32>
    %81 = tpu.matmul %80, %64, %cst_31 {dimension_numbers = #tpu.dot_dimension_numbers<[2], [1], [1], [2], [0, 0, 0, 1, 1, 2], [0], [0]>} : vector<8x4x8xbf16>, vector<8x8x8xbf16>, vector<8x4x8xf32> -> vector<8x4x8xf32>
    "tpu.trace_stop"() : () -> ()
    %cst_32 = arith.constant 0.353553385 : f32
    %82 = vector.broadcast %cst_32 : f32 to vector<8x4x8xf32>
    %83 = arith.mulf %81, %82 : vector<8x4x8xf32>
    %84 = vector.shape_cast %83 : vector<8x4x8xf32> to vector<32x8xf32>
    %85 = arith.truncf %84 : vector<32x8xf32> to vector<32x8xbf16>
    %86 = vector.extract_strided_slice %9 {offsets = [16, 0], sizes = [8, 128], strides = [1, 1]} : vector<32x128xbf16> to vector<8x128xbf16>
    %cst_33 = arith.constant dense<0.000000e+00> : vector<32x128xf32>
    %87 = tpu.matmul %85, %86, %cst_33 {dimension_numbers = #tpu.dot_dimension_numbers<[1], [0], [0], [1], [0, 0, 1, 1], [], []>} : vector<32x8xbf16>, vector<8x128xbf16>, vector<32x128xf32> -> vector<32x128xf32>
    %88 = arith.addf %62, %87 : vector<32x128xf32>
    %89 = vector.extract_strided_slice %8 {offsets = [0, 0, 24], sizes = [8, 8, 8], strides = [1, 1, 1]} : vector<8x8x64xbf16> to vector<8x8x8xbf16>
    %90 = vector.extract_strided_slice %8 {offsets = [0, 0, 56], sizes = [8, 8, 8], strides = [1, 1, 1]} : vector<8x8x64xbf16> to vector<8x8x8xbf16>
    %c3 = arith.constant 3 : index
    %c0_34 = arith.constant 0 : index
    %c0_35 = arith.constant 0 : index
    %91 = vector.load %arg2[%c3, %c0_34, %c0_35] : memref<4x4x8xbf16, #tpu.memory_space<vmem>>, vector<1x4x8xbf16>
    %92 = vector.shape_cast %91 : vector<1x4x8xbf16> to vector<4x8xbf16>
    %93 = vector.shape_cast %92 : vector<4x8xbf16> to vector<1x4x8xbf16>
    %94 = vector.broadcast %93 : vector<1x4x8xbf16> to vector<8x4x8xbf16>
    "tpu.trace_start"() <{level = 10 : i32, message = "bqw,bkw->bqk"}> : () -> ()
    %cst_36 = arith.constant dense<0.000000e+00> : vector<8x4x8xf32>
    %95 = tpu.matmul %94, %89, %cst_36 {dimension_numbers = #tpu.dot_dimension_numbers<[2], [2], [1], [1], [0, 0, 0, 1, 1, 1], [0], [0]>} : vector<8x4x8xbf16>, vector<8x8x8xbf16>, vector<8x4x8xf32> -> vector<8x4x8xf32>
    "tpu.trace_stop"() : () -> ()
    %cst_37 = arith.constant dense<0xFF800000> : vector<8x4xf32>
    %96 = vector.multi_reduction <maximumf>, %95, %cst_37 [2] : vector<8x4x8xf32> to vector<8x4xf32>
    %97 = vector.shape_cast %96 : vector<8x4xf32> to vector<8x4x1xf32>
    %98 = vector.broadcast %97 : vector<8x4x1xf32> to vector<8x4x8xf32>
    %99 = arith.subf %95, %98 : vector<8x4x8xf32>
    %100 = math.exp %99 : vector<8x4x8xf32>
    %cst_38 = arith.constant dense<0.000000e+00> : vector<8x4xf32>
    %101 = vector.multi_reduction <add>, %100, %cst_38 [2] : vector<8x4x8xf32> to vector<8x4xf32>
    %102 = vector.shape_cast %101 : vector<8x4xf32> to vector<8x4x1xf32>
    %103 = tpu.reciprocal %102 {approx = true} : vector<8x4x1xf32> -> vector<8x4x1xf32>
    %104 = vector.broadcast %103 : vector<8x4x1xf32> to vector<8x4x8xf32>
    %105 = arith.mulf %100, %104 : vector<8x4x8xf32>
    %106 = arith.truncf %105 : vector<8x4x8xf32> to vector<8x4x8xbf16>
    "tpu.trace_start"() <{level = 10 : i32, message = "bqk,bkw->bqw"}> : () -> ()
    %cst_39 = arith.constant dense<0.000000e+00> : vector<8x4x8xf32>
    %107 = tpu.matmul %106, %90, %cst_39 {dimension_numbers = #tpu.dot_dimension_numbers<[2], [1], [1], [2], [0, 0, 0, 1, 1, 2], [0], [0]>} : vector<8x4x8xbf16>, vector<8x8x8xbf16>, vector<8x4x8xf32> -> vector<8x4x8xf32>
    "tpu.trace_stop"() : () -> ()
    %cst_40 = arith.constant 0.353553385 : f32
    %108 = vector.broadcast %cst_40 : f32 to vector<8x4x8xf32>
    %109 = arith.mulf %107, %108 : vector<8x4x8xf32>
    %110 = vector.shape_cast %109 : vector<8x4x8xf32> to vector<32x8xf32>
    %111 = arith.truncf %110 : vector<32x8xf32> to vector<32x8xbf16>
    %112 = vector.extract_strided_slice %9 {offsets = [24, 0], sizes = [8, 128], strides = [1, 1]} : vector<32x128xbf16> to vector<8x128xbf16>
    %cst_41 = arith.constant dense<0.000000e+00> : vector<32x128xf32>
    %113 = tpu.matmul %111, %112, %cst_41 {dimension_numbers = #tpu.dot_dimension_numbers<[1], [0], [0], [1], [0, 0, 1, 1], [], []>} : vector<32x8xbf16>, vector<8x128xbf16>, vector<32x128xf32> -> vector<32x128xf32>
    %114 = arith.addf %88, %113 : vector<32x128xf32>
    %c0_42 = arith.constant 0 : index
    %c0_43 = arith.constant 0 : index
    %115 = vector.load %arg6[%c0_42, %c0_43] : memref<1x128xf32, #tpu.memory_space<vmem>>, vector<1x128xf32>
    %116 = vector.broadcast %115 : vector<1x128xf32> to vector<32x128xf32>
    %117 = arith.addf %114, %116 : vector<32x128xf32>
    %c0_44 = arith.constant 0 : index
    %c0_45 = arith.constant 0 : index
    %118 = vector.load %arg7[%c0_44, %c0_45] : memref<32x128xf32, #tpu.memory_space<vmem>>, vector<32x128xf32>
    tpu.vector_store %arg7[%c0_44, %c0_45], %117 {strides = array<i32>} : memref<32x128xf32, #tpu.memory_space<vmem>>, vector<32x128xf32>,
    return
  }
  func.func @transform_0(%arg0: i32) -> (i32, i32, i32) {
    %c0_i32 = arith.constant 0 : i32
    %c0_i32_0 = arith.constant 0 : i32
    %c0_i32_1 = arith.constant 0 : i32
    return %arg0, %c0_i32, %c0_i32_0 : i32, i32, i32
  }
  func.func @transform_1(%arg0: i32) -> (i32, i32, i32) {
    %c0_i32 = arith.constant 0 : i32
    %c0_i32_0 = arith.constant 0 : i32
    %c0_i32_1 = arith.constant 0 : i32
    %c0_i32_2 = arith.constant 0 : i32
    return %c0_i32, %c0_i32_0, %c0_i32_1 : i32, i32, i32
  }
  func.func @transform_2(%arg0: i32) -> (i32, i32) {
    %c0_i32 = arith.constant 0 : i32
    %c0_i32_0 = arith.constant 0 : i32
    %c0_i32_1 = arith.constant 0 : i32
    return %c0_i32, %c0_i32_0 : i32, i32
  }
  func.func @transform_3(%arg0: i32) -> (i32, i32) {
    %c0_i32 = arith.constant 0 : i32
    %c0_i32_0 = arith.constant 0 : i32
    %c0_i32_1 = arith.constant 0 : i32
    return %c0_i32, %c0_i32_0 : i32, i32
  }
  func.func @transform_4(%arg0: i32) -> (i32, i32) {
    %c0_i32 = arith.constant 0 : i32
    %c0_i32_0 = arith.constant 0 : i32
    %c0_i32_1 = arith.constant 0 : i32
    return %c0_i32, %c0_i32_0 : i32, i32
  }
  func.func @transform_5(%arg0: i32) -> (i32, i32) {
    %c0_i32 = arith.constant 0 : i32
    %c0_i32_0 = arith.constant 0 : i32
    %c0_i32_1 = arith.constant 0 : i32
    return %c0_i32, %c0_i32_0 : i32, i32
  }
  func.func @transform_6(%arg0: i32) -> (i32, i32) {
    %c0_i32 = arith.constant 0 : i32
    %c0_i32_0 = arith.constant 0 : i32
    return %arg0, %c0_i32 : i32, i32
  }
}

</mosaic_0001>

<llo_original>
// kernel: tpu_custom_call.1
$region0: #{tpu_custom_call.1}
  #allocation0 [shape = 'u32[]', space=smem, size = 0x4, offset = 0x4, fixed_abs, tag = 'smem constant byte address 0x4 - core index']
  #allocation1 [shape = 'u32[144,128]{1,0:T(1,128)}', space=vmem, size = 0x12000, scoped, tag = 'internal scratch']
  %s0 = inlined_call_operand.hbm [shape: bf16[16,8,32], index: 0, kind: input, shape index: {}]
  %s1 = inlined_call_operand.hbm [shape: bf16[4,4,8], index: 1, kind: input, shape index: {}]
  %s2 = inlined_call_operand.hbm [shape: bf16[32,64], index: 2, kind: input, shape index: {}]
  %s3 = inlined_call_operand.vmem [shape: f32[1,64], index: 3, kind: input, shape index: {}]
  %s4 = inlined_call_operand.hbm [shape: bf16[32,128], index: 4, kind: input, shape index: {}]
  %s5 = inlined_call_operand.vmem [shape: f32[1,128], index: 5, kind: input, shape index: {}]
  %s6 = inlined_call_operand.hbm [shape: f32[64,128], index: 6, kind: output, shape index: {}]
  %s7 = sld [smem:[#allocation0]]
  $region73: #{tpu_custom_call.1} parent=0
    _
  %s9 = ssub.s32 1, %s7
  %s10 = scalar_select 0, %s9, %s7
  $region1: #{tpu_custom_call.1} parent=0
    #allocation2 [shape = 'u8[32768]{0}', space=vmem, size = 0x8000, scoped, tag = 'input window, operand 0']
    #allocation3 [shape = 's32[2]{0}', space=sflag, size = 0x8, scoped, tag = 'scoped memory for tpu_custom_call.1']
    #allocation4 [shape = 's32[2]{0}', space=sflag, size = 0x8, scoped, tag = 'scoped memory for tpu_custom_call.1']
    #allocation5 [shape = 'u8[4096]{0}', space=vmem, size = 0x1000, scoped, tag = 'input window, operand 1, single buffered']
    #allocation6 [shape = 's32[1]{0}', space=sflag, size = 0x4, scoped, tag = 'scoped memory for tpu_custom_call.1']
    #allocation7 [shape = 'u8[8192]{0}', space=vmem, size = 0x2000, scoped, tag = 'input window, operand 2, single buffered']
    #allocation8 [shape = 'u8[8192]{0}', space=vmem, size = 0x2000, scoped, tag = 'input window, operand 4, single buffered']
    #allocation9 [shape = 's32[1]{0}', space=sflag, size = 0x4, scoped, tag = 'scoped memory for tpu_custom_call.1']
    #allocation10 [shape = 'u8[32768]{0}', space=vmem, size = 0x8000, scoped, tag = 'output window, operand 0']
    %11 = vsyncpa [#allocation3], 0
    %s12 = scalar_lea.sflag [#allocation3], 1
    %13 = vsyncpa %s12, 0
    %14 = vsyncpa [#allocation6], 0
    %15 = vsyncpa [#allocation9], 0
    %16 = vsyncpa [#allocation4], 0
    %s17 = scalar_lea.sflag [#allocation4], 1
    %18 = vsyncpa %s17, 0
    loop: start=0, step=1, limit=4
    $region2: #{tpu_custom_call.1} parent=1 // loop_pre_header
      _
    $region3: #{tpu_custom_call.1} parent=1 // loop_header
      %s20 = sphi 0, %s24
      %p21 = scmp.ge.s32.totalorder %s20, 4
      %s30 = sphi 0, %s32
      %s33 = sphi 0, %s30
      %s34 = sphi 0, %s33
      %s50 = sphi 0, %s34
      %s54 = sphi 0, %s54
      %s56 = sphi 0, %s54
      %s57 = sphi 0, %s56
      %s71 = sphi 0, %s57
      %s75 = sphi 0, %s75
      %s77 = sphi 0, %s75
      %s78 = sphi 0, %s77
      %s92 = sphi 0, %s78
      %s96 = sphi 0, %s96
      %s98 = sphi 0, %s96
      %s99 = sphi 0, %s98
      %s113 = sphi 0, %s99
      %s117 = sphi 0, %s117
      %s119 = sphi 0, %s117
      %s120 = sphi 0, %s119
      %s134 = sphi 0, %s120
      %s138 = sphi 0, %s138
      %s140 = sphi 0, %s138
      %s141 = sphi 0, %s140
      %s155 = sphi 0, %s141
      %s161 = sphi 0, %s163
      %s164 = sphi 0, %s161
      %s165 = sphi 0, %s164
      %s181 = sphi 0, %s165
    $region4: #{tpu_custom_call.1} parent=1 // loop_header_branch
      %23 = sbr.rel (%p21) target = $region8
    $region5: #{tpu_custom_call.1} parent=1 // loop_body
      %s25 = ssub.s32 %s20, 1
      %s26 = ssub.s32 %s20, 2
      %s27 = sadd.s32 %s20, 1
      %s28 = ssub.s32 %s20, %s27
      %p29 = scmp.eq.s32.totalorder %s28, 0
      %s31 = sadd.s32 %s30, 1
      %s32 = scalar_select %p29, %s30, %s31
      %p35 = pneg %p29
      %p36 = scmp.eq.s32.totalorder %s20, 1
      %p37 = por %p35, %p36
      %p38 = scmp.ne.s32.totalorder %s30, %s33
      %p39 = scmp.eq.s32.totalorder %s20, 0
      %p40 = por %p38, %p39
      %p41 = scmp.ne.s32.totalorder %s30, %s33
      %p42 = scmp.eq.s32.totalorder %s25, 1
      %p43 = por %p41, %p42
      %p44 = scmp.ne.s32.totalorder %s33, %s34
      %p45 = scmp.eq.s32.totalorder %s25, 0
      %p46 = por %p44, %p45
      %p47 = scmp.ne.s32.totalorder %s33, %s34
      %p48 = scmp.eq.s32.totalorder %s26, 1
      %p49 = por %p47, %p48
      %p51 = scmp.ne.s32.totalorder %s34, %s50
      %p52 = scmp.eq.s32.totalorder %s26, 0
      %p53 = por %p51, %p52
      %s55 = sadd.s32 %s54, 1
      %p58 = scmp.eq.s32.totalorder %s20, 1
      %p59 = scmp.ne.s32.totalorder %s54, %s56
      %p60 = scmp.eq.s32.totalorder %s20, 0
      %p61 = por %p59, %p60
      %p62 = scmp.ne.s32.totalorder %s54, %s56
      %p63 = scmp.eq.s32.totalorder %s25, 1
      %p64 = por %p62, %p63
      %p65 = scmp.ne.s32.totalorder %s56, %s57
      %p66 = scmp.eq.s32.totalorder %s25, 0
      %p67 = por %p65, %p66
      %p68 = scmp.ne.s32.totalorder %s56, %s57
      %p69 = scmp.eq.s32.totalorder %s26, 1
      %p70 = por %p68, %p69
      %p72 = scmp.ne.s32.totalorder %s57, %s71
      %p73 = scmp.eq.s32.totalorder %s26, 0
      %p74 = por %p72, %p73
      %s76 = sadd.s32 %s75, 1
      %p79 = scmp.eq.s32.totalorder %s20, 1
      %p80 = scmp.ne.s32.totalorder %s75, %s77
      %p81 = scmp.eq.s32.totalorder %s20, 0
      %p82 = por %p80, %p81
      %p83 = scmp.ne.s32.totalorder %s75, %s77
      %p84 = scmp.eq.s32.totalorder %s25, 1
      %p85 = por %p83, %p84
      %p86 = scmp.ne.s32.totalorder %s77, %s78
      %p87 = scmp.eq.s32.totalorder %s25, 0
      %p88 = por %p86, %p87
      %p89 = scmp.ne.s32.totalorder %s77, %s78
      %p90 = scmp.eq.s32.totalorder %s26, 1
      %p91 = por %p89, %p90
      %p93 = scmp.ne.s32.totalorder %s78, %s92
      %p94 = scmp.eq.s32.totalorder %s26, 0
      %p95 = por %p93, %p94
      %s97 = sadd.s32 %s96, 1
      %p100 = scmp.eq.s32.totalorder %s20, 1
      %p101 = scmp.ne.s32.totalorder %s96, %s98
      %p102 = scmp.eq.s32.totalorder %s20, 0
      %p103 = por %p101, %p102
      %p104 = scmp.ne.s32.totalorder %s96, %s98
      %p105 = scmp.eq.s32.totalorder %s25, 1
      %p106 = por %p104, %p105
      %p107 = scmp.ne.s32.totalorder %s98, %s99
      %p108 = scmp.eq.s32.totalorder %s25, 0
      %p109 = por %p107, %p108
      %p110 = scmp.ne.s32.totalorder %s98, %s99
      %p111 = scmp.eq.s32.totalorder %s26, 1
      %p112 = por %p110, %p111
      %p114 = scmp.ne.s32.totalorder %s99, %s113
      %p115 = scmp.eq.s32.totalorder %s26, 0
      %p116 = por %p114, %p115
      %s118 = sadd.s32 %s117, 1
      %p121 = scmp.eq.s32.totalorder %s20, 1
      %p122 = scmp.ne.s32.totalorder %s117, %s119
      %p123 = scmp.eq.s32.totalorder %s20, 0
      %p124 = por %p122, %p123
      %p125 = scmp.ne.s32.totalorder %s117, %s119
      %p126 = scmp.eq.s32.totalorder %s25, 1
      %p127 = por %p125, %p126
      %p128 = scmp.ne.s32.totalorder %s119, %s120
      %p129 = scmp.eq.s32.totalorder %s25, 0
      %p130 = por %p128, %p129
      %p131 = scmp.ne.s32.totalorder %s119, %s120
      %p132 = scmp.eq.s32.totalorder %s26, 1
      %p133 = por %p131, %p132
      %p135 = scmp.ne.s32.totalorder %s120, %s134
      %p136 = scmp.eq.s32.totalorder %s26, 0
      %p137 = por %p135, %p136
      %s139 = sadd.s32 %s138, 1
      %p142 = scmp.eq.s32.totalorder %s20, 1
      %p143 = scmp.ne.s32.totalorder %s138, %s140
      %p144 = scmp.eq.s32.totalorder %s20, 0
      %p145 = por %p143, %p144
      %p146 = scmp.ne.s32.totalorder %s138, %s140
      %p147 = scmp.eq.s32.totalorder %s25, 1
      %p148 = por %p146, %p147
      %p149 = scmp.ne.s32.totalorder %s140, %s141
      %p150 = scmp.eq.s32.totalorder %s25, 0
      %p151 = por %p149, %p150
      %p152 = scmp.ne.s32.totalorder %s140, %s141
      %p153 = scmp.eq.s32.totalorder %s26, 1
      %p154 = por %p152, %p153
      %p156 = scmp.ne.s32.totalorder %s141, %s155
      %p157 = scmp.eq.s32.totalorder %s26, 0
      %p158 = por %p156, %p157
      %s159 = ssub.s32 %s20, %s27
      %p160 = scmp.eq.s32.totalorder %s159, 0
      %s162 = sadd.s32 %s161, 1
      %s163 = scalar_select %p160, %s161, %s162
      %p166 = pneg %p160
      %p167 = scmp.eq.s32.totalorder %s20, 1
      %p168 = por %p166, %p167
      %p169 = scmp.ne.s32.totalorder %s161, %s164
      %p170 = scmp.eq.s32.totalorder %s20, 0
      %p171 = por %p169, %p170
      %p172 = scmp.ne.s32.totalorder %s161, %s164
      %p173 = scmp.eq.s32.totalorder %s25, 1
      %p174 = por %p172, %p173
      %p175 = scmp.ne.s32.totalorder %s164, %s165
      %p176 = scmp.eq.s32.totalorder %s25, 0
      %p177 = por %p175, %p176
      %p178 = scmp.ne.s32.totalorder %s164, %s165
      %p179 = scmp.eq.s32.totalorder %s26, 1
      %p180 = por %p178, %p179
      %p182 = scmp.ne.s32.totalorder %s165, %s181
      %p183 = scmp.eq.s32.totalorder %s26, 0
      %p184 = por %p182, %p183
      %p185 = scmp.le.s32.totalorder 1, %s20
      %p186 = scmp.lt.s32.totalorder %s20, 3
      %p187 = pnand %p185, %p186
      %p188 = pneg %p187
      // Predicated region
      $region9: #{tpu_custom_call.1} parent=5 // pred_check
        _
      $region10: #{tpu_custom_call.1} parent=5 // pred_check_branch
        %190 = sbr.rel (%p187) target = $region12
      $region11: #{tpu_custom_call.1} parent=5 // pred_region
        %s191 = ssub.s32 %s20, 1
        // Predicated region
        $region13: #{tpu_custom_call.1} parent=11 // pred_check
          %p192 = pneg %p67
        $region14: #{tpu_custom_call.1} parent=11 // pred_check_branch
          %194 = sbr.rel (%p192) target = $region16
        $region15: #{tpu_custom_call.1} parent=11 // pred_region
          %s196 = ssub.s32 128, 128
          %197 = vsyncadd [#allocation6], %s196
          %s198 = sshll.u32 [#allocation5], 4
          %s199 = int_to_ptr.vmem [resolvable:$true] %s198
          %204 = dma.hbm_to_vmem [thread:$0]  %s1, 128, %s199, [#allocation6], 32, 32, 2
        $region16: #{tpu_custom_call.1} parent=11 // pred_fallthru
          _
        // Predicated region
        $region17: #{tpu_custom_call.1} parent=11 // pred_check
          %p205 = pneg %p88
        $region18: #{tpu_custom_call.1} parent=11 // pred_check_branch
          %207 = sbr.rel (%p205) target = $region20
        $region19: #{tpu_custom_call.1} parent=11 // pred_region
          %s209 = ssub.s32 256, 256
          %210 = vsyncadd [#allocation6], %s209
          %s211 = sshll.u32 [#allocation7], 4
          %s212 = int_to_ptr.vmem [resolvable:$true] %s211
          %217 = dma.hbm_to_vmem [thread:$0]  %s2, 256, %s212, [#allocation6], 64, 64, 4
        $region20: #{tpu_custom_call.1} parent=11 // pred_fallthru
          _
        // Predicated region
        $region21: #{tpu_custom_call.1} parent=11 // pred_check
          %p218 = pneg %p109
        $region22: #{tpu_custom_call.1} parent=11 // pred_check_branch
          %220 = sbr.rel (%p218) target = $region24
        $region23: #{tpu_custom_call.1} parent=11 // pred_region
          _
        $region24: #{tpu_custom_call.1} parent=11 // pred_fallthru
          _
        // Predicated region
        $region25: #{tpu_custom_call.1} parent=11 // pred_check
          %p221 = pneg %p130
        $region26: #{tpu_custom_call.1} parent=11 // pred_check_branch
          %223 = sbr.rel (%p221) target = $region28
        $region27: #{tpu_custom_call.1} parent=11 // pred_region
          %s225 = ssub.s32 256, 256
          %226 = vsyncadd [#allocation9], %s225
          %s227 = sshll.u32 [#allocation8], 4
          %s228 = int_to_ptr.vmem [resolvable:$true] %s227
          %233 = dma.hbm_to_vmem [thread:$0]  %s4, 256, %s228, [#allocation9], 64, 64, 4
        $region28: #{tpu_custom_call.1} parent=11 // pred_fallthru
          _
        // Predicated region
        $region29: #{tpu_custom_call.1} parent=11 // pred_check
          %p234 = pneg %p151
        $region30: #{tpu_custom_call.1} parent=11 // pred_check_branch
          %236 = sbr.rel (%p234) target = $region32
        $region31: #{tpu_custom_call.1} parent=11 // pred_region
          _
        $region32: #{tpu_custom_call.1} parent=11 // pred_fallthru
          _
      $region12: #{tpu_custom_call.1} parent=5 // pred_fallthru
        _
      %p237 = scmp.lt.s32.totalorder %s20, 2
      // Predicated region
      $region33: #{tpu_custom_call.1} parent=5 // pred_check
        %p238 = pneg %p237
      $region34: #{tpu_custom_call.1} parent=5 // pred_check_branch
        %240 = sbr.rel (%p238) target = $region36
      $region35: #{tpu_custom_call.1} parent=5 // pred_region
        // Predicated region
        $region37: #{tpu_custom_call.1} parent=35 // pred_check
          %p241 = pneg %p40
        $region38: #{tpu_custom_call.1} parent=35 // pred_check_branch
          %243 = sbr.rel (%p241) target = $region40
        $region39: #{tpu_custom_call.1} parent=35 // pred_region
          %s244 = sand.u32 %s30, 1
          %s245 = scalar_lea.sflag [#allocation3], %s244
          %s246 = sand.u32 %s30, 1
          %s247 = smul.addr %s246, 32
          %s248 = scalar_lea.vmem [#allocation2], %s247
          %s249 = smul.u32 8, %s20
          %s251 = ssub.s32 512, 512
          %252 = vsyncadd %s245, %s251
          %s253 = smul.addr %s249, 64
          %s254 = scalar_lea.hbm %s0, %s253
          %s255 = sshll.u32 %s248, 4
          %s256 = int_to_ptr.vmem [resolvable:$true] %s255
          %261 = dma.hbm_to_vmem [thread:$0]  %s254, 512, %s256, %s245, 64, 64, 4
        $region40: #{tpu_custom_call.1} parent=35 // pred_fallthru
          _
      $region36: #{tpu_custom_call.1} parent=5 // pred_fallthru
        _
      %p262 = scmp.le.s32.totalorder 1, %s20
      %p263 = scmp.lt.s32.totalorder %s20, 3
      %p264 = pnand %p262, %p263
      %p265 = pneg %p264
      // Predicated region
      $region41: #{tpu_custom_call.1} parent=5 // pred_check
        _
      $region42: #{tpu_custom_call.1} parent=5 // pred_check_branch
        %267 = sbr.rel (%p264) target = $region44
      $region43: #{tpu_custom_call.1} parent=5 // pred_region
        %s268 = ssub.s32 %s20, 1
        %s269 = sand.u32 %s33, 1
        %s270 = scalar_lea.sflag [#allocation3], %s269
        %s271 = sand.u32 %s33, 1
        %s272 = smul.addr %s271, 32
        %s273 = scalar_lea.vmem [#allocation2], %s272
        // Predicated region
        $region45: #{tpu_custom_call.1} parent=43 // pred_check
          %p274 = pneg %p46
        $region46: #{tpu_custom_call.1} parent=43 // pred_check_branch
          %276 = sbr.rel (%p274) target = $region48
        $region47: #{tpu_custom_call.1} parent=43 // pred_region
          %277 = dma.done %s270, 512
        $region48: #{tpu_custom_call.1} parent=43 // pred_fallthru
          _
        // Predicated region
        $region49: #{tpu_custom_call.1} parent=43 // pred_check
          %p278 = pneg %p67
        $region50: #{tpu_custom_call.1} parent=43 // pred_check_branch
          %280 = sbr.rel (%p278) target = $region52
        $region51: #{tpu_custom_call.1} parent=43 // pred_region
          %281 = dma.done [#allocation6], 128
        $region52: #{tpu_custom_call.1} parent=43 // pred_fallthru
          _
        // Predicated region
        $region53: #{tpu_custom_call.1} parent=43 // pred_check
          %p282 = pneg %p88
        $region54: #{tpu_custom_call.1} parent=43 // pred_check_branch
          %284 = sbr.rel (%p282) target = $region56
        $region55: #{tpu_custom_call.1} parent=43 // pred_region
          %285 = dma.done [#allocation6], 256
        $region56: #{tpu_custom_call.1} parent=43 // pred_fallthru
          _
        // Predicated region
        $region57: #{tpu_custom_call.1} parent=43 // pred_check
          %p286 = pneg %p130
        $region58: #{tpu_custom_call.1} parent=43 // pred_check_branch
          %288 = sbr.rel (%p286) target = $region60
        $region59: #{tpu_custom_call.1} parent=43 // pred_region
          %289 = dma.done [#allocation9], 256
        $region60: #{tpu_custom_call.1} parent=43 // pred_fallthru
          _
        %s290 = sand.u32 %s33, 1
        %s291 = scalar_lea.sflag [#allocation3], %s290
        %s292 = sand.u32 %s33, 1
        %s293 = smul.addr %s292, 32
        %s294 = scalar_lea.vmem [#allocation2], %s293
        %p295 = pneg %p46
        %p296 = pneg %p43
        %p297 = pneg %p67
        %p298 = pneg %p64
        %p299 = pneg %p88
        %p300 = pneg %p85
        %p301 = pneg %p109
        %p302 = pneg %p106
        %p303 = pneg %p130
        %p304 = pneg %p127
        %p305 = pneg %p151
        %p306 = pneg %p148
        %p307 = pneg %p177
        %p308 = pneg %p174
        %s309 = sand.u32 %s164, 1
        %s310 = scalar_lea.sflag [#allocation4], %s309
        %s311 = sand.u32 %s164, 1
        %s312 = smul.addr %s311, 32
        %s313 = scalar_lea.vmem [#allocation10], %s312
        %s314 = smul.u32 8, %s25
        %s315 = smul.u32 4, %s25
        %v317 = vld [vmem:[%s273] sm:$0xf]
        %v318 = vld [vmem:[%s273 + $0x4] sm:$0xf]
        %v319 = vld [vmem:[%s273 + $0x8] sm:$0xf]
        %v320 = vld [vmem:[%s273 + $0xc] sm:$0xf]
        %v321 = vld [vmem:[%s273 + $0x10] sm:$0xf]
        %v322 = vld [vmem:[%s273 + $0x14] sm:$0xf]
        %v323 = vld [vmem:[%s273 + $0x18] sm:$0xf]
        %v324 = vld [vmem:[%s273 + $0x1c] sm:$0xf]
        %v325 = vld [vmem:[#allocation7] sm:$0xf]
        %v326 = vld [vmem:[#allocation7 + $0x4] sm:$0xf]
        %v327 = vld [vmem:[#allocation7 + $0x8] sm:$0xf]
        %v328 = vld [vmem:[#allocation7 + $0xc] sm:$0xf]
        %v329 = vld [vmem:[%s3] sm:$0x1]
        %v331 = vlaneseq
        %v332 = vshrl.u32 %v331, 7
        %v333 = vsub.s32 0, %v332
        %v334 = vrot.slane %v329, %v333
        %v344 = vunpack.c.l.b16 %v317
        %v345 = vunpack.c.l.b16 %v318
        %v346 = vunpack.c.l.b16 %v319
        %v347 = vunpack.c.l.b16 %v320
        %v348 = vunpack.c.l.b16 %v321
        %v349 = vunpack.c.l.b16 %v322
        %v350 = vunpack.c.l.b16 %v323
        %v351 = vunpack.c.l.b16 %v324
        %v352 = vpack.c.b16 %v345, %v344
        %v353 = vpack.c.b16 %v347, %v346
        %v354 = vpack.c.b16 %v349, %v348
        %v355 = vpack.c.b16 %v351, %v350
        %v360 = vunpack.c.l.b16 %v325
        %v361 = vunpack.c.l.b16 %v326
        %v362 = vunpack.c.l.b16 %v327
        %v363 = vunpack.c.l.b16 %v328
        %v364 = vpack.c.b16 %v361, %v360
        %v365 = vpack.c.b16 %v363, %v362
        %vm368 = vcmask 261120
        %v370 = vsel %vm368, %v352, 0
        %v373 = vsel %vm368, %v353, 0
        %v376 = vsel %vm368, %v354, 0
        %v379 = vsel %vm368, %v355, 0
        %381 = vmatprep.subr.bf16.mxu0 0
        %382 = vmatpush1.bf16.msra.mxu0 %v364
        %383 = vmatprep.subr.bf16.mxu0 0
        %384 = vmatpush1.bf16.msra.mxu0 %v365
        %385 = vmatprep.subr.bf16.mxu0 0
        %386 = vmatpush1.bf16.msra.mxu0 0
        %387 = vmatprep.subr.bf16.mxu0 0
        %388 = vmatpush1.bf16.msra.mxu0 0
        %389 = vmatprep.subr.bf16.mxu0 0
        %390 = vmatpush1.bf16.msra.mxu0 0
        %391 = vmatprep.subr.bf16.mxu0 0
        %392 = vmatpush1.bf16.msra.mxu0 0
        %393 = vmatprep.subr.bf16.mxu0 0
        %394 = vmatpush1.bf16.msra.mxu0 0
        %395 = vmatprep.subr.bf16.mxu0 0
        %396 = vmatpush1.bf16.msra.mxu0 0
        %397 = vmatprep.subr.bf16.mxu0 0
        %398 = vmatpush1.bf16.msra.mxu0 0
        %399 = vmatprep.subr.bf16.mxu0 0
        %400 = vmatpush1.bf16.msra.mxu0 0
        %401 = vmatprep.subr.bf16.mxu0 0
        %402 = vmatpush1.bf16.msra.mxu0 0
        %403 = vmatprep.subr.bf16.mxu0 0
        %404 = vmatpush1.bf16.msra.mxu0 0
        %405 = vmatprep.subr.bf16.mxu0 0
        %406 = vmatpush1.bf16.msra.mxu0 0
        %407 = vmatprep.subr.bf16.mxu0 0
        %408 = vmatpush1.bf16.msra.mxu0 0
        %409 = vmatprep.subr.bf16.mxu0 0
        %410 = vmatpush1.bf16.msra.mxu0 0
        %411 = vmatprep.subr.bf16.mxu0 0
        %412 = vmatpush1.bf16.msra.mxu0 0
        %413 = vmatprep.mubr.bf16.mxu0 0
        %414 = vmatmul.mubr.bf16.gmra.mrb[0].mxu0 %v370
        %v415 = vpop.f32.mrb[0].mxu0
        %v416 = vadd.f32 %v334, %v415
        %v417 = vpop.f32.mrb[0].mxu0
        %v418 = vpop.f32.mrb[0].mxu0
        %v419 = vadd.f32 %v334, %v418
        %v420 = vpop.f32.mrb[0].mxu0
        %421 = vmatprep.mubr.bf16.mxu0 0
        %422 = vmatmul.mubr.bf16.gmra.mrb[0].mxu0 %v373
        %v423 = vpop.f32.mrb[0].mxu0
        %v424 = vadd.f32 %v334, %v423
        %v425 = vpop.f32.mrb[0].mxu0
        %v426 = vpop.f32.mrb[0].mxu0
        %v427 = vadd.f32 %v334, %v426
        %v428 = vpop.f32.mrb[0].mxu0
        %429 = vmatprep.mubr.bf16.mxu0 0
        %430 = vmatmul.mubr.bf16.gmra.mrb[0].mxu0 %v376
        %v431 = vpop.f32.mrb[0].mxu0
        %v432 = vadd.f32 %v334, %v431
        %v433 = vpop.f32.mrb[0].mxu0
        %v434 = vpop.f32.mrb[0].mxu0
        %v435 = vadd.f32 %v334, %v434
        %v436 = vpop.f32.mrb[0].mxu0
        %437 = vmatprep.mubr.bf16.mxu0 0
        %438 = vmatmul.mubr.bf16.gmra.mrb[0].mxu0 %v379
        %v439 = vpop.f32.mrb[0].mxu0
        %v440 = vadd.f32 %v334, %v439
        %v441 = vpop.f32.mrb[0].mxu0
        %v442 = vpop.f32.mrb[0].mxu0
        %v443 = vadd.f32 %v334, %v442
        %v444 = vpop.f32.mrb[0].mxu0
        %445 = vdwg.mxu0
        %v446 = vpack.c.bf16 %v419, %v416
        %v447 = vpack.c.bf16 %v427, %v424
        %v448 = vpack.c.bf16 %v435, %v432
        %v449 = vpack.c.bf16 %v443, %v440
        %v454 = vunpack.c.l.b16 %v446
        %v455 = vunpack.c.h.b16 %v446
        %v456 = vunpack.c.l.b16 %v447
        %v457 = vunpack.c.h.b16 %v447
        %v458 = vunpack.c.l.b16 %v448
        %v459 = vunpack.c.h.b16 %v448
        %v460 = vunpack.c.l.b16 %v449
        %v461 = vunpack.c.h.b16 %v449
        %v462 = vpack.c.b16 %v454, %v454
        %v463 = vpack.c.b16 %v455, %v455
        %v464 = vpack.c.b16 %v456, %v456
        %v465 = vpack.c.b16 %v457, %v457
        %v466 = vpack.c.b16 %v458, %v458
        %v467 = vpack.c.b16 %v459, %v459
        %v468 = vpack.c.b16 %v460, %v460
        %v469 = vpack.c.b16 %v461, %v461
        %v470 = vld [vmem:[#allocation8] sm:$0xf]
        %v471 = vld [vmem:[#allocation8 + $0x4] sm:$0xf]
        %v472 = vld [vmem:[#allocation8 + $0x8] sm:$0xf]
        %v473 = vld [vmem:[#allocation8 + $0xc] sm:$0xf]
        %v474 = vld [vmem:[#allocation5] sm:$0x3]
        %vm475 = vcmask 64512
        %v477 = vsel %vm475, %v474, 0
        %v480 = vsel %vm475, %v462, 0
        %482 = vmatprep.subr.bf16.mxu0 0
        %483 = vmatpush1.bf16.xpose.msra.mxu0 %v480
        %484 = vmatprep.subr.bf16.mxu0 0
        %485 = vmatpush1.bf16.xpose.msra.mxu0 0
        %486 = vmatprep.subr.bf16.mxu0 0
        %487 = vmatpush1.bf16.xpose.msra.mxu0 0
        %488 = vmatprep.subr.bf16.mxu0 0
        %489 = vmatpush1.bf16.xpose.msra.mxu0 0
        %490 = vmatprep.subr.bf16.mxu0 0
        %491 = vmatpush1.bf16.xpose.msra.mxu0 0
        %492 = vmatprep.subr.bf16.mxu0 0
        %493 = vmatpush1.bf16.xpose.msra.mxu0 0
        %494 = vmatprep.subr.bf16.mxu0 0
        %495 = vmatpush1.bf16.xpose.msra.mxu0 0
        %496 = vmatprep.subr.bf16.mxu0 0
        %497 = vmatpush1.bf16.xpose.msra.mxu0 0
        %498 = vmatprep.subr.bf16.mxu0 0
        %499 = vmatpush1.bf16.xpose.msra.mxu0 0
        %500 = vmatprep.subr.bf16.mxu0 0
        %501 = vmatpush1.bf16.xpose.msra.mxu0 0
        %502 = vmatprep.subr.bf16.mxu0 0
        %503 = vmatpush1.bf16.xpose.msra.mxu0 0
        %504 = vmatprep.subr.bf16.mxu0 0
        %505 = vmatpush1.bf16.xpose.msra.mxu0 0
        %506 = vmatprep.subr.bf16.mxu0 0
        %507 = vmatpush1.bf16.xpose.msra.mxu0 0
        %508 = vmatprep.subr.bf16.mxu0 0
        %509 = vmatpush1.bf16.xpose.msra.mxu0 0
        %510 = vmatprep.subr.bf16.mxu0 0
        %511 = vmatpush1.bf16.xpose.msra.mxu0 0
        %512 = vmatprep.subr.bf16.mxu0 0
        %513 = vmatpush1.bf16.xpose.msra.mxu0 0
        %514 = vmatprep.mubr.bf16.mxu0 0
        %515 = vmatmul.mubr.bf16.gmra.mrb[0].mxu0 %v477
        %v516 = vpop.f32.mrb[0].mxu0
        %v517 = vadd.f32 0.0, %v516
        %v518 = vpop.f32.mrb[0].mxu0
        %v519 = vpop.f32.mrb[0].mxu0
        %v520 = vpop.f32.mrb[0].mxu0
        %521 = vdwg.mxu0
        %v523 = vsel %vm475, %v463, 0
        %525 = vmatprep.subr.bf16.mxu0 0
        %526 = vmatpush1.bf16.xpose.msra.mxu0 %v523
        %527 = vmatprep.subr.bf16.mxu0 0
        %528 = vmatpush1.bf16.xpose.msra.mxu0 0
        %529 = vmatprep.subr.bf16.mxu0 0
        %530 = vmatpush1.bf16.xpose.msra.mxu0 0
        %531 = vmatprep.subr.bf16.mxu0 0
        %532 = vmatpush1.bf16.xpose.msra.mxu0 0
        %533 = vmatprep.subr.bf16.mxu0 0
        %534 = vmatpush1.bf16.xpose.msra.mxu0 0
        %535 = vmatprep.subr.bf16.mxu0 0
        %536 = vmatpush1.bf16.xpose.msra.mxu0 0
        %537 = vmatprep.subr.bf16.mxu0 0
        %538 = vmatpush1.bf16.xpose.msra.mxu0 0
        %539 = vmatprep.subr.bf16.mxu0 0
        %540 = vmatpush1.bf16.xpose.msra.mxu0 0
        %541 = vmatprep.subr.bf16.mxu0 0
        %542 = vmatpush1.bf16.xpose.msra.mxu0 0
        %543 = vmatprep.subr.bf16.mxu0 0
        %544 = vmatpush1.bf16.xpose.msra.mxu0 0
        %545 = vmatprep.subr.bf16.mxu0 0
        %546 = vmatpush1.bf16.xpose.msra.mxu0 0
        %547 = vmatprep.subr.bf16.mxu0 0
        %548 = vmatpush1.bf16.xpose.msra.mxu0 0
        %549 = vmatprep.subr.bf16.mxu0 0
        %550 = vmatpush1.bf16.xpose.msra.mxu0 0
        %551 = vmatprep.subr.bf16.mxu0 0
        %552 = vmatpush1.bf16.xpose.msra.mxu0 0
        %553 = vmatprep.subr.bf16.mxu0 0
        %554 = vmatpush1.bf16.xpose.msra.mxu0 0
        %555 = vmatprep.subr.bf16.mxu0 0
        %556 = vmatpush1.bf16.xpose.msra.mxu0 0
        %557 = vmatprep.mubr.bf16.mxu0 0
        %558 = vmatmul.mubr.bf16.gmra.mrb[0].mxu0 %v477
        %v559 = vpop.f32.mrb[0].mxu0
        %v560 = vadd.f32 0.0, %v559
        %v561 = vpop.f32.mrb[0].mxu0
        %v562 = vpop.f32.mrb[0].mxu0
        %v563 = vpop.f32.mrb[0].mxu0
        %564 = vdwg.mxu0
        %v566 = vsel %vm475, %v464, 0
        %568 = vmatprep.subr.bf16.mxu0 0
        %569 = vmatpush1.bf16.xpose.msra.mxu0 %v566
        %570 = vmatprep.subr.bf16.mxu0 0
        %571 = vmatpush1.bf16.xpose.msra.mxu0 0
        %572 = vmatprep.subr.bf16.mxu0 0
        %573 = vmatpush1.bf16.xpose.msra.mxu0 0
        %574 = vmatprep.subr.bf16.mxu0 0
        %575 = vmatpush1.bf16.xpose.msra.mxu0 0
        %576 = vmatprep.subr.bf16.mxu0 0
        %577 = vmatpush1.bf16.xpose.msra.mxu0 0
        %578 = vmatprep.subr.bf16.mxu0 0
        %579 = vmatpush1.bf16.xpose.msra.mxu0 0
        %580 = vmatprep.subr.bf16.mxu0 0
        %581 = vmatpush1.bf16.xpose.msra.mxu0 0
        %582 = vmatprep.subr.bf16.mxu0 0
        %583 = vmatpush1.bf16.xpose.msra.mxu0 0
        %584 = vmatprep.subr.bf16.mxu0 0
        %585 = vmatpush1.bf16.xpose.msra.mxu0 0
        %586 = vmatprep.subr.bf16.mxu0 0
        %587 = vmatpush1.bf16.xpose.msra.mxu0 0
        %588 = vmatprep.subr.bf16.mxu0 0
        %589 = vmatpush1.bf16.xpose.msra.mxu0 0
        %590 = vmatprep.subr.bf16.mxu0 0
        %591 = vmatpush1.bf16.xpose.msra.mxu0 0
        %592 = vmatprep.subr.bf16.mxu0 0
        %593 = vmatpush1.bf16.xpose.msra.mxu0 0
        %594 = vmatprep.subr.bf16.mxu0 0
        %595 = vmatpush1.bf16.xpose.msra.mxu0 0
        %596 = vmatprep.subr.bf16.mxu0 0
        %597 = vmatpush1.bf16.xpose.msra.mxu0 0
        %598 = vmatprep.subr.bf16.mxu0 0
        %599 = vmatpush1.bf16.xpose.msra.mxu0 0
        %600 = vmatprep.mubr.bf16.mxu0 0
        %601 = vmatmul.mubr.bf16.gmra.mrb[0].mxu0 %v477
        %v602 = vpop.f32.mrb[0].mxu0
        %v603 = vadd.f32 0.0, %v602
        %v604 = vpop.f32.mrb[0].mxu0
        %v605 = vpop.f32.mrb[0].mxu0
        %v606 = vpop.f32.mrb[0].mxu0
        %607 = vdwg.mxu0
        %v609 = vsel %vm475, %v465, 0
        %611 = vmatprep.subr.bf16.mxu0 0
        %612 = vmatpush1.bf16.xpose.msra.mxu0 %v609
        %613 = vmatprep.subr.bf16.mxu0 0
        %614 = vmatpush1.bf16.xpose.msra.mxu0 0
        %615 = vmatprep.subr.bf16.mxu0 0
        %616 = vmatpush1.bf16.xpose.msra.mxu0 0
        %617 = vmatprep.subr.bf16.mxu0 0
        %618 = vmatpush1.bf16.xpose.msra.mxu0 0
        %619 = vmatprep.subr.bf16.mxu0 0
        %620 = vmatpush1.bf16.xpose.msra.mxu0 0
        %621 = vmatprep.subr.bf16.mxu0 0
        %622 = vmatpush1.bf16.xpose.msra.mxu0 0
        %623 = vmatprep.subr.bf16.mxu0 0
        %624 = vmatpush1.bf16.xpose.msra.mxu0 0
        %625 = vmatprep.subr.bf16.mxu0 0
        %626 = vmatpush1.bf16.xpose.msra.mxu0 0
        %627 = vmatprep.subr.bf16.mxu0 0
        %628 = vmatpush1.bf16.xpose.msra.mxu0 0
        %629 = vmatprep.subr.bf16.mxu0 0
        %630 = vmatpush1.bf16.xpose.msra.mxu0 0
        %631 = vmatprep.subr.bf16.mxu0 0
        %632 = vmatpush1.bf16.xpose.msra.mxu0 0
        %633 = vmatprep.subr.bf16.mxu0 0
        %634 = vmatpush1.bf16.xpose.msra.mxu0 0
        %635 = vmatprep.subr.bf16.mxu0 0
        %636 = vmatpush1.bf16.xpose.msra.mxu0 0
        %637 = vmatprep.subr.bf16.mxu0 0
        %638 = vmatpush1.bf16.xpose.msra.mxu0 0
        %639 = vmatprep.subr.bf16.mxu0 0
        %640 = vmatpush1.bf16.xpose.msra.mxu0 0
        %641 = vmatprep.subr.bf16.mxu0 0
        %642 = vmatpush1.bf16.xpose.msra.mxu0 0
        %643 = vmatprep.mubr.bf16.mxu0 0
        %644 = vmatmul.mubr.bf16.gmra.mrb[0].mxu0 %v477
        %v645 = vpop.f32.mrb[0].mxu0
        %v646 = vadd.f32 0.0, %v645
        %v647 = vpop.f32.mrb[0].mxu0
        %v648 = vpop.f32.mrb[0].mxu0
        %v649 = vpop.f32.mrb[0].mxu0
        %650 = vdwg.mxu0
        %v652 = vsel %vm475, %v466, 0
        %654 = vmatprep.subr.bf16.mxu0 0
        %655 = vmatpush1.bf16.xpose.msra.mxu0 %v652
        %656 = vmatprep.subr.bf16.mxu0 0
        %657 = vmatpush1.bf16.xpose.msra.mxu0 0
        %658 = vmatprep.subr.bf16.mxu0 0
        %659 = vmatpush1.bf16.xpose.msra.mxu0 0
        %660 = vmatprep.subr.bf16.mxu0 0
        %661 = vmatpush1.bf16.xpose.msra.mxu0 0
        %662 = vmatprep.subr.bf16.mxu0 0
        %663 = vmatpush1.bf16.xpose.msra.mxu0 0
        %664 = vmatprep.subr.bf16.mxu0 0
        %665 = vmatpush1.bf16.xpose.msra.mxu0 0
        %666 = vmatprep.subr.bf16.mxu0 0
        %667 = vmatpush1.bf16.xpose.msra.mxu0 0
        %668 = vmatprep.subr.bf16.mxu0 0
        %669 = vmatpush1.bf16.xpose.msra.mxu0 0
        %670 = vmatprep.subr.bf16.mxu0 0
        %671 = vmatpush1.bf16.xpose.msra.mxu0 0
        %672 = vmatprep.subr.bf16.mxu0 0
        %673 = vmatpush1.bf16.xpose.msra.mxu0 0
        %674 = vmatprep.subr.bf16.mxu0 0
        %675 = vmatpush1.bf16.xpose.msra.mxu0 0
        %676 = vmatprep.subr.bf16.mxu0 0
        %677 = vmatpush1.bf16.xpose.msra.mxu0 0
        %678 = vmatprep.subr.bf16.mxu0 0
        %679 = vmatpush1.bf16.xpose.msra.mxu0 0
        %680 = vmatprep.subr.bf16.mxu0 0
        %681 = vmatpush1.bf16.xpose.msra.mxu0 0
        %682 = vmatprep.subr.bf16.mxu0 0
        %683 = vmatpush1.bf16.xpose.msra.mxu0 0
        %684 = vmatprep.subr.bf16.mxu0 0
        %685 = vmatpush1.bf16.xpose.msra.mxu0 0
        %686 = vmatprep.mubr.bf16.mxu0 0
        %687 = vmatmul.mubr.bf16.gmra.mrb[0].mxu0 %v477
        %v688 = vpop.f32.mrb[0].mxu0
        %v689 = vadd.f32 0.0, %v688
        %v690 = vpop.f32.mrb[0].mxu0
        %v691 = vpop.f32.mrb[0].mxu0
        %v692 = vpop.f32.mrb[0].mxu0
        %693 = vdwg.mxu0
        %v695 = vsel %vm475, %v467, 0
        %697 = vmatprep.subr.bf16.mxu0 0
        %698 = vmatpush1.bf16.xpose.msra.mxu0 %v695
        %699 = vmatprep.subr.bf16.mxu0 0
        %700 = vmatpush1.bf16.xpose.msra.mxu0 0
        %701 = vmatprep.subr.bf16.mxu0 0
        %702 = vmatpush1.bf16.xpose.msra.mxu0 0
        %703 = vmatprep.subr.bf16.mxu0 0
        %704 = vmatpush1.bf16.xpose.msra.mxu0 0
        %705 = vmatprep.subr.bf16.mxu0 0
        %706 = vmatpush1.bf16.xpose.msra.mxu0 0
        %707 = vmatprep.subr.bf16.mxu0 0
        %708 = vmatpush1.bf16.xpose.msra.mxu0 0
        %709 = vmatprep.subr.bf16.mxu0 0
        %710 = vmatpush1.bf16.xpose.msra.mxu0 0
        %711 = vmatprep.subr.bf16.mxu0 0
        %712 = vmatpush1.bf16.xpose.msra.mxu0 0
        %713 = vmatprep.subr.bf16.mxu0 0
        %714 = vmatpush1.bf16.xpose.msra.mxu0 0
        %715 = vmatprep.subr.bf16.mxu0 0
        %716 = vmatpush1.bf16.xpose.msra.mxu0 0
        %717 = vmatprep.subr.bf16.mxu0 0
        %718 = vmatpush1.bf16.xpose.msra.mxu0 0
        %719 = vmatprep.subr.bf16.mxu0 0
        %720 = vmatpush1.bf16.xpose.msra.mxu0 0
        %721 = vmatprep.subr.bf16.mxu0 0
        %722 = vmatpush1.bf16.xpose.msra.mxu0 0
        %723 = vmatprep.subr.bf16.mxu0 0
        %724 = vmatpush1.bf16.xpose.msra.mxu0 0
        %725 = vmatprep.subr.bf16.mxu0 0
        %726 = vmatpush1.bf16.xpose.msra.mxu0 0
        %727 = vmatprep.subr.bf16.mxu0 0
        %728 = vmatpush1.bf16.xpose.msra.mxu0 0
        %729 = vmatprep.mubr.bf16.mxu0 0
        %730 = vmatmul.mubr.bf16.gmra.mrb[0].mxu0 %v477
        %v731 = vpop.f32.mrb[0].mxu0
        %v732 = vadd.f32 0.0, %v731
        %v733 = vpop.f32.mrb[0].mxu0
        %v734 = vpop.f32.mrb[0].mxu0
        %v735 = vpop.f32.mrb[0].mxu0
        %736 = vdwg.mxu0
        %v738 = vsel %vm475, %v468, 0
        %740 = vmatprep.subr.bf16.mxu0 0
        %741 = vmatpush1.bf16.xpose.msra.mxu0 %v738
        %742 = vmatprep.subr.bf16.mxu0 0
        %743 = vmatpush1.bf16.xpose.msra.mxu0 0
        %744 = vmatprep.subr.bf16.mxu0 0
        %745 = vmatpush1.bf16.xpose.msra.mxu0 0
        %746 = vmatprep.subr.bf16.mxu0 0
        %747 = vmatpush1.bf16.xpose.msra.mxu0 0
        %748 = vmatprep.subr.bf16.mxu0 0
        %749 = vmatpush1.bf16.xpose.msra.mxu0 0
        %750 = vmatprep.subr.bf16.mxu0 0
        %751 = vmatpush1.bf16.xpose.msra.mxu0 0
        %752 = vmatprep.subr.bf16.mxu0 0
        %753 = vmatpush1.bf16.xpose.msra.mxu0 0
        %754 = vmatprep.subr.bf16.mxu0 0
        %755 = vmatpush1.bf16.xpose.msra.mxu0 0
        %756 = vmatprep.subr.bf16.mxu0 0
        %757 = vmatpush1.bf16.xpose.msra.mxu0 0
        %758 = vmatprep.subr.bf16.mxu0 0
        %759 = vmatpush1.bf16.xpose.msra.mxu0 0
        %760 = vmatprep.subr.bf16.mxu0 0
        %761 = vmatpush1.bf16.xpose.msra.mxu0 0
        %762 = vmatprep.subr.bf16.mxu0 0
        %763 = vmatpush1.bf16.xpose.msra.mxu0 0
        %764 = vmatprep.subr.bf16.mxu0 0
        %765 = vmatpush1.bf16.xpose.msra.mxu0 0
        %766 = vmatprep.subr.bf16.mxu0 0
        %767 = vmatpush1.bf16.xpose.msra.mxu0 0
        %768 = vmatprep.subr.bf16.mxu0 0
        %769 = vmatpush1.bf16.xpose.msra.mxu0 0
        %770 = vmatprep.subr.bf16.mxu0 0
        %771 = vmatpush1.bf16.xpose.msra.mxu0 0
        %772 = vmatprep.mubr.bf16.mxu0 0
        %773 = vmatmul.mubr.bf16.gmra.mrb[0].mxu0 %v477
        %v774 = vpop.f32.mrb[0].mxu0
        %v775 = vadd.f32 0.0, %v774
        %v776 = vpop.f32.mrb[0].mxu0
        %v777 = vpop.f32.mrb[0].mxu0
        %v778 = vpop.f32.mrb[0].mxu0
        %779 = vdwg.mxu0
        %v781 = vsel %vm475, %v469, 0
        %783 = vmatprep.subr.bf16.mxu0 0
        %784 = vmatpush1.bf16.xpose.msra.mxu0 %v781
        %785 = vmatprep.subr.bf16.mxu0 0
        %786 = vmatpush1.bf16.xpose.msra.mxu0 0
        %787 = vmatprep.subr.bf16.mxu0 0
        %788 = vmatpush1.bf16.xpose.msra.mxu0 0
        %789 = vmatprep.subr.bf16.mxu0 0
        %790 = vmatpush1.bf16.xpose.msra.mxu0 0
        %791 = vmatprep.subr.bf16.mxu0 0
        %792 = vmatpush1.bf16.xpose.msra.mxu0 0
        %793 = vmatprep.subr.bf16.mxu0 0
        %794 = vmatpush1.bf16.xpose.msra.mxu0 0
        %795 = vmatprep.subr.bf16.mxu0 0
        %796 = vmatpush1.bf16.xpose.msra.mxu0 0
        %797 = vmatprep.subr.bf16.mxu0 0
        %798 = vmatpush1.bf16.xpose.msra.mxu0 0
        %799 = vmatprep.subr.bf16.mxu0 0
        %800 = vmatpush1.bf16.xpose.msra.mxu0 0
        %801 = vmatprep.subr.bf16.mxu0 0
        %802 = vmatpush1.bf16.xpose.msra.mxu0 0
        %803 = vmatprep.subr.bf16.mxu0 0
        %804 = vmatpush1.bf16.xpose.msra.mxu0 0
        %805 = vmatprep.subr.bf16.mxu0 0
        %806 = vmatpush1.bf16.xpose.msra.mxu0 0
        %807 = vmatprep.subr.bf16.mxu0 0
        %808 = vmatpush1.bf16.xpose.msra.mxu0 0
        %809 = vmatprep.subr.bf16.mxu0 0
        %810 = vmatpush1.bf16.xpose.msra.mxu0 0
        %811 = vmatprep.subr.bf16.mxu0 0
        %812 = vmatpush1.bf16.xpose.msra.mxu0 0
        %813 = vmatprep.subr.bf16.mxu0 0
        %814 = vmatpush1.bf16.xpose.msra.mxu0 0
        %815 = vmatprep.mubr.bf16.mxu0 0
        %816 = vmatmul.mubr.bf16.gmra.mrb[0].mxu0 %v477
        %v817 = vpop.f32.mrb[0].mxu0
        %v818 = vadd.f32 0.0, %v817
        %v819 = vpop.f32.mrb[0].mxu0
        %v820 = vpop.f32.mrb[0].mxu0
        %v821 = vpop.f32.mrb[0].mxu0
        %822 = vdwg.mxu0
        %vm823 = vcmask 60416
        %v824 = vsel %vm823, %v517, -inf
        %825 = vmax.xlane.f32.xlu0 %v824
        %v826 = vpop.xlane.xlu0 %825
        %v827 = vsel %vm823, %v560, -inf
        %828 = vmax.xlane.f32.xlu0 %v827
        %v829 = vpop.xlane.xlu0 %828
        %v830 = vsel %vm823, %v603, -inf
        %831 = vmax.xlane.f32.xlu0 %v830
        %v832 = vpop.xlane.xlu0 %831
        %v833 = vsel %vm823, %v646, -inf
        %834 = vmax.xlane.f32.xlu0 %v833
        %v835 = vpop.xlane.xlu0 %834
        %v836 = vsel %vm823, %v689, -inf
        %837 = vmax.xlane.f32.xlu0 %v836
        %v838 = vpop.xlane.xlu0 %837
        %v839 = vsel %vm823, %v732, -inf
        %840 = vmax.xlane.f32.xlu0 %v839
        %v841 = vpop.xlane.xlu0 %840
        %v842 = vsel %vm823, %v775, -inf
        %843 = vmax.xlane.f32.xlu0 %v842
        %v844 = vpop.xlane.xlu0 %843
        %v845 = vsel %vm823, %v818, -inf
        %846 = vmax.xlane.f32.xlu0 %v845
        %v847 = vpop.xlane.xlu0 %846
        %v848 = vsub.f32 %v517, %v826
        %v849 = vsub.f32 %v560, %v829
        %v850 = vsub.f32 %v603, %v832
        %v851 = vsub.f32 %v646, %v835
        %v852 = vsub.f32 %v689, %v838
        %v853 = vsub.f32 %v732, %v841
        %v854 = vsub.f32 %v775, %v844
        %v855 = vsub.f32 %v818, %v847
        %v856 = vmul.f32 %v848, 1.442695
        %v857 = vpow.pop %v856
        %v858 = vmul.f32 %v849, 1.442695
        %v859 = vpow.pop %v858
        %v860 = vmul.f32 %v850, 1.442695
        %v861 = vpow.pop %v860
        %v862 = vmul.f32 %v851, 1.442695
        %v863 = vpow.pop %v862
        %v864 = vmul.f32 %v852, 1.442695
        %v865 = vpow.pop %v864
        %v866 = vmul.f32 %v853, 1.442695
        %v867 = vpow.pop %v866
        %v868 = vmul.f32 %v854, 1.442695
        %v869 = vpow.pop %v868
        %v870 = vmul.f32 %v855, 1.442695
        %v871 = vpow.pop %v870
        %v872 = vsel %vm823, %v857, 0.0
        %873 = vadd.xlane.f32.xlu0 %v872
        %v874 = vpop.xlane.xlu0 %873
        %v875 = vsel %vm823, %v859, 0.0
        %876 = vadd.xlane.f32.xlu0 %v875
        %v877 = vpop.xlane.xlu0 %876
        %v878 = vsel %vm823, %v861, 0.0
        %879 = vadd.xlane.f32.xlu0 %v878
        %v880 = vpop.xlane.xlu0 %879
        %v881 = vsel %vm823, %v863, 0.0
        %882 = vadd.xlane.f32.xlu0 %v881
        %v883 = vpop.xlane.xlu0 %882
        %v884 = vsel %vm823, %v865, 0.0
        %885 = vadd.xlane.f32.xlu0 %v884
        %v886 = vpop.xlane.xlu0 %885
        %v887 = vsel %vm823, %v867, 0.0
        %888 = vadd.xlane.f32.xlu0 %v887
        %v889 = vpop.xlane.xlu0 %888
        %v890 = vsel %vm823, %v869, 0.0
        %891 = vadd.xlane.f32.xlu0 %v890
        %v892 = vpop.xlane.xlu0 %891
        %v893 = vsel %vm823, %v871, 0.0
        %894 = vadd.xlane.f32.xlu0 %v893
        %v895 = vpop.xlane.xlu0 %894
        %v896 = vrcp.pop %v874
        %v897 = vrcp.pop %v877
        %v898 = vrcp.pop %v880
        %v899 = vrcp.pop %v883
        %v900 = vrcp.pop %v886
        %v901 = vrcp.pop %v889
        %v902 = vrcp.pop %v892
        %v903 = vrcp.pop %v895
        %v904 = vmul.f32 %v857, %v896
        %v905 = vmul.f32 %v859, %v897
        %v906 = vmul.f32 %v861, %v898
        %v907 = vmul.f32 %v863, %v899
        %v908 = vmul.f32 %v865, %v900
        %v909 = vmul.f32 %v867, %v901
        %v910 = vmul.f32 %v869, %v902
        %v911 = vmul.f32 %v871, %v903
        %v912 = vpack.c.bf16 %v904, %v904
        %v913 = vpack.c.bf16 %v905, %v905
        %v914 = vpack.c.bf16 %v906, %v906
        %v915 = vpack.c.bf16 %v907, %v907
        %v916 = vpack.c.bf16 %v908, %v908
        %v917 = vpack.c.bf16 %v909, %v909
        %v918 = vpack.c.bf16 %v910, %v910
        %v919 = vpack.c.bf16 %v911, %v911
        %920 = vrot.lane.b32.xlu0 %v462, 96
        %v921 = vpop.permute.xlu0 %920
        %v923 = vsel %vm475, %v912, 0
        %vm925 = vcmask 1043456
        %v927 = vsel %vm925, %v921, 0
        %929 = vmatprep.subr.bf16.mxu0 0
        %930 = vmatpush1.bf16.msra.mxu0 %v927
        %931 = vmatprep.subr.bf16.mxu0 0
        %932 = vmatpush1.bf16.msra.mxu0 0
        %933 = vmatprep.subr.bf16.mxu0 0
        %934 = vmatpush1.bf16.msra.mxu0 0
        %935 = vmatprep.subr.bf16.mxu0 0
        %936 = vmatpush1.bf16.msra.mxu0 0
        %937 = vmatprep.subr.bf16.mxu0 0
        %938 = vmatpush1.bf16.msra.mxu0 0
        %939 = vmatprep.subr.bf16.mxu0 0
        %940 = vmatpush1.bf16.msra.mxu0 0
        %941 = vmatprep.subr.bf16.mxu0 0
        %942 = vmatpush1.bf16.msra.mxu0 0
        %943 = vmatprep.subr.bf16.mxu0 0
        %944 = vmatpush1.bf16.msra.mxu0 0
        %945 = vmatprep.subr.bf16.mxu0 0
        %946 = vmatpush1.bf16.msra.mxu0 0
        %947 = vmatprep.subr.bf16.mxu0 0
        %948 = vmatpush1.bf16.msra.mxu0 0
        %949 = vmatprep.subr.bf16.mxu0 0
        %950 = vmatpush1.bf16.msra.mxu0 0
        %951 = vmatprep.subr.bf16.mxu0 0
        %952 = vmatpush1.bf16.msra.mxu0 0
        %953 = vmatprep.subr.bf16.mxu0 0
        %954 = vmatpush1.bf16.msra.mxu0 0
        %955 = vmatprep.subr.bf16.mxu0 0
        %956 = vmatpush1.bf16.msra.mxu0 0
        %957 = vmatprep.subr.bf16.mxu0 0
        %958 = vmatpush1.bf16.msra.mxu0 0
        %959 = vmatprep.subr.bf16.mxu0 0
        %960 = vmatpush1.bf16.msra.mxu0 0
        %961 = vmatprep.mubr.bf16.mxu0 0
        %962 = vmatmul.mubr.bf16.gmra.mrb[0].mxu0 %v923
        %v963 = vpop.f32.mrb[0].mxu0
        %v964 = vadd.f32 0.0, %v963
        %v965 = vpop.f32.mrb[0].mxu0
        %v966 = vpop.f32.mrb[0].mxu0
        %v967 = vpop.f32.mrb[0].mxu0
        %968 = vdwg.mxu0
        %969 = vrot.lane.b32.xlu0 %v463, 96
        %v970 = vpop.permute.xlu0 %969
        %v972 = vsel %vm475, %v913, 0
        %v975 = vsel %vm925, %v970, 0
        %977 = vmatprep.subr.bf16.mxu0 0
        %978 = vmatpush1.bf16.msra.mxu0 %v975
        %979 = vmatprep.subr.bf16.mxu0 0
        %980 = vmatpush1.bf16.msra.mxu0 0
        %981 = vmatprep.subr.bf16.mxu0 0
        %982 = vmatpush1.bf16.msra.mxu0 0
        %983 = vmatprep.subr.bf16.mxu0 0
        %984 = vmatpush1.bf16.msra.mxu0 0
        %985 = vmatprep.subr.bf16.mxu0 0
        %986 = vmatpush1.bf16.msra.mxu0 0
        %987 = vmatprep.subr.bf16.mxu0 0
        %988 = vmatpush1.bf16.msra.mxu0 0
        %989 = vmatprep.subr.bf16.mxu0 0
        %990 = vmatpush1.bf16.msra.mxu0 0
        %991 = vmatprep.subr.bf16.mxu0 0
        %992 = vmatpush1.bf16.msra.mxu0 0
        %993 = vmatprep.subr.bf16.mxu0 0
        %994 = vmatpush1.bf16.msra.mxu0 0
        %995 = vmatprep.subr.bf16.mxu0 0
        %996 = vmatpush1.bf16.msra.mxu0 0
        %997 = vmatprep.subr.bf16.mxu0 0
        %998 = vmatpush1.bf16.msra.mxu0 0
        %999 = vmatprep.subr.bf16.mxu0 0
        %1000 = vmatpush1.bf16.msra.mxu0 0
        %1001 = vmatprep.subr.bf16.mxu0 0
        %1002 = vmatpush1.bf16.msra.mxu0 0
        %1003 = vmatprep.subr.bf16.mxu0 0
        %1004 = vmatpush1.bf16.msra.mxu0 0
        %1005 = vmatprep.subr.bf16.mxu0 0
        %1006 = vmatpush1.bf16.msra.mxu0 0
        %1007 = vmatprep.subr.bf16.mxu0 0
        %1008 = vmatpush1.bf16.msra.mxu0 0
        %1009 = vmatprep.mubr.bf16.mxu0 0
        %1010 = vmatmul.mubr.bf16.gmra.mrb[0].mxu0 %v972
        %v1011 = vpop.f32.mrb[0].mxu0
        %v1012 = vadd.f32 0.0, %v1011
        %v1013 = vpop.f32.mrb[0].mxu0
        %v1014 = vpop.f32.mrb[0].mxu0
        %v1015 = vpop.f32.mrb[0].mxu0
        %1016 = vdwg.mxu0
        %1017 = vrot.lane.b32.xlu0 %v464, 96
        %v1018 = vpop.permute.xlu0 %1017
        %v1020 = vsel %vm475, %v914, 0
        %v1023 = vsel %vm925, %v1018, 0
        %1025 = vmatprep.subr.bf16.mxu0 0
        %1026 = vmatpush1.bf16.msra.mxu0 %v1023
        %1027 = vmatprep.subr.bf16.mxu0 0
        %1028 = vmatpush1.bf16.msra.mxu0 0
        %1029 = vmatprep.subr.bf16.mxu0 0
        %1030 = vmatpush1.bf16.msra.mxu0 0
        %1031 = vmatprep.subr.bf16.mxu0 0
        %1032 = vmatpush1.bf16.msra.mxu0 0
        %1033 = vmatprep.subr.bf16.mxu0 0
        %1034 = vmatpush1.bf16.msra.mxu0 0
        %1035 = vmatprep.subr.bf16.mxu0 0
        %1036 = vmatpush1.bf16.msra.mxu0 0
        %1037 = vmatprep.subr.bf16.mxu0 0
        %1038 = vmatpush1.bf16.msra.mxu0 0
        %1039 = vmatprep.subr.bf16.mxu0 0
        %1040 = vmatpush1.bf16.msra.mxu0 0
        %1041 = vmatprep.subr.bf16.mxu0 0
        %1042 = vmatpush1.bf16.msra.mxu0 0
        %1043 = vmatprep.subr.bf16.mxu0 0
        %1044 = vmatpush1.bf16.msra.mxu0 0
        %1045 = vmatprep.subr.bf16.mxu0 0
        %1046 = vmatpush1.bf16.msra.mxu0 0
        %1047 = vmatprep.subr.bf16.mxu0 0
        %1048 = vmatpush1.bf16.msra.mxu0 0
        %1049 = vmatprep.subr.bf16.mxu0 0
        %1050 = vmatpush1.bf16.msra.mxu0 0
        %1051 = vmatprep.subr.bf16.mxu0 0
        %1052 = vmatpush1.bf16.msra.mxu0 0
        %1053 = vmatprep.subr.bf16.mxu0 0
        %1054 = vmatpush1.bf16.msra.mxu0 0
        %1055 = vmatprep.subr.bf16.mxu0 0
        %1056 = vmatpush1.bf16.msra.mxu0 0
        %1057 = vmatprep.mubr.bf16.mxu0 0
        %1058 = vmatmul.mubr.bf16.gmra.mrb[0].mxu0 %v1020
        %v1059 = vpop.f32.mrb[0].mxu0
        %v1060 = vadd.f32 0.0, %v1059
        %v1061 = vpop.f32.mrb[0].mxu0
        %v1062 = vpop.f32.mrb[0].mxu0
        %v1063 = vpop.f32.mrb[0].mxu0
        %1064 = vdwg.mxu0
        %1065 = vrot.lane.b32.xlu0 %v465, 96
        %v1066 = vpop.permute.xlu0 %1065
        %v1068 = vsel %vm475, %v915, 0
        %v1071 = vsel %vm925, %v1066, 0
        %1073 = vmatprep.subr.bf16.mxu0 0
        %1074 = vmatpush1.bf16.msra.mxu0 %v1071
        %1075 = vmatprep.subr.bf16.mxu0 0
        %1076 = vmatpush1.bf16.msra.mxu0 0
        %1077 = vmatprep.subr.bf16.mxu0 0
        %1078 = vmatpush1.bf16.msra.mxu0 0
        %1079 = vmatprep.subr.bf16.mxu0 0
        %1080 = vmatpush1.bf16.msra.mxu0 0
        %1081 = vmatprep.subr.bf16.mxu0 0
        %1082 = vmatpush1.bf16.msra.mxu0 0
        %1083 = vmatprep.subr.bf16.mxu0 0
        %1084 = vmatpush1.bf16.msra.mxu0 0
        %1085 = vmatprep.subr.bf16.mxu0 0
        %1086 = vmatpush1.bf16.msra.mxu0 0
        %1087 = vmatprep.subr.bf16.mxu0 0
        %1088 = vmatpush1.bf16.msra.mxu0 0
        %1089 = vmatprep.subr.bf16.mxu0 0
        %1090 = vmatpush1.bf16.msra.mxu0 0
        %1091 = vmatprep.subr.bf16.mxu0 0
        %1092 = vmatpush1.bf16.msra.mxu0 0
        %1093 = vmatprep.subr.bf16.mxu0 0
        %1094 = vmatpush1.bf16.msra.mxu0 0
        %1095 = vmatprep.subr.bf16.mxu0 0
        %1096 = vmatpush1.bf16.msra.mxu0 0
        %1097 = vmatprep.subr.bf16.mxu0 0
        %1098 = vmatpush1.bf16.msra.mxu0 0
        %1099 = vmatprep.subr.bf16.mxu0 0
        %1100 = vmatpush1.bf16.msra.mxu0 0
        %1101 = vmatprep.subr.bf16.mxu0 0
        %1102 = vmatpush1.bf16.msra.mxu0 0
        %1103 = vmatprep.subr.bf16.mxu0 0
        %1104 = vmatpush1.bf16.msra.mxu0 0
        %1105 = vmatprep.mubr.bf16.mxu0 0
        %1106 = vmatmul.mubr.bf16.gmra.mrb[0].mxu0 %v1068
        %v1107 = vpop.f32.mrb[0].mxu0
        %v1108 = vadd.f32 0.0, %v1107
        %v1109 = vpop.f32.mrb[0].mxu0
        %v1110 = vpop.f32.mrb[0].mxu0
        %v1111 = vpop.f32.mrb[0].mxu0
        %1112 = vdwg.mxu0
        %1113 = vrot.lane.b32.xlu0 %v466, 96
        %v1114 = vpop.permute.xlu0 %1113
        %v1116 = vsel %vm475, %v916, 0
        %v1119 = vsel %vm925, %v1114, 0
        %1121 = vmatprep.subr.bf16.mxu0 0
        %1122 = vmatpush1.bf16.msra.mxu0 %v1119
        %1123 = vmatprep.subr.bf16.mxu0 0
        %1124 = vmatpush1.bf16.msra.mxu0 0
        %1125 = vmatprep.subr.bf16.mxu0 0
        %1126 = vmatpush1.bf16.msra.mxu0 0
        %1127 = vmatprep.subr.bf16.mxu0 0
        %1128 = vmatpush1.bf16.msra.mxu0 0
        %1129 = vmatprep.subr.bf16.mxu0 0
        %1130 = vmatpush1.bf16.msra.mxu0 0
        %1131 = vmatprep.subr.bf16.mxu0 0
        %1132 = vmatpush1.bf16.msra.mxu0 0
        %1133 = vmatprep.subr.bf16.mxu0 0
        %1134 = vmatpush1.bf16.msra.mxu0 0
        %1135 = vmatprep.subr.bf16.mxu0 0
        %1136 = vmatpush1.bf16.msra.mxu0 0
        %1137 = vmatprep.subr.bf16.mxu0 0
        %1138 = vmatpush1.bf16.msra.mxu0 0
        %1139 = vmatprep.subr.bf16.mxu0 0
        %1140 = vmatpush1.bf16.msra.mxu0 0
        %1141 = vmatprep.subr.bf16.mxu0 0
        %1142 = vmatpush1.bf16.msra.mxu0 0
        %1143 = vmatprep.subr.bf16.mxu0 0
        %1144 = vmatpush1.bf16.msra.mxu0 0
        %1145 = vmatprep.subr.bf16.mxu0 0
        %1146 = vmatpush1.bf16.msra.mxu0 0
        %1147 = vmatprep.subr.bf16.mxu0 0
        %1148 = vmatpush1.bf16.msra.mxu0 0
        %1149 = vmatprep.subr.bf16.mxu0 0
        %1150 = vmatpush1.bf16.msra.mxu0 0
        %1151 = vmatprep.subr.bf16.mxu0 0
        %1152 = vmatpush1.bf16.msra.mxu0 0
        %1153 = vmatprep.mubr.bf16.mxu0 0
        %1154 = vmatmul.mubr.bf16.gmra.mrb[0].mxu0 %v1116
        %v1155 = vpop.f32.mrb[0].mxu0
        %v1156 = vadd.f32 0.0, %v1155
        %v1157 = vpop.f32.mrb[0].mxu0
        %v1158 = vpop.f32.mrb[0].mxu0
        %v1159 = vpop.f32.mrb[0].mxu0
        %1160 = vdwg.mxu0
        %1161 = vrot.lane.b32.xlu0 %v467, 96
        %v1162 = vpop.permute.xlu0 %1161
        %v1164 = vsel %vm475, %v917, 0
        %v1167 = vsel %vm925, %v1162, 0
        %1169 = vmatprep.subr.bf16.mxu0 0
        %1170 = vmatpush1.bf16.msra.mxu0 %v1167
        %1171 = vmatprep.subr.bf16.mxu0 0
        %1172 = vmatpush1.bf16.msra.mxu0 0
        %1173 = vmatprep.subr.bf16.mxu0 0
        %1174 = vmatpush1.bf16.msra.mxu0 0
        %1175 = vmatprep.subr.bf16.mxu0 0
        %1176 = vmatpush1.bf16.msra.mxu0 0
        %1177 = vmatprep.subr.bf16.mxu0 0
        %1178 = vmatpush1.bf16.msra.mxu0 0
        %1179 = vmatprep.subr.bf16.mxu0 0
        %1180 = vmatpush1.bf16.msra.mxu0 0
        %1181 = vmatprep.subr.bf16.mxu0 0
        %1182 = vmatpush1.bf16.msra.mxu0 0
        %1183 = vmatprep.subr.bf16.mxu0 0
        %1184 = vmatpush1.bf16.msra.mxu0 0
        %1185 = vmatprep.subr.bf16.mxu0 0
        %1186 = vmatpush1.bf16.msra.mxu0 0
        %1187 = vmatprep.subr.bf16.mxu0 0
        %1188 = vmatpush1.bf16.msra.mxu0 0
        %1189 = vmatprep.subr.bf16.mxu0 0
        %1190 = vmatpush1.bf16.msra.mxu0 0
        %1191 = vmatprep.subr.bf16.mxu0 0
        %1192 = vmatpush1.bf16.msra.mxu0 0
        %1193 = vmatprep.subr.bf16.mxu0 0
        %1194 = vmatpush1.bf16.msra.mxu0 0
        %1195 = vmatprep.subr.bf16.mxu0 0
        %1196 = vmatpush1.bf16.msra.mxu0 0
        %1197 = vmatprep.subr.bf16.mxu0 0
        %1198 = vmatpush1.bf16.msra.mxu0 0
        %1199 = vmatprep.subr.bf16.mxu0 0
        %1200 = vmatpush1.bf16.msra.mxu0 0
        %1201 = vmatprep.mubr.bf16.mxu0 0
        %1202 = vmatmul.mubr.bf16.gmra.mrb[0].mxu0 %v1164
        %v1203 = vpop.f32.mrb[0].mxu0
        %v1204 = vadd.f32 0.0, %v1203
        %v1205 = vpop.f32.mrb[0].mxu0
        %v1206 = vpop.f32.mrb[0].mxu0
        %v1207 = vpop.f32.mrb[0].mxu0
        %1208 = vdwg.mxu0
        %1209 = vrot.lane.b32.xlu0 %v468, 96
        %v1210 = vpop.permute.xlu0 %1209
        %v1212 = vsel %vm475, %v918, 0
        %v1215 = vsel %vm925, %v1210, 0
        %1217 = vmatprep.subr.bf16.mxu0 0
        %1218 = vmatpush1.bf16.msra.mxu0 %v1215
        %1219 = vmatprep.subr.bf16.mxu0 0
        %1220 = vmatpush1.bf16.msra.mxu0 0
        %1221 = vmatprep.subr.bf16.mxu0 0
        %1222 = vmatpush1.bf16.msra.mxu0 0
        %1223 = vmatprep.subr.bf16.mxu0 0
        %1224 = vmatpush1.bf16.msra.mxu0 0
        %1225 = vmatprep.subr.bf16.mxu0 0
        %1226 = vmatpush1.bf16.msra.mxu0 0
        %1227 = vmatprep.subr.bf16.mxu0 0
        %1228 = vmatpush1.bf16.msra.mxu0 0
        %1229 = vmatprep.subr.bf16.mxu0 0
        %1230 = vmatpush1.bf16.msra.mxu0 0
        %1231 = vmatprep.subr.bf16.mxu0 0
        %1232 = vmatpush1.bf16.msra.mxu0 0
        %1233 = vmatprep.subr.bf16.mxu0 0
        %1234 = vmatpush1.bf16.msra.mxu0 0
        %1235 = vmatprep.subr.bf16.mxu0 0
        %1236 = vmatpush1.bf16.msra.mxu0 0
        %1237 = vmatprep.subr.bf16.mxu0 0
        %1238 = vmatpush1.bf16.msra.mxu0 0
        %1239 = vmatprep.subr.bf16.mxu0 0
        %1240 = vmatpush1.bf16.msra.mxu0 0
        %1241 = vmatprep.subr.bf16.mxu0 0
        %1242 = vmatpush1.bf16.msra.mxu0 0
        %1243 = vmatprep.subr.bf16.mxu0 0
        %1244 = vmatpush1.bf16.msra.mxu0 0
        %1245 = vmatprep.subr.bf16.mxu0 0
        %1246 = vmatpush1.bf16.msra.mxu0 0
        %1247 = vmatprep.subr.bf16.mxu0 0
        %1248 = vmatpush1.bf16.msra.mxu0 0
        %1249 = vmatprep.mubr.bf16.mxu0 0
        %1250 = vmatmul.mubr.bf16.gmra.mrb[0].mxu0 %v1212
        %v1251 = vpop.f32.mrb[0].mxu0
        %v1252 = vadd.f32 0.0, %v1251
        %v1253 = vpop.f32.mrb[0].mxu0
        %v1254 = vpop.f32.mrb[0].mxu0
        %v1255 = vpop.f32.mrb[0].mxu0
        %1256 = vdwg.mxu0
        %1257 = vrot.lane.b32.xlu0 %v469, 96
        %v1258 = vpop.permute.xlu0 %1257
        %v1260 = vsel %vm475, %v919, 0
        %v1263 = vsel %vm925, %v1258, 0
        %1265 = vmatprep.subr.bf16.mxu0 0
        %1266 = vmatpush1.bf16.msra.mxu0 %v1263
        %1267 = vmatprep.subr.bf16.mxu0 0
        %1268 = vmatpush1.bf16.msra.mxu0 0
        %1269 = vmatprep.subr.bf16.mxu0 0
        %1270 = vmatpush1.bf16.msra.mxu0 0
        %1271 = vmatprep.subr.bf16.mxu0 0
        %1272 = vmatpush1.bf16.msra.mxu0 0
        %1273 = vmatprep.subr.bf16.mxu0 0
        %1274 = vmatpush1.bf16.msra.mxu0 0
        %1275 = vmatprep.subr.bf16.mxu0 0
        %1276 = vmatpush1.bf16.msra.mxu0 0
        %1277 = vmatprep.subr.bf16.mxu0 0
        %1278 = vmatpush1.bf16.msra.mxu0 0
        %1279 = vmatprep.subr.bf16.mxu0 0
        %1280 = vmatpush1.bf16.msra.mxu0 0
        %1281 = vmatprep.subr.bf16.mxu0 0
        %1282 = vmatpush1.bf16.msra.mxu0 0
        %1283 = vmatprep.subr.bf16.mxu0 0
        %1284 = vmatpush1.bf16.msra.mxu0 0
        %1285 = vmatprep.subr.bf16.mxu0 0
        %1286 = vmatpush1.bf16.msra.mxu0 0
        %1287 = vmatprep.subr.bf16.mxu0 0
        %1288 = vmatpush1.bf16.msra.mxu0 0
        %1289 = vmatprep.subr.bf16.mxu0 0
        %1290 = vmatpush1.bf16.msra.mxu0 0
        %1291 = vmatprep.subr.bf16.mxu0 0
        %1292 = vmatpush1.bf16.msra.mxu0 0
        %1293 = vmatprep.subr.bf16.mxu0 0
        %1294 = vmatpush1.bf16.msra.mxu0 0
        %1295 = vmatprep.subr.bf16.mxu0 0
        %1296 = vmatpush1.bf16.msra.mxu0 0
        %1297 = vmatprep.mubr.bf16.mxu0 0
        %1298 = vmatmul.mubr.bf16.gmra.mrb[0].mxu0 %v1260
        %v1299 = vpop.f32.mrb[0].mxu0
        %v1300 = vadd.f32 0.0, %v1299
        %v1301 = vpop.f32.mrb[0].mxu0
        %v1302 = vpop.f32.mrb[0].mxu0
        %v1303 = vpop.f32.mrb[0].mxu0
        %1304 = vdwg.mxu0
        %v1305 = vmul.f32 %v964, 0.35355338
        %v1306 = vmul.f32 %v1012, 0.35355338
        %v1307 = vmul.f32 %v1060, 0.35355338
        %v1308 = vmul.f32 %v1108, 0.35355338
        %v1309 = vmul.f32 %v1156, 0.35355338
        %v1310 = vmul.f32 %v1204, 0.35355338
        %v1311 = vmul.f32 %v1252, 0.35355338
        %v1312 = vmul.f32 %v1300, 0.35355338
        %v1321 = vcombine.low %v1305, %v1306
        %v1322 = vcombine.low %v1307, %v1308
        %v1323 = vcombine.low %v1309, %v1310
        %v1324 = vcombine.low %v1311, %v1312
        %v1329 = vpack.c.bf16 %v1322, %v1321
        %v1330 = vpack.c.bf16 %v1324, %v1323
        %s1331 = scalar_lea.vmem [#allocation5], 2
        %v1332 = vld [vmem:[%s1331] sm:$0x3]
        %1333 = vrot.lane.b32.xlu0 %v462, 120
        %v1334 = vpop.permute.xlu0 %1333
        %v1336 = vsel %vm475, %v1332, 0
        %v1339 = vsel %vm475, %v1334, 0
        %1341 = vmatprep.subr.bf16.mxu0 0
        %1342 = vmatpush1.bf16.xpose.msra.mxu0 %v1339
        %1343 = vmatprep.subr.bf16.mxu0 0
        %1344 = vmatpush1.bf16.xpose.msra.mxu0 0
        %1345 = vmatprep.subr.bf16.mxu0 0
        %1346 = vmatpush1.bf16.xpose.msra.mxu0 0
        %1347 = vmatprep.subr.bf16.mxu0 0
        %1348 = vmatpush1.bf16.xpose.msra.mxu0 0
        %1349 = vmatprep.subr.bf16.mxu0 0
        %1350 = vmatpush1.bf16.xpose.msra.mxu0 0
        %1351 = vmatprep.subr.bf16.mxu0 0
        %1352 = vmatpush1.bf16.xpose.msra.mxu0 0
        %1353 = vmatprep.subr.bf16.mxu0 0
        %1354 = vmatpush1.bf16.xpose.msra.mxu0 0
        %1355 = vmatprep.subr.bf16.mxu0 0
        %1356 = vmatpush1.bf16.xpose.msra.mxu0 0
        %1357 = vmatprep.subr.bf16.mxu0 0
        %1358 = vmatpush1.bf16.xpose.msra.mxu0 0
        %1359 = vmatprep.subr.bf16.mxu0 0
        %1360 = vmatpush1.bf16.xpose.msra.mxu0 0
        %1361 = vmatprep.subr.bf16.mxu0 0
        %1362 = vmatpush1.bf16.xpose.msra.mxu0 0
        %1363 = vmatprep.subr.bf16.mxu0 0
        %1364 = vmatpush1.bf16.xpose.msra.mxu0 0
        %1365 = vmatprep.subr.bf16.mxu0 0
        %1366 = vmatpush1.bf16.xpose.msra.mxu0 0
        %1367 = vmatprep.subr.bf16.mxu0 0
        %1368 = vmatpush1.bf16.xpose.msra.mxu0 0
        %1369 = vmatprep.subr.bf16.mxu0 0
        %1370 = vmatpush1.bf16.xpose.msra.mxu0 0
        %1371 = vmatprep.subr.bf16.mxu0 0
        %1372 = vmatpush1.bf16.xpose.msra.mxu0 0
        %1373 = vmatprep.mubr.bf16.mxu0 0
        %1374 = vmatmul.mubr.bf16.gmra.mrb[0].mxu0 %v1336
        %v1375 = vpop.f32.mrb[0].mxu0
        %v1376 = vadd.f32 0.0, %v1375
        %v1377 = vpop.f32.mrb[0].mxu0
        %v1378 = vpop.f32.mrb[0].mxu0
        %v1379 = vpop.f32.mrb[0].mxu0
        %1380 = vdwg.mxu0
        %1381 = vrot.lane.b32.xlu0 %v463, 120
        %v1382 = vpop.permute.xlu0 %1381
        %v1384 = vsel %vm475, %v1382, 0
        %1386 = vmatprep.subr.bf16.mxu0 0
        %1387 = vmatpush1.bf16.xpose.msra.mxu0 %v1384
        %1388 = vmatprep.subr.bf16.mxu0 0
        %1389 = vmatpush1.bf16.xpose.msra.mxu0 0
        %1390 = vmatprep.subr.bf16.mxu0 0
        %1391 = vmatpush1.bf16.xpose.msra.mxu0 0
        %1392 = vmatprep.subr.bf16.mxu0 0
        %1393 = vmatpush1.bf16.xpose.msra.mxu0 0
        %1394 = vmatprep.subr.bf16.mxu0 0
        %1395 = vmatpush1.bf16.xpose.msra.mxu0 0
        %1396 = vmatprep.subr.bf16.mxu0 0
        %1397 = vmatpush1.bf16.xpose.msra.mxu0 0
        %1398 = vmatprep.subr.bf16.mxu0 0
        %1399 = vmatpush1.bf16.xpose.msra.mxu0 0
        %1400 = vmatprep.subr.bf16.mxu0 0
        %1401 = vmatpush1.bf16.xpose.msra.mxu0 0
        %1402 = vmatprep.subr.bf16.mxu0 0
        %1403 = vmatpush1.bf16.xpose.msra.mxu0 0
        %1404 = vmatprep.subr.bf16.mxu0 0
        %1405 = vmatpush1.bf16.xpose.msra.mxu0 0
        %1406 = vmatprep.subr.bf16.mxu0 0
        %1407 = vmatpush1.bf16.xpose.msra.mxu0 0
        %1408 = vmatprep.subr.bf16.mxu0 0
        %1409 = vmatpush1.bf16.xpose.msra.mxu0 0
        %1410 = vmatprep.subr.bf16.mxu0 0
        %1411 = vmatpush1.bf16.xpose.msra.mxu0 0
        %1412 = vmatprep.subr.bf16.mxu0 0
        %1413 = vmatpush1.bf16.xpose.msra.mxu0 0
        %1414 = vmatprep.subr.bf16.mxu0 0
        %1415 = vmatpush1.bf16.xpose.msra.mxu0 0
        %1416 = vmatprep.subr.bf16.mxu0 0
        %1417 = vmatpush1.bf16.xpose.msra.mxu0 0
        %1418 = vmatprep.mubr.bf16.mxu0 0
        %1419 = vmatmul.mubr.bf16.gmra.mrb[0].mxu0 %v1336
        %v1420 = vpop.f32.mrb[0].mxu0
        %v1421 = vadd.f32 0.0, %v1420
        %v1422 = vpop.f32.mrb[0].mxu0
        %v1423 = vpop.f32.mrb[0].mxu0
        %v1424 = vpop.f32.mrb[0].mxu0
        %1425 = vdwg.mxu0
        %1426 = vrot.lane.b32.xlu0 %v464, 120
        %v1427 = vpop.permute.xlu0 %1426
        %v1429 = vsel %vm475, %v1427, 0
        %1431 = vmatprep.subr.bf16.mxu0 0
        %1432 = vmatpush1.bf16.xpose.msra.mxu0 %v1429
        %1433 = vmatprep.subr.bf16.mxu0 0
        %1434 = vmatpush1.bf16.xpose.msra.mxu0 0
        %1435 = vmatprep.subr.bf16.mxu0 0
        %1436 = vmatpush1.bf16.xpose.msra.mxu0 0
        %1437 = vmatprep.subr.bf16.mxu0 0
        %1438 = vmatpush1.bf16.xpose.msra.mxu0 0
        %1439 = vmatprep.subr.bf16.mxu0 0
        %1440 = vmatpush1.bf16.xpose.msra.mxu0 0
        %1441 = vmatprep.subr.bf16.mxu0 0
        %1442 = vmatpush1.bf16.xpose.msra.mxu0 0
        %1443 = vmatprep.subr.bf16.mxu0 0
        %1444 = vmatpush1.bf16.xpose.msra.mxu0 0
        %1445 = vmatprep.subr.bf16.mxu0 0
        %1446 = vmatpush1.bf16.xpose.msra.mxu0 0
        %1447 = vmatprep.subr.bf16.mxu0 0
        %1448 = vmatpush1.bf16.xpose.msra.mxu0 0
        %1449 = vmatprep.subr.bf16.mxu0 0
        %1450 = vmatpush1.bf16.xpose.msra.mxu0 0
        %1451 = vmatprep.subr.bf16.mxu0 0
        %1452 = vmatpush1.bf16.xpose.msra.mxu0 0
        %1453 = vmatprep.subr.bf16.mxu0 0
        %1454 = vmatpush1.bf16.xpose.msra.mxu0 0
        %1455 = vmatprep.subr.bf16.mxu0 0
        %1456 = vmatpush1.bf16.xpose.msra.mxu0 0
        %1457 = vmatprep.subr.bf16.mxu0 0
        %1458 = vmatpush1.bf16.xpose.msra.mxu0 0
        %1459 = vmatprep.subr.bf16.mxu0 0
        %1460 = vmatpush1.bf16.xpose.msra.mxu0 0
        %1461 = vmatprep.subr.bf16.mxu0 0
        %1462 = vmatpush1.bf16.xpose.msra.mxu0 0
        %1463 = vmatprep.mubr.bf16.mxu0 0
        %1464 = vmatmul.mubr.bf16.gmra.mrb[0].mxu0 %v1336
        %v1465 = vpop.f32.mrb[0].mxu0
        %v1466 = vadd.f32 0.0, %v1465
        %v1467 = vpop.f32.mrb[0].mxu0
        %v1468 = vpop.f32.mrb[0].mxu0
        %v1469 = vpop.f32.mrb[0].mxu0
        %1470 = vdwg.mxu0
        %1471 = vrot.lane.b32.xlu0 %v465, 120
        %v1472 = vpop.permute.xlu0 %1471
        %v1474 = vsel %vm475, %v1472, 0
        %1476 = vmatprep.subr.bf16.mxu0 0
        %1477 = vmatpush1.bf16.xpose.msra.mxu0 %v1474
        %1478 = vmatprep.subr.bf16.mxu0 0
        %1479 = vmatpush1.bf16.xpose.msra.mxu0 0
        %1480 = vmatprep.subr.bf16.mxu0 0
        %1481 = vmatpush1.bf16.xpose.msra.mxu0 0
        %1482 = vmatprep.subr.bf16.mxu0 0
        %1483 = vmatpush1.bf16.xpose.msra.mxu0 0
        %1484 = vmatprep.subr.bf16.mxu0 0
        %1485 = vmatpush1.bf16.xpose.msra.mxu0 0
        %1486 = vmatprep.subr.bf16.mxu0 0
        %1487 = vmatpush1.bf16.xpose.msra.mxu0 0
        %1488 = vmatprep.subr.bf16.mxu0 0
        %1489 = vmatpush1.bf16.xpose.msra.mxu0 0
        %1490 = vmatprep.subr.bf16.mxu0 0
        %1491 = vmatpush1.bf16.xpose.msra.mxu0 0
        %1492 = vmatprep.subr.bf16.mxu0 0
        %1493 = vmatpush1.bf16.xpose.msra.mxu0 0
        %1494 = vmatprep.subr.bf16.mxu0 0
        %1495 = vmatpush1.bf16.xpose.msra.mxu0 0
        %1496 = vmatprep.subr.bf16.mxu0 0
        %1497 = vmatpush1.bf16.xpose.msra.mxu0 0
        %1498 = vmatprep.subr.bf16.mxu0 0
        %1499 = vmatpush1.bf16.xpose.msra.mxu0 0
        %1500 = vmatprep.subr.bf16.mxu0 0
        %1501 = vmatpush1.bf16.xpose.msra.mxu0 0
        %1502 = vmatprep.subr.bf16.mxu0 0
        %1503 = vmatpush1.bf16.xpose.msra.mxu0 0
        %1504 = vmatprep.subr.bf16.mxu0 0
        %1505 = vmatpush1.bf16.xpose.msra.mxu0 0
        %1506 = vmatprep.subr.bf16.mxu0 0
        %1507 = vmatpush1.bf16.xpose.msra.mxu0 0
        %1508 = vmatprep.mubr.bf16.mxu0 0
        %1509 = vmatmul.mubr.bf16.gmra.mrb[0].mxu0 %v1336
        %v1510 = vpop.f32.mrb[0].mxu0
        %v1511 = vadd.f32 0.0, %v1510
        %v1512 = vpop.f32.mrb[0].mxu0
        %v1513 = vpop.f32.mrb[0].mxu0
        %v1514 = vpop.f32.mrb[0].mxu0
        %1515 = vdwg.mxu0
        %1516 = vrot.lane.b32.xlu0 %v466, 120
        %v1517 = vpop.permute.xlu0 %1516
        %v1519 = vsel %vm475, %v1517, 0
        %1521 = vmatprep.subr.bf16.mxu0 0
        %1522 = vmatpush1.bf16.xpose.msra.mxu0 %v1519
        %1523 = vmatprep.subr.bf16.mxu0 0
        %1524 = vmatpush1.bf16.xpose.msra.mxu0 0
        %1525 = vmatprep.subr.bf16.mxu0 0
        %1526 = vmatpush1.bf16.xpose.msra.mxu0 0
        %1527 = vmatprep.subr.bf16.mxu0 0
        %1528 = vmatpush1.bf16.xpose.msra.mxu0 0
        %1529 = vmatprep.subr.bf16.mxu0 0
        %1530 = vmatpush1.bf16.xpose.msra.mxu0 0
        %1531 = vmatprep.subr.bf16.mxu0 0
        %1532 = vmatpush1.bf16.xpose.msra.mxu0 0
        %1533 = vmatprep.subr.bf16.mxu0 0
        %1534 = vmatpush1.bf16.xpose.msra.mxu0 0
        %1535 = vmatprep.subr.bf16.mxu0 0
        %1536 = vmatpush1.bf16.xpose.msra.mxu0 0
        %1537 = vmatprep.subr.bf16.mxu0 0
        %1538 = vmatpush1.bf16.xpose.msra.mxu0 0
        %1539 = vmatprep.subr.bf16.mxu0 0
        %1540 = vmatpush1.bf16.xpose.msra.mxu0 0
        %1541 = vmatprep.subr.bf16.mxu0 0
        %1542 = vmatpush1.bf16.xpose.msra.mxu0 0
        %1543 = vmatprep.subr.bf16.mxu0 0
        %1544 = vmatpush1.bf16.xpose.msra.mxu0 0
        %1545 = vmatprep.subr.bf16.mxu0 0
        %1546 = vmatpush1.bf16.xpose.msra.mxu0 0
        %1547 = vmatprep.subr.bf16.mxu0 0
        %1548 = vmatpush1.bf16.xpose.msra.mxu0 0
        %1549 = vmatprep.subr.bf16.mxu0 0
        %1550 = vmatpush1.bf16.xpose.msra.mxu0 0
        %1551 = vmatprep.subr.bf16.mxu0 0
        %1552 = vmatpush1.bf16.xpose.msra.mxu0 0
        %1553 = vmatprep.mubr.bf16.mxu0 0
        %1554 = vmatmul.mubr.bf16.gmra.mrb[0].mxu0 %v1336
        %v1555 = vpop.f32.mrb[0].mxu0
        %v1556 = vadd.f32 0.0, %v1555
        %v1557 = vpop.f32.mrb[0].mxu0
        %v1558 = vpop.f32.mrb[0].mxu0
        %v1559 = vpop.f32.mrb[0].mxu0
        %1560 = vdwg.mxu0
        %1561 = vrot.lane.b32.xlu0 %v467, 120
        %v1562 = vpop.permute.xlu0 %1561
        %v1564 = vsel %vm475, %v1562, 0
        %1566 = vmatprep.subr.bf16.mxu0 0
        %1567 = vmatpush1.bf16.xpose.msra.mxu0 %v1564
        %1568 = vmatprep.subr.bf16.mxu0 0
        %1569 = vmatpush1.bf16.xpose.msra.mxu0 0
        %1570 = vmatprep.subr.bf16.mxu0 0
        %1571 = vmatpush1.bf16.xpose.msra.mxu0 0
        %1572 = vmatprep.subr.bf16.mxu0 0
        %1573 = vmatpush1.bf16.xpose.msra.mxu0 0
        %1574 = vmatprep.subr.bf16.mxu0 0
        %1575 = vmatpush1.bf16.xpose.msra.mxu0 0
        %1576 = vmatprep.subr.bf16.mxu0 0
        %1577 = vmatpush1.bf16.xpose.msra.mxu0 0
        %1578 = vmatprep.subr.bf16.mxu0 0
        %1579 = vmatpush1.bf16.xpose.msra.mxu0 0
        %1580 = vmatprep.subr.bf16.mxu0 0
        %1581 = vmatpush1.bf16.xpose.msra.mxu0 0
        %1582 = vmatprep.subr.bf16.mxu0 0
        %1583 = vmatpush1.bf16.xpose.msra.mxu0 0
        %1584 = vmatprep.subr.bf16.mxu0 0
        %1585 = vmatpush1.bf16.xpose.msra.mxu0 0
        %1586 = vmatprep.subr.bf16.mxu0 0
        %1587 = vmatpush1.bf16.xpose.msra.mxu0 0
        %1588 = vmatprep.subr.bf16.mxu0 0
        %1589 = vmatpush1.bf16.xpose.msra.mxu0 0
        %1590 = vmatprep.subr.bf16.mxu0 0
        %1591 = vmatpush1.bf16.xpose.msra.mxu0 0
        %1592 = vmatprep.subr.bf16.mxu0 0
        %1593 = vmatpush1.bf16.xpose.msra.mxu0 0
        %1594 = vmatprep.subr.bf16.mxu0 0
        %1595 = vmatpush1.bf16.xpose.msra.mxu0 0
        %1596 = vmatprep.subr.bf16.mxu0 0
        %1597 = vmatpush1.bf16.xpose.msra.mxu0 0
        %1598 = vmatprep.mubr.bf16.mxu0 0
        %1599 = vmatmul.mubr.bf16.gmra.mrb[0].mxu0 %v1336
        %v1600 = vpop.f32.mrb[0].mxu0
        %v1601 = vadd.f32 0.0, %v1600
        %v1602 = vpop.f32.mrb[0].mxu0
        %v1603 = vpop.f32.mrb[0].mxu0
        %v1604 = vpop.f32.mrb[0].mxu0
        %1605 = vdwg.mxu0
        %1606 = vrot.lane.b32.xlu0 %v468, 120
        %v1607 = vpop.permute.xlu0 %1606
        %v1609 = vsel %vm475, %v1607, 0
        %1611 = vmatprep.subr.bf16.mxu0 0
        %1612 = vmatpush1.bf16.xpose.msra.mxu0 %v1609
        %1613 = vmatprep.subr.bf16.mxu0 0
        %1614 = vmatpush1.bf16.xpose.msra.mxu0 0
        %1615 = vmatprep.subr.bf16.mxu0 0
        %1616 = vmatpush1.bf16.xpose.msra.mxu0 0
        %1617 = vmatprep.subr.bf16.mxu0 0
        %1618 = vmatpush1.bf16.xpose.msra.mxu0 0
        %1619 = vmatprep.subr.bf16.mxu0 0
        %1620 = vmatpush1.bf16.xpose.msra.mxu0 0
        %1621 = vmatprep.subr.bf16.mxu0 0
        %1622 = vmatpush1.bf16.xpose.msra.mxu0 0
        %1623 = vmatprep.subr.bf16.mxu0 0
        %1624 = vmatpush1.bf16.xpose.msra.mxu0 0
        %1625 = vmatprep.subr.bf16.mxu0 0
        %1626 = vmatpush1.bf16.xpose.msra.mxu0 0
        %1627 = vmatprep.subr.bf16.mxu0 0
        %1628 = vmatpush1.bf16.xpose.msra.mxu0 0
        %1629 = vmatprep.subr.bf16.mxu0 0
        %1630 = vmatpush1.bf16.xpose.msra.mxu0 0
        %1631 = vmatprep.subr.bf16.mxu0 0
        %1632 = vmatpush1.bf16.xpose.msra.mxu0 0
        %1633 = vmatprep.subr.bf16.mxu0 0
        %1634 = vmatpush1.bf16.xpose.msra.mxu0 0
        %1635 = vmatprep.subr.bf16.mxu0 0
        %1636 = vmatpush1.bf16.xpose.msra.mxu0 0
        %1637 = vmatprep.subr.bf16.mxu0 0
        %1638 = vmatpush1.bf16.xpose.msra.mxu0 0
        %1639 = vmatprep.subr.bf16.mxu0 0
        %1640 = vmatpush1.bf16.xpose.msra.mxu0 0
        %1641 = vmatprep.subr.bf16.mxu0 0
        %1642 = vmatpush1.bf16.xpose.msra.mxu0 0
        %1643 = vmatprep.mubr.bf16.mxu0 0
        %1644 = vmatmul.mubr.bf16.gmra.mrb[0].mxu0 %v1336
        %v1645 = vpop.f32.mrb[0].mxu0
        %v1646 = vadd.f32 0.0, %v1645
        %v1647 = vpop.f32.mrb[0].mxu0
        %v1648 = vpop.f32.mrb[0].mxu0
        %v1649 = vpop.f32.mrb[0].mxu0
        %1650 = vdwg.mxu0
        %1651 = vrot.lane.b32.xlu0 %v469, 120
        %v1652 = vpop.permute.xlu0 %1651
        %v1654 = vsel %vm475, %v1652, 0
        %1656 = vmatprep.subr.bf16.mxu0 0
        %1657 = vmatpush1.bf16.xpose.msra.mxu0 %v1654
        %1658 = vmatprep.subr.bf16.mxu0 0
        %1659 = vmatpush1.bf16.xpose.msra.mxu0 0
        %1660 = vmatprep.subr.bf16.mxu0 0
        %1661 = vmatpush1.bf16.xpose.msra.mxu0 0
        %1662 = vmatprep.subr.bf16.mxu0 0
        %1663 = vmatpush1.bf16.xpose.msra.mxu0 0
        %1664 = vmatprep.subr.bf16.mxu0 0
        %1665 = vmatpush1.bf16.xpose.msra.mxu0 0
        %1666 = vmatprep.subr.bf16.mxu0 0
        %1667 = vmatpush1.bf16.xpose.msra.mxu0 0
        %1668 = vmatprep.subr.bf16.mxu0 0
        %1669 = vmatpush1.bf16.xpose.msra.mxu0 0
        %1670 = vmatprep.subr.bf16.mxu0 0
        %1671 = vmatpush1.bf16.xpose.msra.mxu0 0
        %1672 = vmatprep.subr.bf16.mxu0 0
        %1673 = vmatpush1.bf16.xpose.msra.mxu0 0
        %1674 = vmatprep.subr.bf16.mxu0 0
        %1675 = vmatpush1.bf16.xpose.msra.mxu0 0
        %1676 = vmatprep.subr.bf16.mxu0 0
        %1677 = vmatpush1.bf16.xpose.msra.mxu0 0
        %1678 = vmatprep.subr.bf16.mxu0 0
        %1679 = vmatpush1.bf16.xpose.msra.mxu0 0
        %1680 = vmatprep.subr.bf16.mxu0 0
        %1681 = vmatpush1.bf16.xpose.msra.mxu0 0
        %1682 = vmatprep.subr.bf16.mxu0 0
        %1683 = vmatpush1.bf16.xpose.msra.mxu0 0
        %1684 = vmatprep.subr.bf16.mxu0 0
        %1685 = vmatpush1.bf16.xpose.msra.mxu0 0
        %1686 = vmatprep.subr.bf16.mxu0 0
        %1687 = vmatpush1.bf16.xpose.msra.mxu0 0
        %1688 = vmatprep.mubr.bf16.mxu0 0
        %1689 = vmatmul.mubr.bf16.gmra.mrb[0].mxu0 %v1336
        %v1690 = vpop.f32.mrb[0].mxu0
        %v1691 = vadd.f32 0.0, %v1690
        %v1692 = vpop.f32.mrb[0].mxu0
        %v1693 = vpop.f32.mrb[0].mxu0
        %v1694 = vpop.f32.mrb[0].mxu0
        %1695 = vdwg.mxu0
        %v1696 = vsel %vm823, %v1376, -inf
        %1697 = vmax.xlane.f32.xlu0 %v1696
        %v1698 = vpop.xlane.xlu0 %1697
        %v1699 = vsel %vm823, %v1421, -inf
        %1700 = vmax.xlane.f32.xlu0 %v1699
        %v1701 = vpop.xlane.xlu0 %1700
        %v1702 = vsel %vm823, %v1466, -inf
        %1703 = vmax.xlane.f32.xlu0 %v1702
        %v1704 = vpop.xlane.xlu0 %1703
        %v1705 = vsel %vm823, %v1511, -inf
        %1706 = vmax.xlane.f32.xlu0 %v1705
        %v1707 = vpop.xlane.xlu0 %1706
        %v1708 = vsel %vm823, %v1556, -inf
        %1709 = vmax.xlane.f32.xlu0 %v1708
        %v1710 = vpop.xlane.xlu0 %1709
        %v1711 = vsel %vm823, %v1601, -inf
        %1712 = vmax.xlane.f32.xlu0 %v1711
        %v1713 = vpop.xlane.xlu0 %1712
        %v1714 = vsel %vm823, %v1646, -inf
        %1715 = vmax.xlane.f32.xlu0 %v1714
        %v1716 = vpop.xlane.xlu0 %1715
        %v1717 = vsel %vm823, %v1691, -inf
        %1718 = vmax.xlane.f32.xlu0 %v1717
        %v1719 = vpop.xlane.xlu0 %1718
        %v1720 = vsub.f32 %v1376, %v1698
        %v1721 = vsub.f32 %v1421, %v1701
        %v1722 = vsub.f32 %v1466, %v1704
        %v1723 = vsub.f32 %v1511, %v1707
        %v1724 = vsub.f32 %v1556, %v1710
        %v1725 = vsub.f32 %v1601, %v1713
        %v1726 = vsub.f32 %v1646, %v1716
        %v1727 = vsub.f32 %v1691, %v1719
        %v1728 = vmul.f32 %v1720, 1.442695
        %v1729 = vpow.pop %v1728
        %v1730 = vmul.f32 %v1721, 1.442695
        %v1731 = vpow.pop %v1730
        %v1732 = vmul.f32 %v1722, 1.442695
        %v1733 = vpow.pop %v1732
        %v1734 = vmul.f32 %v1723, 1.442695
        %v1735 = vpow.pop %v1734
        %v1736 = vmul.f32 %v1724, 1.442695
        %v1737 = vpow.pop %v1736
        %v1738 = vmul.f32 %v1725, 1.442695
        %v1739 = vpow.pop %v1738
        %v1740 = vmul.f32 %v1726, 1.442695
        %v1741 = vpow.pop %v1740
        %v1742 = vmul.f32 %v1727, 1.442695
        %v1743 = vpow.pop %v1742
        %v1744 = vsel %vm823, %v1729, 0.0
        %1745 = vadd.xlane.f32.xlu0 %v1744
        %v1746 = vpop.xlane.xlu0 %1745
        %v1747 = vsel %vm823, %v1731, 0.0
        %1748 = vadd.xlane.f32.xlu0 %v1747
        %v1749 = vpop.xlane.xlu0 %1748
        %v1750 = vsel %vm823, %v1733, 0.0
        %1751 = vadd.xlane.f32.xlu0 %v1750
        %v1752 = vpop.xlane.xlu0 %1751
        %v1753 = vsel %vm823, %v1735, 0.0
        %1754 = vadd.xlane.f32.xlu0 %v1753
        %v1755 = vpop.xlane.xlu0 %1754
        %v1756 = vsel %vm823, %v1737, 0.0
        %1757 = vadd.xlane.f32.xlu0 %v1756
        %v1758 = vpop.xlane.xlu0 %1757
        %v1759 = vsel %vm823, %v1739, 0.0
        %1760 = vadd.xlane.f32.xlu0 %v1759
        %v1761 = vpop.xlane.xlu0 %1760
        %v1762 = vsel %vm823, %v1741, 0.0
        %1763 = vadd.xlane.f32.xlu0 %v1762
        %v1764 = vpop.xlane.xlu0 %1763
        %v1765 = vsel %vm823, %v1743, 0.0
        %1766 = vadd.xlane.f32.xlu0 %v1765
        %v1767 = vpop.xlane.xlu0 %1766
        %v1768 = vrcp.pop %v1746
        %v1769 = vrcp.pop %v1749
        %v1770 = vrcp.pop %v1752
        %v1771 = vrcp.pop %v1755
        %v1772 = vrcp.pop %v1758
        %v1773 = vrcp.pop %v1761
        %v1774 = vrcp.pop %v1764
        %v1775 = vrcp.pop %v1767
        %v1776 = vmul.f32 %v1729, %v1768
        %v1777 = vmul.f32 %v1731, %v1769
        %v1778 = vmul.f32 %v1733, %v1770
        %v1779 = vmul.f32 %v1735, %v1771
        %v1780 = vmul.f32 %v1737, %v1772
        %v1781 = vmul.f32 %v1739, %v1773
        %v1782 = vmul.f32 %v1741, %v1774
        %v1783 = vmul.f32 %v1743, %v1775
        %v1784 = vpack.c.bf16 %v1776, %v1776
        %v1785 = vpack.c.bf16 %v1777, %v1777
        %v1786 = vpack.c.bf16 %v1778, %v1778
        %v1787 = vpack.c.bf16 %v1779, %v1779
        %v1788 = vpack.c.bf16 %v1780, %v1780
        %v1789 = vpack.c.bf16 %v1781, %v1781
        %v1790 = vpack.c.bf16 %v1782, %v1782
        %v1791 = vpack.c.bf16 %v1783, %v1783
        %1792 = vrot.lane.b32.xlu0 %v462, 88
        %v1793 = vpop.permute.xlu0 %1792
        %v1795 = vsel %vm475, %v1784, 0
        %v1798 = vsel %vm925, %v1793, 0
        %1800 = vmatprep.subr.bf16.mxu0 0
        %1801 = vmatpush1.bf16.msra.mxu0 %v1798
        %1802 = vmatprep.subr.bf16.mxu0 0
        %1803 = vmatpush1.bf16.msra.mxu0 0
        %1804 = vmatprep.subr.bf16.mxu0 0
        %1805 = vmatpush1.bf16.msra.mxu0 0
        %1806 = vmatprep.subr.bf16.mxu0 0
        %1807 = vmatpush1.bf16.msra.mxu0 0
        %1808 = vmatprep.subr.bf16.mxu0 0
        %1809 = vmatpush1.bf16.msra.mxu0 0
        %1810 = vmatprep.subr.bf16.mxu0 0
        %1811 = vmatpush1.bf16.msra.mxu0 0
        %1812 = vmatprep.subr.bf16.mxu0 0
        %1813 = vmatpush1.bf16.msra.mxu0 0
        %1814 = vmatprep.subr.bf16.mxu0 0
        %1815 = vmatpush1.bf16.msra.mxu0 0
        %1816 = vmatprep.subr.bf16.mxu0 0
        %1817 = vmatpush1.bf16.msra.mxu0 0
        %1818 = vmatprep.subr.bf16.mxu0 0
        %1819 = vmatpush1.bf16.msra.mxu0 0
        %1820 = vmatprep.subr.bf16.mxu0 0
        %1821 = vmatpush1.bf16.msra.mxu0 0
        %1822 = vmatprep.subr.bf16.mxu0 0
        %1823 = vmatpush1.bf16.msra.mxu0 0
        %1824 = vmatprep.subr.bf16.mxu0 0
        %1825 = vmatpush1.bf16.msra.mxu0 0
        %1826 = vmatprep.subr.bf16.mxu0 0
        %1827 = vmatpush1.bf16.msra.mxu0 0
        %1828 = vmatprep.subr.bf16.mxu0 0
        %1829 = vmatpush1.bf16.msra.mxu0 0
        %1830 = vmatprep.subr.bf16.mxu0 0
        %1831 = vmatpush1.bf16.msra.mxu0 0
        %1832 = vmatprep.mubr.bf16.mxu0 0
        %1833 = vmatmul.mubr.bf16.gmra.mrb[0].mxu0 %v1795
        %v1834 = vpop.f32.mrb[0].mxu0
        %v1835 = vadd.f32 0.0, %v1834
        %v1836 = vpop.f32.mrb[0].mxu0
        %v1837 = vpop.f32.mrb[0].mxu0
        %v1838 = vpop.f32.mrb[0].mxu0
        %1839 = vdwg.mxu0
        %1840 = vrot.lane.b32.xlu0 %v463, 88
        %v1841 = vpop.permute.xlu0 %1840
        %v1843 = vsel %vm475, %v1785, 0
        %v1846 = vsel %vm925, %v1841, 0
        %1848 = vmatprep.subr.bf16.mxu0 0
        %1849 = vmatpush1.bf16.msra.mxu0 %v1846
        %1850 = vmatprep.subr.bf16.mxu0 0
        %1851 = vmatpush1.bf16.msra.mxu0 0
        %1852 = vmatprep.subr.bf16.mxu0 0
        %1853 = vmatpush1.bf16.msra.mxu0 0
        %1854 = vmatprep.subr.bf16.mxu0 0
        %1855 = vmatpush1.bf16.msra.mxu0 0
        %1856 = vmatprep.subr.bf16.mxu0 0
        %1857 = vmatpush1.bf16.msra.mxu0 0
        %1858 = vmatprep.subr.bf16.mxu0 0
        %1859 = vmatpush1.bf16.msra.mxu0 0
        %1860 = vmatprep.subr.bf16.mxu0 0
        %1861 = vmatpush1.bf16.msra.mxu0 0
        %1862 = vmatprep.subr.bf16.mxu0 0
        %1863 = vmatpush1.bf16.msra.mxu0 0
        %1864 = vmatprep.subr.bf16.mxu0 0
        %1865 = vmatpush1.bf16.msra.mxu0 0
        %1866 = vmatprep.subr.bf16.mxu0 0
        %1867 = vmatpush1.bf16.msra.mxu0 0
        %1868 = vmatprep.subr.bf16.mxu0 0
        %1869 = vmatpush1.bf16.msra.mxu0 0
        %1870 = vmatprep.subr.bf16.mxu0 0
        %1871 = vmatpush1.bf16.msra.mxu0 0
        %1872 = vmatprep.subr.bf16.mxu0 0
        %1873 = vmatpush1.bf16.msra.mxu0 0
        %1874 = vmatprep.subr.bf16.mxu0 0
        %1875 = vmatpush1.bf16.msra.mxu0 0
        %1876 = vmatprep.subr.bf16.mxu0 0
        %1877 = vmatpush1.bf16.msra.mxu0 0
        %1878 = vmatprep.subr.bf16.mxu0 0
        %1879 = vmatpush1.bf16.msra.mxu0 0
        %1880 = vmatprep.mubr.bf16.mxu0 0
        %1881 = vmatmul.mubr.bf16.gmra.mrb[0].mxu0 %v1843
        %v1882 = vpop.f32.mrb[0].mxu0
        %v1883 = vadd.f32 0.0, %v1882
        %v1884 = vpop.f32.mrb[0].mxu0
        %v1885 = vpop.f32.mrb[0].mxu0
        %v1886 = vpop.f32.mrb[0].mxu0
        %1887 = vdwg.mxu0
        %1888 = vrot.lane.b32.xlu0 %v464, 88
        %v1889 = vpop.permute.xlu0 %1888
        %v1891 = vsel %vm475, %v1786, 0
        %v1894 = vsel %vm925, %v1889, 0
        %1896 = vmatprep.subr.bf16.mxu0 0
        %1897 = vmatpush1.bf16.msra.mxu0 %v1894
        %1898 = vmatprep.subr.bf16.mxu0 0
        %1899 = vmatpush1.bf16.msra.mxu0 0
        %1900 = vmatprep.subr.bf16.mxu0 0
        %1901 = vmatpush1.bf16.msra.mxu0 0
        %1902 = vmatprep.subr.bf16.mxu0 0
        %1903 = vmatpush1.bf16.msra.mxu0 0
        %1904 = vmatprep.subr.bf16.mxu0 0
        %1905 = vmatpush1.bf16.msra.mxu0 0
        %1906 = vmatprep.subr.bf16.mxu0 0
        %1907 = vmatpush1.bf16.msra.mxu0 0
        %1908 = vmatprep.subr.bf16.mxu0 0
        %1909 = vmatpush1.bf16.msra.mxu0 0
        %1910 = vmatprep.subr.bf16.mxu0 0
        %1911 = vmatpush1.bf16.msra.mxu0 0
        %1912 = vmatprep.subr.bf16.mxu0 0
        %1913 = vmatpush1.bf16.msra.mxu0 0
        %1914 = vmatprep.subr.bf16.mxu0 0
        %1915 = vmatpush1.bf16.msra.mxu0 0
        %1916 = vmatprep.subr.bf16.mxu0 0
        %1917 = vmatpush1.bf16.msra.mxu0 0
        %1918 = vmatprep.subr.bf16.mxu0 0
        %1919 = vmatpush1.bf16.msra.mxu0 0
        %1920 = vmatprep.subr.bf16.mxu0 0
        %1921 = vmatpush1.bf16.msra.mxu0 0
        %1922 = vmatprep.subr.bf16.mxu0 0
        %1923 = vmatpush1.bf16.msra.mxu0 0
        %1924 = vmatprep.subr.bf16.mxu0 0
        %1925 = vmatpush1.bf16.msra.mxu0 0
        %1926 = vmatprep.subr.bf16.mxu0 0
        %1927 = vmatpush1.bf16.msra.mxu0 0
        %1928 = vmatprep.mubr.bf16.mxu0 0
        %1929 = vmatmul.mubr.bf16.gmra.mrb[0].mxu0 %v1891
        %v1930 = vpop.f32.mrb[0].mxu0
        %v1931 = vadd.f32 0.0, %v1930
        %v1932 = vpop.f32.mrb[0].mxu0
        %v1933 = vpop.f32.mrb[0].mxu0
        %v1934 = vpop.f32.mrb[0].mxu0
        %1935 = vdwg.mxu0
        %1936 = vrot.lane.b32.xlu0 %v465, 88
        %v1937 = vpop.permute.xlu0 %1936
        %v1939 = vsel %vm475, %v1787, 0
        %v1942 = vsel %vm925, %v1937, 0
        %1944 = vmatprep.subr.bf16.mxu0 0
        %1945 = vmatpush1.bf16.msra.mxu0 %v1942
        %1946 = vmatprep.subr.bf16.mxu0 0
        %1947 = vmatpush1.bf16.msra.mxu0 0
        %1948 = vmatprep.subr.bf16.mxu0 0
        %1949 = vmatpush1.bf16.msra.mxu0 0
        %1950 = vmatprep.subr.bf16.mxu0 0
        %1951 = vmatpush1.bf16.msra.mxu0 0
        %1952 = vmatprep.subr.bf16.mxu0 0
        %1953 = vmatpush1.bf16.msra.mxu0 0
        %1954 = vmatprep.subr.bf16.mxu0 0
        %1955 = vmatpush1.bf16.msra.mxu0 0
        %1956 = vmatprep.subr.bf16.mxu0 0
        %1957 = vmatpush1.bf16.msra.mxu0 0
        %1958 = vmatprep.subr.bf16.mxu0 0
        %1959 = vmatpush1.bf16.msra.mxu0 0
        %1960 = vmatprep.subr.bf16.mxu0 0
        %1961 = vmatpush1.bf16.msra.mxu0 0
        %1962 = vmatprep.subr.bf16.mxu0 0
        %1963 = vmatpush1.bf16.msra.mxu0 0
        %1964 = vmatprep.subr.bf16.mxu0 0
        %1965 = vmatpush1.bf16.msra.mxu0 0
        %1966 = vmatprep.subr.bf16.mxu0 0
        %1967 = vmatpush1.bf16.msra.mxu0 0
        %1968 = vmatprep.subr.bf16.mxu0 0
        %1969 = vmatpush1.bf16.msra.mxu0 0
        %1970 = vmatprep.subr.bf16.mxu0 0
        %1971 = vmatpush1.bf16.msra.mxu0 0
        %1972 = vmatprep.subr.bf16.mxu0 0
        %1973 = vmatpush1.bf16.msra.mxu0 0
        %1974 = vmatprep.subr.bf16.mxu0 0
        %1975 = vmatpush1.bf16.msra.mxu0 0
        %1976 = vmatprep.mubr.bf16.mxu0 0
        %1977 = vmatmul.mubr.bf16.gmra.mrb[0].mxu0 %v1939
        %v1978 = vpop.f32.mrb[0].mxu0
        %v1979 = vadd.f32 0.0, %v1978
        %v1980 = vpop.f32.mrb[0].mxu0
        %v1981 = vpop.f32.mrb[0].mxu0
        %v1982 = vpop.f32.mrb[0].mxu0
        %1983 = vdwg.mxu0
        %1984 = vrot.lane.b32.xlu0 %v466, 88
        %v1985 = vpop.permute.xlu0 %1984
        %v1987 = vsel %vm475, %v1788, 0
        %v1990 = vsel %vm925, %v1985, 0
        %1992 = vmatprep.subr.bf16.mxu0 0
        %1993 = vmatpush1.bf16.msra.mxu0 %v1990
        %1994 = vmatprep.subr.bf16.mxu0 0
        %1995 = vmatpush1.bf16.msra.mxu0 0
        %1996 = vmatprep.subr.bf16.mxu0 0
        %1997 = vmatpush1.bf16.msra.mxu0 0
        %1998 = vmatprep.subr.bf16.mxu0 0
        %1999 = vmatpush1.bf16.msra.mxu0 0
        %2000 = vmatprep.subr.bf16.mxu0 0
        %2001 = vmatpush1.bf16.msra.mxu0 0
        %2002 = vmatprep.subr.bf16.mxu0 0
        %2003 = vmatpush1.bf16.msra.mxu0 0
        %2004 = vmatprep.subr.bf16.mxu0 0
        %2005 = vmatpush1.bf16.msra.mxu0 0
        %2006 = vmatprep.subr.bf16.mxu0 0
        %2007 = vmatpush1.bf16.msra.mxu0 0
        %2008 = vmatprep.subr.bf16.mxu0 0
        %2009 = vmatpush1.bf16.msra.mxu0 0
        %2010 = vmatprep.subr.bf16.mxu0 0
        %2011 = vmatpush1.bf16.msra.mxu0 0
        %2012 = vmatprep.subr.bf16.mxu0 0
        %2013 = vmatpush1.bf16.msra.mxu0 0
        %2014 = vmatprep.subr.bf16.mxu0 0
        %2015 = vmatpush1.bf16.msra.mxu0 0
        %2016 = vmatprep.subr.bf16.mxu0 0
        %2017 = vmatpush1.bf16.msra.mxu0 0
        %2018 = vmatprep.subr.bf16.mxu0 0
        %2019 = vmatpush1.bf16.msra.mxu0 0
        %2020 = vmatprep.subr.bf16.mxu0 0
        %2021 = vmatpush1.bf16.msra.mxu0 0
        %2022 = vmatprep.subr.bf16.mxu0 0
        %2023 = vmatpush1.bf16.msra.mxu0 0
        %2024 = vmatprep.mubr.bf16.mxu0 0
        %2025 = vmatmul.mubr.bf16.gmra.mrb[0].mxu0 %v1987
        %v2026 = vpop.f32.mrb[0].mxu0
        %v2027 = vadd.f32 0.0, %v2026
        %v2028 = vpop.f32.mrb[0].mxu0
        %v2029 = vpop.f32.mrb[0].mxu0
        %v2030 = vpop.f32.mrb[0].mxu0
        %2031 = vdwg.mxu0
        %2032 = vrot.lane.b32.xlu0 %v467, 88
        %v2033 = vpop.permute.xlu0 %2032
        %v2035 = vsel %vm475, %v1789, 0
        %v2038 = vsel %vm925, %v2033, 0
        %2040 = vmatprep.subr.bf16.mxu0 0
        %2041 = vmatpush1.bf16.msra.mxu0 %v2038
        %2042 = vmatprep.subr.bf16.mxu0 0
        %2043 = vmatpush1.bf16.msra.mxu0 0
        %2044 = vmatprep.subr.bf16.mxu0 0
        %2045 = vmatpush1.bf16.msra.mxu0 0
        %2046 = vmatprep.subr.bf16.mxu0 0
        %2047 = vmatpush1.bf16.msra.mxu0 0
        %2048 = vmatprep.subr.bf16.mxu0 0
        %2049 = vmatpush1.bf16.msra.mxu0 0
        %2050 = vmatprep.subr.bf16.mxu0 0
        %2051 = vmatpush1.bf16.msra.mxu0 0
        %2052 = vmatprep.subr.bf16.mxu0 0
        %2053 = vmatpush1.bf16.msra.mxu0 0
        %2054 = vmatprep.subr.bf16.mxu0 0
        %2055 = vmatpush1.bf16.msra.mxu0 0
        %2056 = vmatprep.subr.bf16.mxu0 0
        %2057 = vmatpush1.bf16.msra.mxu0 0
        %2058 = vmatprep.subr.bf16.mxu0 0
        %2059 = vmatpush1.bf16.msra.mxu0 0
        %2060 = vmatprep.subr.bf16.mxu0 0
        %2061 = vmatpush1.bf16.msra.mxu0 0
        %2062 = vmatprep.subr.bf16.mxu0 0
        %2063 = vmatpush1.bf16.msra.mxu0 0
        %2064 = vmatprep.subr.bf16.mxu0 0
        %2065 = vmatpush1.bf16.msra.mxu0 0
        %2066 = vmatprep.subr.bf16.mxu0 0
        %2067 = vmatpush1.bf16.msra.mxu0 0
        %2068 = vmatprep.subr.bf16.mxu0 0
        %2069 = vmatpush1.bf16.msra.mxu0 0
        %2070 = vmatprep.subr.bf16.mxu0 0
        %2071 = vmatpush1.bf16.msra.mxu0 0
        %2072 = vmatprep.mubr.bf16.mxu0 0
        %2073 = vmatmul.mubr.bf16.gmra.mrb[0].mxu0 %v2035
        %v2074 = vpop.f32.mrb[0].mxu0
        %v2075 = vadd.f32 0.0, %v2074
        %v2076 = vpop.f32.mrb[0].mxu0
        %v2077 = vpop.f32.mrb[0].mxu0
        %v2078 = vpop.f32.mrb[0].mxu0
        %2079 = vdwg.mxu0
        %2080 = vrot.lane.b32.xlu0 %v468, 88
        %v2081 = vpop.permute.xlu0 %2080
        %v2083 = vsel %vm475, %v1790, 0
        %v2086 = vsel %vm925, %v2081, 0
        %2088 = vmatprep.subr.bf16.mxu0 0
        %2089 = vmatpush1.bf16.msra.mxu0 %v2086
        %2090 = vmatprep.subr.bf16.mxu0 0
        %2091 = vmatpush1.bf16.msra.mxu0 0
        %2092 = vmatprep.subr.bf16.mxu0 0
        %2093 = vmatpush1.bf16.msra.mxu0 0
        %2094 = vmatprep.subr.bf16.mxu0 0
        %2095 = vmatpush1.bf16.msra.mxu0 0
        %2096 = vmatprep.subr.bf16.mxu0 0
        %2097 = vmatpush1.bf16.msra.mxu0 0
        %2098 = vmatprep.subr.bf16.mxu0 0
        %2099 = vmatpush1.bf16.msra.mxu0 0
        %2100 = vmatprep.subr.bf16.mxu0 0
        %2101 = vmatpush1.bf16.msra.mxu0 0
        %2102 = vmatprep.subr.bf16.mxu0 0
        %2103 = vmatpush1.bf16.msra.mxu0 0
        %2104 = vmatprep.subr.bf16.mxu0 0
        %2105 = vmatpush1.bf16.msra.mxu0 0
        %2106 = vmatprep.subr.bf16.mxu0 0
        %2107 = vmatpush1.bf16.msra.mxu0 0
        %2108 = vmatprep.subr.bf16.mxu0 0
        %2109 = vmatpush1.bf16.msra.mxu0 0
        %2110 = vmatprep.subr.bf16.mxu0 0
        %2111 = vmatpush1.bf16.msra.mxu0 0
        %2112 = vmatprep.subr.bf16.mxu0 0
        %2113 = vmatpush1.bf16.msra.mxu0 0
        %2114 = vmatprep.subr.bf16.mxu0 0
        %2115 = vmatpush1.bf16.msra.mxu0 0
        %2116 = vmatprep.subr.bf16.mxu0 0
        %2117 = vmatpush1.bf16.msra.mxu0 0
        %2118 = vmatprep.subr.bf16.mxu0 0
        %2119 = vmatpush1.bf16.msra.mxu0 0
        %2120 = vmatprep.mubr.bf16.mxu0 0
        %2121 = vmatmul.mubr.bf16.gmra.mrb[0].mxu0 %v2083
        %v2122 = vpop.f32.mrb[0].mxu0
        %v2123 = vadd.f32 0.0, %v2122
        %v2124 = vpop.f32.mrb[0].mxu0
        %v2125 = vpop.f32.mrb[0].mxu0
        %v2126 = vpop.f32.mrb[0].mxu0
        %2127 = vdwg.mxu0
        %2128 = vrot.lane.b32.xlu0 %v469, 88
        %v2129 = vpop.permute.xlu0 %2128
        %v2131 = vsel %vm475, %v1791, 0
        %v2134 = vsel %vm925, %v2129, 0
        %2136 = vmatprep.subr.bf16.mxu0 0
        %2137 = vmatpush1.bf16.msra.mxu0 %v2134
        %2138 = vmatprep.subr.bf16.mxu0 0
        %2139 = vmatpush1.bf16.msra.mxu0 0
        %2140 = vmatprep.subr.bf16.mxu0 0
        %2141 = vmatpush1.bf16.msra.mxu0 0
        %2142 = vmatprep.subr.bf16.mxu0 0
        %2143 = vmatpush1.bf16.msra.mxu0 0
        %2144 = vmatprep.subr.bf16.mxu0 0
        %2145 = vmatpush1.bf16.msra.mxu0 0
        %2146 = vmatprep.subr.bf16.mxu0 0
        %2147 = vmatpush1.bf16.msra.mxu0 0
        %2148 = vmatprep.subr.bf16.mxu0 0
        %2149 = vmatpush1.bf16.msra.mxu0 0
        %2150 = vmatprep.subr.bf16.mxu0 0
        %2151 = vmatpush1.bf16.msra.mxu0 0
        %2152 = vmatprep.subr.bf16.mxu0 0
        %2153 = vmatpush1.bf16.msra.mxu0 0
        %2154 = vmatprep.subr.bf16.mxu0 0
        %2155 = vmatpush1.bf16.msra.mxu0 0
        %2156 = vmatprep.subr.bf16.mxu0 0
        %2157 = vmatpush1.bf16.msra.mxu0 0
        %2158 = vmatprep.subr.bf16.mxu0 0
        %2159 = vmatpush1.bf16.msra.mxu0 0
        %2160 = vmatprep.subr.bf16.mxu0 0
        %2161 = vmatpush1.bf16.msra.mxu0 0
        %2162 = vmatprep.subr.bf16.mxu0 0
        %2163 = vmatpush1.bf16.msra.mxu0 0
        %2164 = vmatprep.subr.bf16.mxu0 0
        %2165 = vmatpush1.bf16.msra.mxu0 0
        %2166 = vmatprep.subr.bf16.mxu0 0
        %2167 = vmatpush1.bf16.msra.mxu0 0
        %2168 = vmatprep.mubr.bf16.mxu0 0
        %2169 = vmatmul.mubr.bf16.gmra.mrb[0].mxu0 %v2131
        %v2170 = vpop.f32.mrb[0].mxu0
        %v2171 = vadd.f32 0.0, %v2170
        %v2172 = vpop.f32.mrb[0].mxu0
        %v2173 = vpop.f32.mrb[0].mxu0
        %v2174 = vpop.f32.mrb[0].mxu0
        %2175 = vdwg.mxu0
        %v2176 = vmul.f32 %v1835, 0.35355338
        %v2177 = vmul.f32 %v1883, 0.35355338
        %v2178 = vmul.f32 %v1931, 0.35355338
        %v2179 = vmul.f32 %v1979, 0.35355338
        %v2180 = vmul.f32 %v2027, 0.35355338
        %v2181 = vmul.f32 %v2075, 0.35355338
        %v2182 = vmul.f32 %v2123, 0.35355338
        %v2183 = vmul.f32 %v2171, 0.35355338
        %v2192 = vcombine.low %v2176, %v2177
        %v2193 = vcombine.low %v2178, %v2179
        %v2194 = vcombine.low %v2180, %v2181
        %v2195 = vcombine.low %v2182, %v2183
        %v2200 = vpack.c.bf16 %v2193, %v2192
        %v2201 = vpack.c.bf16 %v2195, %v2194
        %v2203 = vsel %vm475, %v2200, 0
        %v2206 = vsel %vm475, %v2201, 0
        %v2209 = vsel %vm925, %v471, 0
        %2211 = vmatprep.subr.bf16.mxu0 0
        %2212 = vmatpush1.bf16.msra.mxu0 %v2209
        %2213 = vmatprep.subr.bf16.mxu0 0
        %2214 = vmatpush1.bf16.msra.mxu0 0
        %2215 = vmatprep.subr.bf16.mxu0 0
        %2216 = vmatpush1.bf16.msra.mxu0 0
        %2217 = vmatprep.subr.bf16.mxu0 0
        %2218 = vmatpush1.bf16.msra.mxu0 0
        %2219 = vmatprep.subr.bf16.mxu0 0
        %2220 = vmatpush1.bf16.msra.mxu0 0
        %2221 = vmatprep.subr.bf16.mxu0 0
        %2222 = vmatpush1.bf16.msra.mxu0 0
        %2223 = vmatprep.subr.bf16.mxu0 0
        %2224 = vmatpush1.bf16.msra.mxu0 0
        %2225 = vmatprep.subr.bf16.mxu0 0
        %2226 = vmatpush1.bf16.msra.mxu0 0
        %2227 = vmatprep.subr.bf16.mxu0 0
        %2228 = vmatpush1.bf16.msra.mxu0 0
        %2229 = vmatprep.subr.bf16.mxu0 0
        %2230 = vmatpush1.bf16.msra.mxu0 0
        %2231 = vmatprep.subr.bf16.mxu0 0
        %2232 = vmatpush1.bf16.msra.mxu0 0
        %2233 = vmatprep.subr.bf16.mxu0 0
        %2234 = vmatpush1.bf16.msra.mxu0 0
        %2235 = vmatprep.subr.bf16.mxu0 0
        %2236 = vmatpush1.bf16.msra.mxu0 0
        %2237 = vmatprep.subr.bf16.mxu0 0
        %2238 = vmatpush1.bf16.msra.mxu0 0
        %2239 = vmatprep.subr.bf16.mxu0 0
        %2240 = vmatpush1.bf16.msra.mxu0 0
        %2241 = vmatprep.subr.bf16.mxu0 0
        %2242 = vmatpush1.bf16.msra.mxu0 0
        %2243 = vmatprep.mubr.bf16.mxu0 0
        %2244 = vmatmul.mubr.bf16.gmra.mrb[0].mxu0 %v2203
        %v2245 = vpop.f32.mrb[0].mxu0
        %v2246 = vadd.f32 0.0, %v2245
        %v2247 = vpop.f32.mrb[0].mxu0
        %v2248 = vpop.f32.mrb[0].mxu0
        %v2249 = vadd.f32 0.0, %v2248
        %v2250 = vpop.f32.mrb[0].mxu0
        %2251 = vmatprep.mubr.bf16.mxu0 0
        %2252 = vmatmul.mubr.bf16.gmra.mrb[0].mxu0 %v2206
        %v2253 = vpop.f32.mrb[0].mxu0
        %v2254 = vadd.f32 0.0, %v2253
        %v2255 = vpop.f32.mrb[0].mxu0
        %v2256 = vpop.f32.mrb[0].mxu0
        %v2257 = vadd.f32 0.0, %v2256
        %v2258 = vpop.f32.mrb[0].mxu0
        %2259 = vdwg.mxu0
        %v2261 = vsel %vm475, %v1329, 0
        %v2264 = vsel %vm475, %v1330, 0
        %v2267 = vsel %vm925, %v470, 0
        %2269 = vmatprep.subr.bf16.mxu0 0
        %2270 = vmatpush1.bf16.msra.mxu0 %v2267
        %2271 = vmatprep.subr.bf16.mxu0 0
        %2272 = vmatpush1.bf16.msra.mxu0 0
        %2273 = vmatprep.subr.bf16.mxu0 0
        %2274 = vmatpush1.bf16.msra.mxu0 0
        %2275 = vmatprep.subr.bf16.mxu0 0
        %2276 = vmatpush1.bf16.msra.mxu0 0
        %2277 = vmatprep.subr.bf16.mxu0 0
        %2278 = vmatpush1.bf16.msra.mxu0 0
        %2279 = vmatprep.subr.bf16.mxu0 0
        %2280 = vmatpush1.bf16.msra.mxu0 0
        %2281 = vmatprep.subr.bf16.mxu0 0
        %2282 = vmatpush1.bf16.msra.mxu0 0
        %2283 = vmatprep.subr.bf16.mxu0 0
        %2284 = vmatpush1.bf16.msra.mxu0 0
        %2285 = vmatprep.subr.bf16.mxu0 0
        %2286 = vmatpush1.bf16.msra.mxu0 0
        %2287 = vmatprep.subr.bf16.mxu0 0
        %2288 = vmatpush1.bf16.msra.mxu0 0
        %2289 = vmatprep.subr.bf16.mxu0 0
        %2290 = vmatpush1.bf16.msra.mxu0 0
        %2291 = vmatprep.subr.bf16.mxu0 0
        %2292 = vmatpush1.bf16.msra.mxu0 0
        %2293 = vmatprep.subr.bf16.mxu0 0
        %2294 = vmatpush1.bf16.msra.mxu0 0
        %2295 = vmatprep.subr.bf16.mxu0 0
        %2296 = vmatpush1.bf16.msra.mxu0 0
        %2297 = vmatprep.subr.bf16.mxu0 0
        %2298 = vmatpush1.bf16.msra.mxu0 0
        %2299 = vmatprep.subr.bf16.mxu0 0
        %2300 = vmatpush1.bf16.msra.mxu0 0
        %2301 = vmatprep.mubr.bf16.mxu0 0
        %2302 = vmatmul.mubr.bf16.gmra.mrb[0].mxu0 %v2261
        %v2303 = vpop.f32.mrb[0].mxu0
        %v2304 = vadd.f32 %v2246, %v2303
        %v2305 = vpop.f32.mrb[0].mxu0
        %v2306 = vpop.f32.mrb[0].mxu0
        %v2307 = vadd.f32 %v2249, %v2306
        %v2308 = vpop.f32.mrb[0].mxu0
        %2309 = vmatprep.mubr.bf16.mxu0 0
        %2310 = vmatmul.mubr.bf16.gmra.mrb[0].mxu0 %v2264
        %v2311 = vpop.f32.mrb[0].mxu0
        %v2312 = vadd.f32 %v2254, %v2311
        %v2313 = vpop.f32.mrb[0].mxu0
        %v2314 = vpop.f32.mrb[0].mxu0
        %v2315 = vadd.f32 %v2257, %v2314
        %v2316 = vpop.f32.mrb[0].mxu0
        %2317 = vdwg.mxu0
        %s2318 = scalar_lea.vmem [#allocation5], 4
        %v2319 = vld [vmem:[%s2318] sm:$0x3]
        %2320 = vrot.lane.b32.xlu0 %v462, 112
        %v2321 = vpop.permute.xlu0 %2320
        %v2323 = vsel %vm475, %v2319, 0
        %v2326 = vsel %vm475, %v2321, 0
        %2328 = vmatprep.subr.bf16.mxu0 0
        %2329 = vmatpush1.bf16.xpose.msra.mxu0 %v2326
        %2330 = vmatprep.subr.bf16.mxu0 0
        %2331 = vmatpush1.bf16.xpose.msra.mxu0 0
        %2332 = vmatprep.subr.bf16.mxu0 0
        %2333 = vmatpush1.bf16.xpose.msra.mxu0 0
        %2334 = vmatprep.subr.bf16.mxu0 0
        %2335 = vmatpush1.bf16.xpose.msra.mxu0 0
        %2336 = vmatprep.subr.bf16.mxu0 0
        %2337 = vmatpush1.bf16.xpose.msra.mxu0 0
        %2338 = vmatprep.subr.bf16.mxu0 0
        %2339 = vmatpush1.bf16.xpose.msra.mxu0 0
        %2340 = vmatprep.subr.bf16.mxu0 0
        %2341 = vmatpush1.bf16.xpose.msra.mxu0 0
        %2342 = vmatprep.subr.bf16.mxu0 0
        %2343 = vmatpush1.bf16.xpose.msra.mxu0 0
        %2344 = vmatprep.subr.bf16.mxu0 0
        %2345 = vmatpush1.bf16.xpose.msra.mxu0 0
        %2346 = vmatprep.subr.bf16.mxu0 0
        %2347 = vmatpush1.bf16.xpose.msra.mxu0 0
        %2348 = vmatprep.subr.bf16.mxu0 0
        %2349 = vmatpush1.bf16.xpose.msra.mxu0 0
        %2350 = vmatprep.subr.bf16.mxu0 0
        %2351 = vmatpush1.bf16.xpose.msra.mxu0 0
        %2352 = vmatprep.subr.bf16.mxu0 0
        %2353 = vmatpush1.bf16.xpose.msra.mxu0 0
        %2354 = vmatprep.subr.bf16.mxu0 0
        %2355 = vmatpush1.bf16.xpose.msra.mxu0 0
        %2356 = vmatprep.subr.bf16.mxu0 0
        %2357 = vmatpush1.bf16.xpose.msra.mxu0 0
        %2358 = vmatprep.subr.bf16.mxu0 0
        %2359 = vmatpush1.bf16.xpose.msra.mxu0 0
        %2360 = vmatprep.mubr.bf16.mxu0 0
        %2361 = vmatmul.mubr.bf16.gmra.mrb[0].mxu0 %v2323
        %v2362 = vpop.f32.mrb[0].mxu0
        %v2363 = vadd.f32 0.0, %v2362
        %v2364 = vpop.f32.mrb[0].mxu0
        %v2365 = vpop.f32.mrb[0].mxu0
        %v2366 = vpop.f32.mrb[0].mxu0
        %2367 = vdwg.mxu0
        %2368 = vrot.lane.b32.xlu0 %v463, 112
        %v2369 = vpop.permute.xlu0 %2368
        %v2371 = vsel %vm475, %v2369, 0
        %2373 = vmatprep.subr.bf16.mxu0 0
        %2374 = vmatpush1.bf16.xpose.msra.mxu0 %v2371
        %2375 = vmatprep.subr.bf16.mxu0 0
        %2376 = vmatpush1.bf16.xpose.msra.mxu0 0
        %2377 = vmatprep.subr.bf16.mxu0 0
        %2378 = vmatpush1.bf16.xpose.msra.mxu0 0
        %2379 = vmatprep.subr.bf16.mxu0 0
        %2380 = vmatpush1.bf16.xpose.msra.mxu0 0
        %2381 = vmatprep.subr.bf16.mxu0 0
        %2382 = vmatpush1.bf16.xpose.msra.mxu0 0
        %2383 = vmatprep.subr.bf16.mxu0 0
        %2384 = vmatpush1.bf16.xpose.msra.mxu0 0
        %2385 = vmatprep.subr.bf16.mxu0 0
        %2386 = vmatpush1.bf16.xpose.msra.mxu0 0
        %2387 = vmatprep.subr.bf16.mxu0 0
        %2388 = vmatpush1.bf16.xpose.msra.mxu0 0
        %2389 = vmatprep.subr.bf16.mxu0 0
        %2390 = vmatpush1.bf16.xpose.msra.mxu0 0
        %2391 = vmatprep.subr.bf16.mxu0 0
        %2392 = vmatpush1.bf16.xpose.msra.mxu0 0
        %2393 = vmatprep.subr.bf16.mxu0 0
        %2394 = vmatpush1.bf16.xpose.msra.mxu0 0
        %2395 = vmatprep.subr.bf16.mxu0 0
        %2396 = vmatpush1.bf16.xpose.msra.mxu0 0
        %2397 = vmatprep.subr.bf16.mxu0 0
        %2398 = vmatpush1.bf16.xpose.msra.mxu0 0
        %2399 = vmatprep.subr.bf16.mxu0 0
        %2400 = vmatpush1.bf16.xpose.msra.mxu0 0
        %2401 = vmatprep.subr.bf16.mxu0 0
        %2402 = vmatpush1.bf16.xpose.msra.mxu0 0
        %2403 = vmatprep.subr.bf16.mxu0 0
        %2404 = vmatpush1.bf16.xpose.msra.mxu0 0
        %2405 = vmatprep.mubr.bf16.mxu0 0
        %2406 = vmatmul.mubr.bf16.gmra.mrb[0].mxu0 %v2323
        %v2407 = vpop.f32.mrb[0].mxu0
        %v2408 = vadd.f32 0.0, %v2407
        %v2409 = vpop.f32.mrb[0].mxu0
        %v2410 = vpop.f32.mrb[0].mxu0
        %v2411 = vpop.f32.mrb[0].mxu0
        %2412 = vdwg.mxu0
        %2413 = vrot.lane.b32.xlu0 %v464, 112
        %v2414 = vpop.permute.xlu0 %2413
        %v2416 = vsel %vm475, %v2414, 0
        %2418 = vmatprep.subr.bf16.mxu0 0
        %2419 = vmatpush1.bf16.xpose.msra.mxu0 %v2416
        %2420 = vmatprep.subr.bf16.mxu0 0
        %2421 = vmatpush1.bf16.xpose.msra.mxu0 0
        %2422 = vmatprep.subr.bf16.mxu0 0
        %2423 = vmatpush1.bf16.xpose.msra.mxu0 0
        %2424 = vmatprep.subr.bf16.mxu0 0
        %2425 = vmatpush1.bf16.xpose.msra.mxu0 0
        %2426 = vmatprep.subr.bf16.mxu0 0
        %2427 = vmatpush1.bf16.xpose.msra.mxu0 0
        %2428 = vmatprep.subr.bf16.mxu0 0
        %2429 = vmatpush1.bf16.xpose.msra.mxu0 0
        %2430 = vmatprep.subr.bf16.mxu0 0
        %2431 = vmatpush1.bf16.xpose.msra.mxu0 0
        %2432 = vmatprep.subr.bf16.mxu0 0
        %2433 = vmatpush1.bf16.xpose.msra.mxu0 0
        %2434 = vmatprep.subr.bf16.mxu0 0
        %2435 = vmatpush1.bf16.xpose.msra.mxu0 0
        %2436 = vmatprep.subr.bf16.mxu0 0
        %2437 = vmatpush1.bf16.xpose.msra.mxu0 0
        %2438 = vmatprep.subr.bf16.mxu0 0
        %2439 = vmatpush1.bf16.xpose.msra.mxu0 0
        %2440 = vmatprep.subr.bf16.mxu0 0
        %2441 = vmatpush1.bf16.xpose.msra.mxu0 0
        %2442 = vmatprep.subr.bf16.mxu0 0
        %2443 = vmatpush1.bf16.xpose.msra.mxu0 0
        %2444 = vmatprep.subr.bf16.mxu0 0
        %2445 = vmatpush1.bf16.xpose.msra.mxu0 0
        %2446 = vmatprep.subr.bf16.mxu0 0
        %2447 = vmatpush1.bf16.xpose.msra.mxu0 0
        %2448 = vmatprep.subr.bf16.mxu0 0
        %2449 = vmatpush1.bf16.xpose.msra.mxu0 0
        %2450 = vmatprep.mubr.bf16.mxu0 0
        %2451 = vmatmul.mubr.bf16.gmra.mrb[0].mxu0 %v2323
        %v2452 = vpop.f32.mrb[0].mxu0
        %v2453 = vadd.f32 0.0, %v2452
        %v2454 = vpop.f32.mrb[0].mxu0
        %v2455 = vpop.f32.mrb[0].mxu0
        %v2456 = vpop.f32.mrb[0].mxu0
        %2457 = vdwg.mxu0
        %2458 = vrot.lane.b32.xlu0 %v465, 112
        %v2459 = vpop.permute.xlu0 %2458
        %v2461 = vsel %vm475, %v2459, 0
        %2463 = vmatprep.subr.bf16.mxu0 0
        %2464 = vmatpush1.bf16.xpose.msra.mxu0 %v2461
        %2465 = vmatprep.subr.bf16.mxu0 0
        %2466 = vmatpush1.bf16.xpose.msra.mxu0 0
        %2467 = vmatprep.subr.bf16.mxu0 0
        %2468 = vmatpush1.bf16.xpose.msra.mxu0 0
        %2469 = vmatprep.subr.bf16.mxu0 0
        %2470 = vmatpush1.bf16.xpose.msra.mxu0 0
        %2471 = vmatprep.subr.bf16.mxu0 0
        %2472 = vmatpush1.bf16.xpose.msra.mxu0 0
        %2473 = vmatprep.subr.bf16.mxu0 0
        %2474 = vmatpush1.bf16.xpose.msra.mxu0 0
        %2475 = vmatprep.subr.bf16.mxu0 0
        %2476 = vmatpush1.bf16.xpose.msra.mxu0 0
        %2477 = vmatprep.subr.bf16.mxu0 0
        %2478 = vmatpush1.bf16.xpose.msra.mxu0 0
        %2479 = vmatprep.subr.bf16.mxu0 0
        %2480 = vmatpush1.bf16.xpose.msra.mxu0 0
        %2481 = vmatprep.subr.bf16.mxu0 0
        %2482 = vmatpush1.bf16.xpose.msra.mxu0 0
        %2483 = vmatprep.subr.bf16.mxu0 0
        %2484 = vmatpush1.bf16.xpose.msra.mxu0 0
        %2485 = vmatprep.subr.bf16.mxu0 0
        %2486 = vmatpush1.bf16.xpose.msra.mxu0 0
        %2487 = vmatprep.subr.bf16.mxu0 0
        %2488 = vmatpush1.bf16.xpose.msra.mxu0 0
        %2489 = vmatprep.subr.bf16.mxu0 0
        %2490 = vmatpush1.bf16.xpose.msra.mxu0 0
        %2491 = vmatprep.subr.bf16.mxu0 0
        %2492 = vmatpush1.bf16.xpose.msra.mxu0 0
        %2493 = vmatprep.subr.bf16.mxu0 0
        %2494 = vmatpush1.bf16.xpose.msra.mxu0 0
        %2495 = vmatprep.mubr.bf16.mxu0 0
        %2496 = vmatmul.mubr.bf16.gmra.mrb[0].mxu0 %v2323
        %v2497 = vpop.f32.mrb[0].mxu0
        %v2498 = vadd.f32 0.0, %v2497
        %v2499 = vpop.f32.mrb[0].mxu0
        %v2500 = vpop.f32.mrb[0].mxu0
        %v2501 = vpop.f32.mrb[0].mxu0
        %2502 = vdwg.mxu0
        %2503 = vrot.lane.b32.xlu0 %v466, 112
        %v2504 = vpop.permute.xlu0 %2503
        %v2506 = vsel %vm475, %v2504, 0
        %2508 = vmatprep.subr.bf16.mxu0 0
        %2509 = vmatpush1.bf16.xpose.msra.mxu0 %v2506
        %2510 = vmatprep.subr.bf16.mxu0 0
        %2511 = vmatpush1.bf16.xpose.msra.mxu0 0
        %2512 = vmatprep.subr.bf16.mxu0 0
        %2513 = vmatpush1.bf16.xpose.msra.mxu0 0
        %2514 = vmatprep.subr.bf16.mxu0 0
        %2515 = vmatpush1.bf16.xpose.msra.mxu0 0
        %2516 = vmatprep.subr.bf16.mxu0 0
        %2517 = vmatpush1.bf16.xpose.msra.mxu0 0
        %2518 = vmatprep.subr.bf16.mxu0 0
        %2519 = vmatpush1.bf16.xpose.msra.mxu0 0
        %2520 = vmatprep.subr.bf16.mxu0 0
        %2521 = vmatpush1.bf16.xpose.msra.mxu0 0
        %2522 = vmatprep.subr.bf16.mxu0 0
        %2523 = vmatpush1.bf16.xpose.msra.mxu0 0
        %2524 = vmatprep.subr.bf16.mxu0 0
        %2525 = vmatpush1.bf16.xpose.msra.mxu0 0
        %2526 = vmatprep.subr.bf16.mxu0 0
        %2527 = vmatpush1.bf16.xpose.msra.mxu0 0
        %2528 = vmatprep.subr.bf16.mxu0 0
        %2529 = vmatpush1.bf16.xpose.msra.mxu0 0
        %2530 = vmatprep.subr.bf16.mxu0 0
        %2531 = vmatpush1.bf16.xpose.msra.mxu0 0
        %2532 = vmatprep.subr.bf16.mxu0 0
        %2533 = vmatpush1.bf16.xpose.msra.mxu0 0
        %2534 = vmatprep.subr.bf16.mxu0 0
        %2535 = vmatpush1.bf16.xpose.msra.mxu0 0
        %2536 = vmatprep.subr.bf16.mxu0 0
        %2537 = vmatpush1.bf16.xpose.msra.mxu0 0
        %2538 = vmatprep.subr.bf16.mxu0 0
        %2539 = vmatpush1.bf16.xpose.msra.mxu0 0
        %2540 = vmatprep.mubr.bf16.mxu0 0
        %2541 = vmatmul.mubr.bf16.gmra.mrb[0].mxu0 %v2323
        %v2542 = vpop.f32.mrb[0].mxu0
        %v2543 = vadd.f32 0.0, %v2542
        %v2544 = vpop.f32.mrb[0].mxu0
        %v2545 = vpop.f32.mrb[0].mxu0
        %v2546 = vpop.f32.mrb[0].mxu0
        %2547 = vdwg.mxu0
        %2548 = vrot.lane.b32.xlu0 %v467, 112
        %v2549 = vpop.permute.xlu0 %2548
        %v2551 = vsel %vm475, %v2549, 0
        %2553 = vmatprep.subr.bf16.mxu0 0
        %2554 = vmatpush1.bf16.xpose.msra.mxu0 %v2551
        %2555 = vmatprep.subr.bf16.mxu0 0
        %2556 = vmatpush1.bf16.xpose.msra.mxu0 0
        %2557 = vmatprep.subr.bf16.mxu0 0
        %2558 = vmatpush1.bf16.xpose.msra.mxu0 0
        %2559 = vmatprep.subr.bf16.mxu0 0
        %2560 = vmatpush1.bf16.xpose.msra.mxu0 0
        %2561 = vmatprep.subr.bf16.mxu0 0
        %2562 = vmatpush1.bf16.xpose.msra.mxu0 0
        %2563 = vmatprep.subr.bf16.mxu0 0
        %2564 = vmatpush1.bf16.xpose.msra.mxu0 0
        %2565 = vmatprep.subr.bf16.mxu0 0
        %2566 = vmatpush1.bf16.xpose.msra.mxu0 0
        %2567 = vmatprep.subr.bf16.mxu0 0
        %2568 = vmatpush1.bf16.xpose.msra.mxu0 0
        %2569 = vmatprep.subr.bf16.mxu0 0
        %2570 = vmatpush1.bf16.xpose.msra.mxu0 0
        %2571 = vmatprep.subr.bf16.mxu0 0
        %2572 = vmatpush1.bf16.xpose.msra.mxu0 0
        %2573 = vmatprep.subr.bf16.mxu0 0
        %2574 = vmatpush1.bf16.xpose.msra.mxu0 0
        %2575 = vmatprep.subr.bf16.mxu0 0
        %2576 = vmatpush1.bf16.xpose.msra.mxu0 0
        %2577 = vmatprep.subr.bf16.mxu0 0
        %2578 = vmatpush1.bf16.xpose.msra.mxu0 0
        %2579 = vmatprep.subr.bf16.mxu0 0
        %2580 = vmatpush1.bf16.xpose.msra.mxu0 0
        %2581 = vmatprep.subr.bf16.mxu0 0
        %2582 = vmatpush1.bf16.xpose.msra.mxu0 0
        %2583 = vmatprep.subr.bf16.mxu0 0
        %2584 = vmatpush1.bf16.xpose.msra.mxu0 0
        %2585 = vmatprep.mubr.bf16.mxu0 0
        %2586 = vmatmul.mubr.bf16.gmra.mrb[0].mxu0 %v2323
        %v2587 = vpop.f32.mrb[0].mxu0
        %v2588 = vadd.f32 0.0, %v2587
        %v2589 = vpop.f32.mrb[0].mxu0
        %v2590 = vpop.f32.mrb[0].mxu0
        %v2591 = vpop.f32.mrb[0].mxu0
        %2592 = vdwg.mxu0
        %2593 = vrot.lane.b32.xlu0 %v468, 112
        %v2594 = vpop.permute.xlu0 %2593
        %v2596 = vsel %vm475, %v2594, 0
        %2598 = vmatprep.subr.bf16.mxu0 0
        %2599 = vmatpush1.bf16.xpose.msra.mxu0 %v2596
        %2600 = vmatprep.subr.bf16.mxu0 0
        %2601 = vmatpush1.bf16.xpose.msra.mxu0 0
        %2602 = vmatprep.subr.bf16.mxu0 0
        %2603 = vmatpush1.bf16.xpose.msra.mxu0 0
        %2604 = vmatprep.subr.bf16.mxu0 0
        %2605 = vmatpush1.bf16.xpose.msra.mxu0 0
        %2606 = vmatprep.subr.bf16.mxu0 0
        %2607 = vmatpush1.bf16.xpose.msra.mxu0 0
        %2608 = vmatprep.subr.bf16.mxu0 0
        %2609 = vmatpush1.bf16.xpose.msra.mxu0 0
        %2610 = vmatprep.subr.bf16.mxu0 0
        %2611 = vmatpush1.bf16.xpose.msra.mxu0 0
        %2612 = vmatprep.subr.bf16.mxu0 0
        %2613 = vmatpush1.bf16.xpose.msra.mxu0 0
        %2614 = vmatprep.subr.bf16.mxu0 0
        %2615 = vmatpush1.bf16.xpose.msra.mxu0 0
        %2616 = vmatprep.subr.bf16.mxu0 0
        %2617 = vmatpush1.bf16.xpose.msra.mxu0 0
        %2618 = vmatprep.subr.bf16.mxu0 0
        %2619 = vmatpush1.bf16.xpose.msra.mxu0 0
        %2620 = vmatprep.subr.bf16.mxu0 0
        %2621 = vmatpush1.bf16.xpose.msra.mxu0 0
        %2622 = vmatprep.subr.bf16.mxu0 0
        %2623 = vmatpush1.bf16.xpose.msra.mxu0 0
        %2624 = vmatprep.subr.bf16.mxu0 0
        %2625 = vmatpush1.bf16.xpose.msra.mxu0 0
        %2626 = vmatprep.subr.bf16.mxu0 0
        %2627 = vmatpush1.bf16.xpose.msra.mxu0 0
        %2628 = vmatprep.subr.bf16.mxu0 0
        %2629 = vmatpush1.bf16.xpose.msra.mxu0 0
        %2630 = vmatprep.mubr.bf16.mxu0 0
        %2631 = vmatmul.mubr.bf16.gmra.mrb[0].mxu0 %v2323
        %v2632 = vpop.f32.mrb[0].mxu0
        %v2633 = vadd.f32 0.0, %v2632
        %v2634 = vpop.f32.mrb[0].mxu0
        %v2635 = vpop.f32.mrb[0].mxu0
        %v2636 = vpop.f32.mrb[0].mxu0
        %2637 = vdwg.mxu0
        %2638 = vrot.lane.b32.xlu0 %v469, 112
        %v2639 = vpop.permute.xlu0 %2638
        %v2641 = vsel %vm475, %v2639, 0
        %2643 = vmatprep.subr.bf16.mxu0 0
        %2644 = vmatpush1.bf16.xpose.msra.mxu0 %v2641
        %2645 = vmatprep.subr.bf16.mxu0 0
        %2646 = vmatpush1.bf16.xpose.msra.mxu0 0
        %2647 = vmatprep.subr.bf16.mxu0 0
        %2648 = vmatpush1.bf16.xpose.msra.mxu0 0
        %2649 = vmatprep.subr.bf16.mxu0 0
        %2650 = vmatpush1.bf16.xpose.msra.mxu0 0
        %2651 = vmatprep.subr.bf16.mxu0 0
        %2652 = vmatpush1.bf16.xpose.msra.mxu0 0
        %2653 = vmatprep.subr.bf16.mxu0 0
        %2654 = vmatpush1.bf16.xpose.msra.mxu0 0
        %2655 = vmatprep.subr.bf16.mxu0 0
        %2656 = vmatpush1.bf16.xpose.msra.mxu0 0
        %2657 = vmatprep.subr.bf16.mxu0 0
        %2658 = vmatpush1.bf16.xpose.msra.mxu0 0
        %2659 = vmatprep.subr.bf16.mxu0 0
        %2660 = vmatpush1.bf16.xpose.msra.mxu0 0
        %2661 = vmatprep.subr.bf16.mxu0 0
        %2662 = vmatpush1.bf16.xpose.msra.mxu0 0
        %2663 = vmatprep.subr.bf16.mxu0 0
        %2664 = vmatpush1.bf16.xpose.msra.mxu0 0
        %2665 = vmatprep.subr.bf16.mxu0 0
        %2666 = vmatpush1.bf16.xpose.msra.mxu0 0
        %2667 = vmatprep.subr.bf16.mxu0 0
        %2668 = vmatpush1.bf16.xpose.msra.mxu0 0
        %2669 = vmatprep.subr.bf16.mxu0 0
        %2670 = vmatpush1.bf16.xpose.msra.mxu0 0
        %2671 = vmatprep.subr.bf16.mxu0 0
        %2672 = vmatpush1.bf16.xpose.msra.mxu0 0
        %2673 = vmatprep.subr.bf16.mxu0 0
        %2674 = vmatpush1.bf16.xpose.msra.mxu0 0
        %2675 = vmatprep.mubr.bf16.mxu0 0
        %2676 = vmatmul.mubr.bf16.gmra.mrb[0].mxu0 %v2323
        %v2677 = vpop.f32.mrb[0].mxu0
        %v2678 = vadd.f32 0.0, %v2677
        %v2679 = vpop.f32.mrb[0].mxu0
        %v2680 = vpop.f32.mrb[0].mxu0
        %v2681 = vpop.f32.mrb[0].mxu0
        %2682 = vdwg.mxu0
        %v2683 = vsel %vm823, %v2363, -inf
        %2684 = vmax.xlane.f32.xlu0 %v2683
        %v2685 = vpop.xlane.xlu0 %2684
        %v2686 = vsel %vm823, %v2408, -inf
        %2687 = vmax.xlane.f32.xlu0 %v2686
        %v2688 = vpop.xlane.xlu0 %2687
        %v2689 = vsel %vm823, %v2453, -inf
        %2690 = vmax.xlane.f32.xlu0 %v2689
        %v2691 = vpop.xlane.xlu0 %2690
        %v2692 = vsel %vm823, %v2498, -inf
        %2693 = vmax.xlane.f32.xlu0 %v2692
        %v2694 = vpop.xlane.xlu0 %2693
        %v2695 = vsel %vm823, %v2543, -inf
        %2696 = vmax.xlane.f32.xlu0 %v2695
        %v2697 = vpop.xlane.xlu0 %2696
        %v2698 = vsel %vm823, %v2588, -inf
        %2699 = vmax.xlane.f32.xlu0 %v2698
        %v2700 = vpop.xlane.xlu0 %2699
        %v2701 = vsel %vm823, %v2633, -inf
        %2702 = vmax.xlane.f32.xlu0 %v2701
        %v2703 = vpop.xlane.xlu0 %2702
        %v2704 = vsel %vm823, %v2678, -inf
        %2705 = vmax.xlane.f32.xlu0 %v2704
        %v2706 = vpop.xlane.xlu0 %2705
        %v2707 = vsub.f32 %v2363, %v2685
        %v2708 = vsub.f32 %v2408, %v2688
        %v2709 = vsub.f32 %v2453, %v2691
        %v2710 = vsub.f32 %v2498, %v2694
        %v2711 = vsub.f32 %v2543, %v2697
        %v2712 = vsub.f32 %v2588, %v2700
        %v2713 = vsub.f32 %v2633, %v2703
        %v2714 = vsub.f32 %v2678, %v2706
        %v2715 = vmul.f32 %v2707, 1.442695
        %v2716 = vpow.pop %v2715
        %v2717 = vmul.f32 %v2708, 1.442695
        %v2718 = vpow.pop %v2717
        %v2719 = vmul.f32 %v2709, 1.442695
        %v2720 = vpow.pop %v2719
        %v2721 = vmul.f32 %v2710, 1.442695
        %v2722 = vpow.pop %v2721
        %v2723 = vmul.f32 %v2711, 1.442695
        %v2724 = vpow.pop %v2723
        %v2725 = vmul.f32 %v2712, 1.442695
        %v2726 = vpow.pop %v2725
        %v2727 = vmul.f32 %v2713, 1.442695
        %v2728 = vpow.pop %v2727
        %v2729 = vmul.f32 %v2714, 1.442695
        %v2730 = vpow.pop %v2729
        %v2731 = vsel %vm823, %v2716, 0.0
        %2732 = vadd.xlane.f32.xlu0 %v2731
        %v2733 = vpop.xlane.xlu0 %2732
        %v2734 = vsel %vm823, %v2718, 0.0
        %2735 = vadd.xlane.f32.xlu0 %v2734
        %v2736 = vpop.xlane.xlu0 %2735
        %v2737 = vsel %vm823, %v2720, 0.0
        %2738 = vadd.xlane.f32.xlu0 %v2737
        %v2739 = vpop.xlane.xlu0 %2738
        %v2740 = vsel %vm823, %v2722, 0.0
        %2741 = vadd.xlane.f32.xlu0 %v2740
        %v2742 = vpop.xlane.xlu0 %2741
        %v2743 = vsel %vm823, %v2724, 0.0
        %2744 = vadd.xlane.f32.xlu0 %v2743
        %v2745 = vpop.xlane.xlu0 %2744
        %v2746 = vsel %vm823, %v2726, 0.0
        %2747 = vadd.xlane.f32.xlu0 %v2746
        %v2748 = vpop.xlane.xlu0 %2747
        %v2749 = vsel %vm823, %v2728, 0.0
        %2750 = vadd.xlane.f32.xlu0 %v2749
        %v2751 = vpop.xlane.xlu0 %2750
        %v2752 = vsel %vm823, %v2730, 0.0
        %2753 = vadd.xlane.f32.xlu0 %v2752
        %v2754 = vpop.xlane.xlu0 %2753
        %v2755 = vrcp.pop %v2733
        %v2756 = vrcp.pop %v2736
        %v2757 = vrcp.pop %v2739
        %v2758 = vrcp.pop %v2742
        %v2759 = vrcp.pop %v2745
        %v2760 = vrcp.pop %v2748
        %v2761 = vrcp.pop %v2751
        %v2762 = vrcp.pop %v2754
        %v2763 = vmul.f32 %v2716, %v2755
        %v2764 = vmul.f32 %v2718, %v2756
        %v2765 = vmul.f32 %v2720, %v2757
        %v2766 = vmul.f32 %v2722, %v2758
        %v2767 = vmul.f32 %v2724, %v2759
        %v2768 = vmul.f32 %v2726, %v2760
        %v2769 = vmul.f32 %v2728, %v2761
        %v2770 = vmul.f32 %v2730, %v2762
        %v2771 = vpack.c.bf16 %v2763, %v2763
        %v2772 = vpack.c.bf16 %v2764, %v2764
        %v2773 = vpack.c.bf16 %v2765, %v2765
        %v2774 = vpack.c.bf16 %v2766, %v2766
        %v2775 = vpack.c.bf16 %v2767, %v2767
        %v2776 = vpack.c.bf16 %v2768, %v2768
        %v2777 = vpack.c.bf16 %v2769, %v2769
        %v2778 = vpack.c.bf16 %v2770, %v2770
        %2779 = vrot.lane.b32.xlu0 %v462, 80
        %v2780 = vpop.permute.xlu0 %2779
        %v2782 = vsel %vm475, %v2771, 0
        %v2785 = vsel %vm925, %v2780, 0
        %2787 = vmatprep.subr.bf16.mxu0 0
        %2788 = vmatpush1.bf16.msra.mxu0 %v2785
        %2789 = vmatprep.subr.bf16.mxu0 0
        %2790 = vmatpush1.bf16.msra.mxu0 0
        %2791 = vmatprep.subr.bf16.mxu0 0
        %2792 = vmatpush1.bf16.msra.mxu0 0
        %2793 = vmatprep.subr.bf16.mxu0 0
        %2794 = vmatpush1.bf16.msra.mxu0 0
        %2795 = vmatprep.subr.bf16.mxu0 0
        %2796 = vmatpush1.bf16.msra.mxu0 0
        %2797 = vmatprep.subr.bf16.mxu0 0
        %2798 = vmatpush1.bf16.msra.mxu0 0
        %2799 = vmatprep.subr.bf16.mxu0 0
        %2800 = vmatpush1.bf16.msra.mxu0 0
        %2801 = vmatprep.subr.bf16.mxu0 0
        %2802 = vmatpush1.bf16.msra.mxu0 0
        %2803 = vmatprep.subr.bf16.mxu0 0
        %2804 = vmatpush1.bf16.msra.mxu0 0
        %2805 = vmatprep.subr.bf16.mxu0 0
        %2806 = vmatpush1.bf16.msra.mxu0 0
        %2807 = vmatprep.subr.bf16.mxu0 0
        %2808 = vmatpush1.bf16.msra.mxu0 0
        %2809 = vmatprep.subr.bf16.mxu0 0
        %2810 = vmatpush1.bf16.msra.mxu0 0
        %2811 = vmatprep.subr.bf16.mxu0 0
        %2812 = vmatpush1.bf16.msra.mxu0 0
        %2813 = vmatprep.subr.bf16.mxu0 0
        %2814 = vmatpush1.bf16.msra.mxu0 0
        %2815 = vmatprep.subr.bf16.mxu0 0
        %2816 = vmatpush1.bf16.msra.mxu0 0
        %2817 = vmatprep.subr.bf16.mxu0 0
        %2818 = vmatpush1.bf16.msra.mxu0 0
        %2819 = vmatprep.mubr.bf16.mxu0 0
        %2820 = vmatmul.mubr.bf16.gmra.mrb[0].mxu0 %v2782
        %v2821 = vpop.f32.mrb[0].mxu0
        %v2822 = vadd.f32 0.0, %v2821
        %v2823 = vpop.f32.mrb[0].mxu0
        %v2824 = vpop.f32.mrb[0].mxu0
        %v2825 = vpop.f32.mrb[0].mxu0
        %2826 = vdwg.mxu0
        %2827 = vrot.lane.b32.xlu0 %v463, 80
        %v2828 = vpop.permute.xlu0 %2827
        %v2830 = vsel %vm475, %v2772, 0
        %v2833 = vsel %vm925, %v2828, 0
        %2835 = vmatprep.subr.bf16.mxu0 0
        %2836 = vmatpush1.bf16.msra.mxu0 %v2833
        %2837 = vmatprep.subr.bf16.mxu0 0
        %2838 = vmatpush1.bf16.msra.mxu0 0
        %2839 = vmatprep.subr.bf16.mxu0 0
        %2840 = vmatpush1.bf16.msra.mxu0 0
        %2841 = vmatprep.subr.bf16.mxu0 0
        %2842 = vmatpush1.bf16.msra.mxu0 0
        %2843 = vmatprep.subr.bf16.mxu0 0
        %2844 = vmatpush1.bf16.msra.mxu0 0
        %2845 = vmatprep.subr.bf16.mxu0 0
        %2846 = vmatpush1.bf16.msra.mxu0 0
        %2847 = vmatprep.subr.bf16.mxu0 0
        %2848 = vmatpush1.bf16.msra.mxu0 0
        %2849 = vmatprep.subr.bf16.mxu0 0
        %2850 = vmatpush1.bf16.msra.mxu0 0
        %2851 = vmatprep.subr.bf16.mxu0 0
        %2852 = vmatpush1.bf16.msra.mxu0 0
        %2853 = vmatprep.subr.bf16.mxu0 0
        %2854 = vmatpush1.bf16.msra.mxu0 0
        %2855 = vmatprep.subr.bf16.mxu0 0
        %2856 = vmatpush1.bf16.msra.mxu0 0
        %2857 = vmatprep.subr.bf16.mxu0 0
        %2858 = vmatpush1.bf16.msra.mxu0 0
        %2859 = vmatprep.subr.bf16.mxu0 0
        %2860 = vmatpush1.bf16.msra.mxu0 0
        %2861 = vmatprep.subr.bf16.mxu0 0
        %2862 = vmatpush1.bf16.msra.mxu0 0
        %2863 = vmatprep.subr.bf16.mxu0 0
        %2864 = vmatpush1.bf16.msra.mxu0 0
        %2865 = vmatprep.subr.bf16.mxu0 0
        %2866 = vmatpush1.bf16.msra.mxu0 0
        %2867 = vmatprep.mubr.bf16.mxu0 0
        %2868 = vmatmul.mubr.bf16.gmra.mrb[0].mxu0 %v2830
        %v2869 = vpop.f32.mrb[0].mxu0
        %v2870 = vadd.f32 0.0, %v2869
        %v2871 = vpop.f32.mrb[0].mxu0
        %v2872 = vpop.f32.mrb[0].mxu0
        %v2873 = vpop.f32.mrb[0].mxu0
        %2874 = vdwg.mxu0
        %2875 = vrot.lane.b32.xlu0 %v464, 80
        %v2876 = vpop.permute.xlu0 %2875
        %v2878 = vsel %vm475, %v2773, 0
        %v2881 = vsel %vm925, %v2876, 0
        %2883 = vmatprep.subr.bf16.mxu0 0
        %2884 = vmatpush1.bf16.msra.mxu0 %v2881
        %2885 = vmatprep.subr.bf16.mxu0 0
        %2886 = vmatpush1.bf16.msra.mxu0 0
        %2887 = vmatprep.subr.bf16.mxu0 0
        %2888 = vmatpush1.bf16.msra.mxu0 0
        %2889 = vmatprep.subr.bf16.mxu0 0
        %2890 = vmatpush1.bf16.msra.mxu0 0
        %2891 = vmatprep.subr.bf16.mxu0 0
        %2892 = vmatpush1.bf16.msra.mxu0 0
        %2893 = vmatprep.subr.bf16.mxu0 0
        %2894 = vmatpush1.bf16.msra.mxu0 0
        %2895 = vmatprep.subr.bf16.mxu0 0
        %2896 = vmatpush1.bf16.msra.mxu0 0
        %2897 = vmatprep.subr.bf16.mxu0 0
        %2898 = vmatpush1.bf16.msra.mxu0 0
        %2899 = vmatprep.subr.bf16.mxu0 0
        %2900 = vmatpush1.bf16.msra.mxu0 0
        %2901 = vmatprep.subr.bf16.mxu0 0
        %2902 = vmatpush1.bf16.msra.mxu0 0
        %2903 = vmatprep.subr.bf16.mxu0 0
        %2904 = vmatpush1.bf16.msra.mxu0 0
        %2905 = vmatprep.subr.bf16.mxu0 0
        %2906 = vmatpush1.bf16.msra.mxu0 0
        %2907 = vmatprep.subr.bf16.mxu0 0
        %2908 = vmatpush1.bf16.msra.mxu0 0
        %2909 = vmatprep.subr.bf16.mxu0 0
        %2910 = vmatpush1.bf16.msra.mxu0 0
        %2911 = vmatprep.subr.bf16.mxu0 0
        %2912 = vmatpush1.bf16.msra.mxu0 0
        %2913 = vmatprep.subr.bf16.mxu0 0
        %2914 = vmatpush1.bf16.msra.mxu0 0
        %2915 = vmatprep.mubr.bf16.mxu0 0
        %2916 = vmatmul.mubr.bf16.gmra.mrb[0].mxu0 %v2878
        %v2917 = vpop.f32.mrb[0].mxu0
        %v2918 = vadd.f32 0.0, %v2917
        %v2919 = vpop.f32.mrb[0].mxu0
        %v2920 = vpop.f32.mrb[0].mxu0
        %v2921 = vpop.f32.mrb[0].mxu0
        %2922 = vdwg.mxu0
        %2923 = vrot.lane.b32.xlu0 %v465, 80
        %v2924 = vpop.permute.xlu0 %2923
        %v2926 = vsel %vm475, %v2774, 0
        %v2929 = vsel %vm925, %v2924, 0
        %2931 = vmatprep.subr.bf16.mxu0 0
        %2932 = vmatpush1.bf16.msra.mxu0 %v2929
        %2933 = vmatprep.subr.bf16.mxu0 0
        %2934 = vmatpush1.bf16.msra.mxu0 0
        %2935 = vmatprep.subr.bf16.mxu0 0
        %2936 = vmatpush1.bf16.msra.mxu0 0
        %2937 = vmatprep.subr.bf16.mxu0 0
        %2938 = vmatpush1.bf16.msra.mxu0 0
        %2939 = vmatprep.subr.bf16.mxu0 0
        %2940 = vmatpush1.bf16.msra.mxu0 0
        %2941 = vmatprep.subr.bf16.mxu0 0
        %2942 = vmatpush1.bf16.msra.mxu0 0
        %2943 = vmatprep.subr.bf16.mxu0 0
        %2944 = vmatpush1.bf16.msra.mxu0 0
        %2945 = vmatprep.subr.bf16.mxu0 0
        %2946 = vmatpush1.bf16.msra.mxu0 0
        %2947 = vmatprep.subr.bf16.mxu0 0
        %2948 = vmatpush1.bf16.msra.mxu0 0
        %2949 = vmatprep.subr.bf16.mxu0 0
        %2950 = vmatpush1.bf16.msra.mxu0 0
        %2951 = vmatprep.subr.bf16.mxu0 0
        %2952 = vmatpush1.bf16.msra.mxu0 0
        %2953 = vmatprep.subr.bf16.mxu0 0
        %2954 = vmatpush1.bf16.msra.mxu0 0
        %2955 = vmatprep.subr.bf16.mxu0 0
        %2956 = vmatpush1.bf16.msra.mxu0 0
        %2957 = vmatprep.subr.bf16.mxu0 0
        %2958 = vmatpush1.bf16.msra.mxu0 0
        %2959 = vmatprep.subr.bf16.mxu0 0
        %2960 = vmatpush1.bf16.msra.mxu0 0
        %2961 = vmatprep.subr.bf16.mxu0 0
        %2962 = vmatpush1.bf16.msra.mxu0 0
        %2963 = vmatprep.mubr.bf16.mxu0 0
        %2964 = vmatmul.mubr.bf16.gmra.mrb[0].mxu0 %v2926
        %v2965 = vpop.f32.mrb[0].mxu0
        %v2966 = vadd.f32 0.0, %v2965
        %v2967 = vpop.f32.mrb[0].mxu0
        %v2968 = vpop.f32.mrb[0].mxu0
        %v2969 = vpop.f32.mrb[0].mxu0
        %2970 = vdwg.mxu0
        %2971 = vrot.lane.b32.xlu0 %v466, 80
        %v2972 = vpop.permute.xlu0 %2971
        %v2974 = vsel %vm475, %v2775, 0
        %v2977 = vsel %vm925, %v2972, 0
        %2979 = vmatprep.subr.bf16.mxu0 0
        %2980 = vmatpush1.bf16.msra.mxu0 %v2977
        %2981 = vmatprep.subr.bf16.mxu0 0
        %2982 = vmatpush1.bf16.msra.mxu0 0
        %2983 = vmatprep.subr.bf16.mxu0 0
        %2984 = vmatpush1.bf16.msra.mxu0 0
        %2985 = vmatprep.subr.bf16.mxu0 0
        %2986 = vmatpush1.bf16.msra.mxu0 0
        %2987 = vmatprep.subr.bf16.mxu0 0
        %2988 = vmatpush1.bf16.msra.mxu0 0
        %2989 = vmatprep.subr.bf16.mxu0 0
        %2990 = vmatpush1.bf16.msra.mxu0 0
        %2991 = vmatprep.subr.bf16.mxu0 0
        %2992 = vmatpush1.bf16.msra.mxu0 0
        %2993 = vmatprep.subr.bf16.mxu0 0
        %2994 = vmatpush1.bf16.msra.mxu0 0
        %2995 = vmatprep.subr.bf16.mxu0 0
        %2996 = vmatpush1.bf16.msra.mxu0 0
        %2997 = vmatprep.subr.bf16.mxu0 0
        %2998 = vmatpush1.bf16.msra.mxu0 0
        %2999 = vmatprep.subr.bf16.mxu0 0
        %3000 = vmatpush1.bf16.msra.mxu0 0
        %3001 = vmatprep.subr.bf16.mxu0 0
        %3002 = vmatpush1.bf16.msra.mxu0 0
        %3003 = vmatprep.subr.bf16.mxu0 0
        %3004 = vmatpush1.bf16.msra.mxu0 0
        %3005 = vmatprep.subr.bf16.mxu0 0
        %3006 = vmatpush1.bf16.msra.mxu0 0
        %3007 = vmatprep.subr.bf16.mxu0 0
        %3008 = vmatpush1.bf16.msra.mxu0 0
        %3009 = vmatprep.subr.bf16.mxu0 0
        %3010 = vmatpush1.bf16.msra.mxu0 0
        %3011 = vmatprep.mubr.bf16.mxu0 0
        %3012 = vmatmul.mubr.bf16.gmra.mrb[0].mxu0 %v2974
        %v3013 = vpop.f32.mrb[0].mxu0
        %v3014 = vadd.f32 0.0, %v3013
        %v3015 = vpop.f32.mrb[0].mxu0
        %v3016 = vpop.f32.mrb[0].mxu0
        %v3017 = vpop.f32.mrb[0].mxu0
        %3018 = vdwg.mxu0
        %3019 = vrot.lane.b32.xlu0 %v467, 80
        %v3020 = vpop.permute.xlu0 %3019
        %v3022 = vsel %vm475, %v2776, 0
        %v3025 = vsel %vm925, %v3020, 0
        %3027 = vmatprep.subr.bf16.mxu0 0
        %3028 = vmatpush1.bf16.msra.mxu0 %v3025
        %3029 = vmatprep.subr.bf16.mxu0 0
        %3030 = vmatpush1.bf16.msra.mxu0 0
        %3031 = vmatprep.subr.bf16.mxu0 0
        %3032 = vmatpush1.bf16.msra.mxu0 0
        %3033 = vmatprep.subr.bf16.mxu0 0
        %3034 = vmatpush1.bf16.msra.mxu0 0
        %3035 = vmatprep.subr.bf16.mxu0 0
        %3036 = vmatpush1.bf16.msra.mxu0 0
        %3037 = vmatprep.subr.bf16.mxu0 0
        %3038 = vmatpush1.bf16.msra.mxu0 0
        %3039 = vmatprep.subr.bf16.mxu0 0
        %3040 = vmatpush1.bf16.msra.mxu0 0
        %3041 = vmatprep.subr.bf16.mxu0 0
        %3042 = vmatpush1.bf16.msra.mxu0 0
        %3043 = vmatprep.subr.bf16.mxu0 0
        %3044 = vmatpush1.bf16.msra.mxu0 0
        %3045 = vmatprep.subr.bf16.mxu0 0
        %3046 = vmatpush1.bf16.msra.mxu0 0
        %3047 = vmatprep.subr.bf16.mxu0 0
        %3048 = vmatpush1.bf16.msra.mxu0 0
        %3049 = vmatprep.subr.bf16.mxu0 0
        %3050 = vmatpush1.bf16.msra.mxu0 0
        %3051 = vmatprep.subr.bf16.mxu0 0
        %3052 = vmatpush1.bf16.msra.mxu0 0
        %3053 = vmatprep.subr.bf16.mxu0 0
        %3054 = vmatpush1.bf16.msra.mxu0 0
        %3055 = vmatprep.subr.bf16.mxu0 0
        %3056 = vmatpush1.bf16.msra.mxu0 0
        %3057 = vmatprep.subr.bf16.mxu0 0
        %3058 = vmatpush1.bf16.msra.mxu0 0
        %3059 = vmatprep.mubr.bf16.mxu0 0
        %3060 = vmatmul.mubr.bf16.gmra.mrb[0].mxu0 %v3022
        %v3061 = vpop.f32.mrb[0].mxu0
        %v3062 = vadd.f32 0.0, %v3061
        %v3063 = vpop.f32.mrb[0].mxu0
        %v3064 = vpop.f32.mrb[0].mxu0
        %v3065 = vpop.f32.mrb[0].mxu0
        %3066 = vdwg.mxu0
        %3067 = vrot.lane.b32.xlu0 %v468, 80
        %v3068 = vpop.permute.xlu0 %3067
        %v3070 = vsel %vm475, %v2777, 0
        %v3073 = vsel %vm925, %v3068, 0
        %3075 = vmatprep.subr.bf16.mxu0 0
        %3076 = vmatpush1.bf16.msra.mxu0 %v3073
        %3077 = vmatprep.subr.bf16.mxu0 0
        %3078 = vmatpush1.bf16.msra.mxu0 0
        %3079 = vmatprep.subr.bf16.mxu0 0
        %3080 = vmatpush1.bf16.msra.mxu0 0
        %3081 = vmatprep.subr.bf16.mxu0 0
        %3082 = vmatpush1.bf16.msra.mxu0 0
        %3083 = vmatprep.subr.bf16.mxu0 0
        %3084 = vmatpush1.bf16.msra.mxu0 0
        %3085 = vmatprep.subr.bf16.mxu0 0
        %3086 = vmatpush1.bf16.msra.mxu0 0
        %3087 = vmatprep.subr.bf16.mxu0 0
        %3088 = vmatpush1.bf16.msra.mxu0 0
        %3089 = vmatprep.subr.bf16.mxu0 0
        %3090 = vmatpush1.bf16.msra.mxu0 0
        %3091 = vmatprep.subr.bf16.mxu0 0
        %3092 = vmatpush1.bf16.msra.mxu0 0
        %3093 = vmatprep.subr.bf16.mxu0 0
        %3094 = vmatpush1.bf16.msra.mxu0 0
        %3095 = vmatprep.subr.bf16.mxu0 0
        %3096 = vmatpush1.bf16.msra.mxu0 0
        %3097 = vmatprep.subr.bf16.mxu0 0
        %3098 = vmatpush1.bf16.msra.mxu0 0
        %3099 = vmatprep.subr.bf16.mxu0 0
        %3100 = vmatpush1.bf16.msra.mxu0 0
        %3101 = vmatprep.subr.bf16.mxu0 0
        %3102 = vmatpush1.bf16.msra.mxu0 0
        %3103 = vmatprep.subr.bf16.mxu0 0
        %3104 = vmatpush1.bf16.msra.mxu0 0
        %3105 = vmatprep.subr.bf16.mxu0 0
        %3106 = vmatpush1.bf16.msra.mxu0 0
        %3107 = vmatprep.mubr.bf16.mxu0 0
        %3108 = vmatmul.mubr.bf16.gmra.mrb[0].mxu0 %v3070
        %v3109 = vpop.f32.mrb[0].mxu0
        %v3110 = vadd.f32 0.0, %v3109
        %v3111 = vpop.f32.mrb[0].mxu0
        %v3112 = vpop.f32.mrb[0].mxu0
        %v3113 = vpop.f32.mrb[0].mxu0
        %3114 = vdwg.mxu0
        %3115 = vrot.lane.b32.xlu0 %v469, 80
        %v3116 = vpop.permute.xlu0 %3115
        %v3118 = vsel %vm475, %v2778, 0
        %v3121 = vsel %vm925, %v3116, 0
        %3123 = vmatprep.subr.bf16.mxu0 0
        %3124 = vmatpush1.bf16.msra.mxu0 %v3121
        %3125 = vmatprep.subr.bf16.mxu0 0
        %3126 = vmatpush1.bf16.msra.mxu0 0
        %3127 = vmatprep.subr.bf16.mxu0 0
        %3128 = vmatpush1.bf16.msra.mxu0 0
        %3129 = vmatprep.subr.bf16.mxu0 0
        %3130 = vmatpush1.bf16.msra.mxu0 0
        %3131 = vmatprep.subr.bf16.mxu0 0
        %3132 = vmatpush1.bf16.msra.mxu0 0
        %3133 = vmatprep.subr.bf16.mxu0 0
        %3134 = vmatpush1.bf16.msra.mxu0 0
        %3135 = vmatprep.subr.bf16.mxu0 0
        %3136 = vmatpush1.bf16.msra.mxu0 0
        %3137 = vmatprep.subr.bf16.mxu0 0
        %3138 = vmatpush1.bf16.msra.mxu0 0
        %3139 = vmatprep.subr.bf16.mxu0 0
        %3140 = vmatpush1.bf16.msra.mxu0 0
        %3141 = vmatprep.subr.bf16.mxu0 0
        %3142 = vmatpush1.bf16.msra.mxu0 0
        %3143 = vmatprep.subr.bf16.mxu0 0
        %3144 = vmatpush1.bf16.msra.mxu0 0
        %3145 = vmatprep.subr.bf16.mxu0 0
        %3146 = vmatpush1.bf16.msra.mxu0 0
        %3147 = vmatprep.subr.bf16.mxu0 0
        %3148 = vmatpush1.bf16.msra.mxu0 0
        %3149 = vmatprep.subr.bf16.mxu0 0
        %3150 = vmatpush1.bf16.msra.mxu0 0
        %3151 = vmatprep.subr.bf16.mxu0 0
        %3152 = vmatpush1.bf16.msra.mxu0 0
        %3153 = vmatprep.subr.bf16.mxu0 0
        %3154 = vmatpush1.bf16.msra.mxu0 0
        %3155 = vmatprep.mubr.bf16.mxu0 0
        %3156 = vmatmul.mubr.bf16.gmra.mrb[0].mxu0 %v3118
        %v3157 = vpop.f32.mrb[0].mxu0
        %v3158 = vadd.f32 0.0, %v3157
        %v3159 = vpop.f32.mrb[0].mxu0
        %v3160 = vpop.f32.mrb[0].mxu0
        %v3161 = vpop.f32.mrb[0].mxu0
        %3162 = vdwg.mxu0
        %v3163 = vmul.f32 %v2822, 0.35355338
        %v3164 = vmul.f32 %v2870, 0.35355338
        %v3165 = vmul.f32 %v2918, 0.35355338
        %v3166 = vmul.f32 %v2966, 0.35355338
        %v3167 = vmul.f32 %v3014, 0.35355338
        %v3168 = vmul.f32 %v3062, 0.35355338
        %v3169 = vmul.f32 %v3110, 0.35355338
        %v3170 = vmul.f32 %v3158, 0.35355338
        %v3179 = vcombine.low %v3163, %v3164
        %v3180 = vcombine.low %v3165, %v3166
        %v3181 = vcombine.low %v3167, %v3168
        %v3182 = vcombine.low %v3169, %v3170
        %v3187 = vpack.c.bf16 %v3180, %v3179
        %v3188 = vpack.c.bf16 %v3182, %v3181
        %v3190 = vsel %vm475, %v3187, 0
        %v3193 = vsel %vm475, %v3188, 0
        %v3196 = vsel %vm925, %v472, 0
        %3198 = vmatprep.subr.bf16.mxu0 0
        %3199 = vmatpush1.bf16.msra.mxu0 %v3196
        %3200 = vmatprep.subr.bf16.mxu0 0
        %3201 = vmatpush1.bf16.msra.mxu0 0
        %3202 = vmatprep.subr.bf16.mxu0 0
        %3203 = vmatpush1.bf16.msra.mxu0 0
        %3204 = vmatprep.subr.bf16.mxu0 0
        %3205 = vmatpush1.bf16.msra.mxu0 0
        %3206 = vmatprep.subr.bf16.mxu0 0
        %3207 = vmatpush1.bf16.msra.mxu0 0
        %3208 = vmatprep.subr.bf16.mxu0 0
        %3209 = vmatpush1.bf16.msra.mxu0 0
        %3210 = vmatprep.subr.bf16.mxu0 0
        %3211 = vmatpush1.bf16.msra.mxu0 0
        %3212 = vmatprep.subr.bf16.mxu0 0
        %3213 = vmatpush1.bf16.msra.mxu0 0
        %3214 = vmatprep.subr.bf16.mxu0 0
        %3215 = vmatpush1.bf16.msra.mxu0 0
        %3216 = vmatprep.subr.bf16.mxu0 0
        %3217 = vmatpush1.bf16.msra.mxu0 0
        %3218 = vmatprep.subr.bf16.mxu0 0
        %3219 = vmatpush1.bf16.msra.mxu0 0
        %3220 = vmatprep.subr.bf16.mxu0 0
        %3221 = vmatpush1.bf16.msra.mxu0 0
        %3222 = vmatprep.subr.bf16.mxu0 0
        %3223 = vmatpush1.bf16.msra.mxu0 0
        %3224 = vmatprep.subr.bf16.mxu0 0
        %3225 = vmatpush1.bf16.msra.mxu0 0
        %3226 = vmatprep.subr.bf16.mxu0 0
        %3227 = vmatpush1.bf16.msra.mxu0 0
        %3228 = vmatprep.subr.bf16.mxu0 0
        %3229 = vmatpush1.bf16.msra.mxu0 0
        %3230 = vmatprep.mubr.bf16.mxu0 0
        %3231 = vmatmul.mubr.bf16.gmra.mrb[0].mxu0 %v3190
        %v3232 = vpop.f32.mrb[0].mxu0
        %v3233 = vadd.f32 0.0, %v3232
        %v3234 = vpop.f32.mrb[0].mxu0
        %v3235 = vpop.f32.mrb[0].mxu0
        %v3236 = vadd.f32 0.0, %v3235
        %v3237 = vpop.f32.mrb[0].mxu0
        %3238 = vmatprep.mubr.bf16.mxu0 0
        %3239 = vmatmul.mubr.bf16.gmra.mrb[0].mxu0 %v3193
        %v3240 = vpop.f32.mrb[0].mxu0
        %v3241 = vadd.f32 0.0, %v3240
        %v3242 = vpop.f32.mrb[0].mxu0
        %v3243 = vpop.f32.mrb[0].mxu0
        %v3244 = vadd.f32 0.0, %v3243
        %v3245 = vpop.f32.mrb[0].mxu0
        %3246 = vdwg.mxu0
        %v3247 = vadd.f32 %v2304, %v3233
        %v3248 = vadd.f32 %v2307, %v3236
        %v3249 = vadd.f32 %v2312, %v3241
        %v3250 = vadd.f32 %v2315, %v3244
        %s3251 = scalar_lea.vmem [#allocation5], 6
        %v3252 = vld [vmem:[%s3251] sm:$0x3]
        %3253 = vrot.lane.b32.xlu0 %v462, 104
        %v3254 = vpop.permute.xlu0 %3253
        %v3256 = vsel %vm475, %v3252, 0
        %v3259 = vsel %vm475, %v3254, 0
        %3261 = vmatprep.subr.bf16.mxu0 0
        %3262 = vmatpush1.bf16.xpose.msra.mxu0 %v3259
        %3263 = vmatprep.subr.bf16.mxu0 0
        %3264 = vmatpush1.bf16.xpose.msra.mxu0 0
        %3265 = vmatprep.subr.bf16.mxu0 0
        %3266 = vmatpush1.bf16.xpose.msra.mxu0 0
        %3267 = vmatprep.subr.bf16.mxu0 0
        %3268 = vmatpush1.bf16.xpose.msra.mxu0 0
        %3269 = vmatprep.subr.bf16.mxu0 0
        %3270 = vmatpush1.bf16.xpose.msra.mxu0 0
        %3271 = vmatprep.subr.bf16.mxu0 0
        %3272 = vmatpush1.bf16.xpose.msra.mxu0 0
        %3273 = vmatprep.subr.bf16.mxu0 0
        %3274 = vmatpush1.bf16.xpose.msra.mxu0 0
        %3275 = vmatprep.subr.bf16.mxu0 0
        %3276 = vmatpush1.bf16.xpose.msra.mxu0 0
        %3277 = vmatprep.subr.bf16.mxu0 0
        %3278 = vmatpush1.bf16.xpose.msra.mxu0 0
        %3279 = vmatprep.subr.bf16.mxu0 0
        %3280 = vmatpush1.bf16.xpose.msra.mxu0 0
        %3281 = vmatprep.subr.bf16.mxu0 0
        %3282 = vmatpush1.bf16.xpose.msra.mxu0 0
        %3283 = vmatprep.subr.bf16.mxu0 0
        %3284 = vmatpush1.bf16.xpose.msra.mxu0 0
        %3285 = vmatprep.subr.bf16.mxu0 0
        %3286 = vmatpush1.bf16.xpose.msra.mxu0 0
        %3287 = vmatprep.subr.bf16.mxu0 0
        %3288 = vmatpush1.bf16.xpose.msra.mxu0 0
        %3289 = vmatprep.subr.bf16.mxu0 0
        %3290 = vmatpush1.bf16.xpose.msra.mxu0 0
        %3291 = vmatprep.subr.bf16.mxu0 0
        %3292 = vmatpush1.bf16.xpose.msra.mxu0 0
        %3293 = vmatprep.mubr.bf16.mxu0 0
        %3294 = vmatmul.mubr.bf16.gmra.mrb[0].mxu0 %v3256
        %v3295 = vpop.f32.mrb[0].mxu0
        %v3296 = vadd.f32 0.0, %v3295
        %v3297 = vpop.f32.mrb[0].mxu0
        %v3298 = vpop.f32.mrb[0].mxu0
        %v3299 = vpop.f32.mrb[0].mxu0
        %3300 = vdwg.mxu0
        %3301 = vrot.lane.b32.xlu0 %v463, 104
        %v3302 = vpop.permute.xlu0 %3301
        %v3304 = vsel %vm475, %v3302, 0
        %3306 = vmatprep.subr.bf16.mxu0 0
        %3307 = vmatpush1.bf16.xpose.msra.mxu0 %v3304
        %3308 = vmatprep.subr.bf16.mxu0 0
        %3309 = vmatpush1.bf16.xpose.msra.mxu0 0
        %3310 = vmatprep.subr.bf16.mxu0 0
        %3311 = vmatpush1.bf16.xpose.msra.mxu0 0
        %3312 = vmatprep.subr.bf16.mxu0 0
        %3313 = vmatpush1.bf16.xpose.msra.mxu0 0
        %3314 = vmatprep.subr.bf16.mxu0 0
        %3315 = vmatpush1.bf16.xpose.msra.mxu0 0
        %3316 = vmatprep.subr.bf16.mxu0 0
        %3317 = vmatpush1.bf16.xpose.msra.mxu0 0
        %3318 = vmatprep.subr.bf16.mxu0 0
        %3319 = vmatpush1.bf16.xpose.msra.mxu0 0
        %3320 = vmatprep.subr.bf16.mxu0 0
        %3321 = vmatpush1.bf16.xpose.msra.mxu0 0
        %3322 = vmatprep.subr.bf16.mxu0 0
        %3323 = vmatpush1.bf16.xpose.msra.mxu0 0
        %3324 = vmatprep.subr.bf16.mxu0 0
        %3325 = vmatpush1.bf16.xpose.msra.mxu0 0
        %3326 = vmatprep.subr.bf16.mxu0 0
        %3327 = vmatpush1.bf16.xpose.msra.mxu0 0
        %3328 = vmatprep.subr.bf16.mxu0 0
        %3329 = vmatpush1.bf16.xpose.msra.mxu0 0
        %3330 = vmatprep.subr.bf16.mxu0 0
        %3331 = vmatpush1.bf16.xpose.msra.mxu0 0
        %3332 = vmatprep.subr.bf16.mxu0 0
        %3333 = vmatpush1.bf16.xpose.msra.mxu0 0
        %3334 = vmatprep.subr.bf16.mxu0 0
        %3335 = vmatpush1.bf16.xpose.msra.mxu0 0
        %3336 = vmatprep.subr.bf16.mxu0 0
        %3337 = vmatpush1.bf16.xpose.msra.mxu0 0
        %3338 = vmatprep.mubr.bf16.mxu0 0
        %3339 = vmatmul.mubr.bf16.gmra.mrb[0].mxu0 %v3256
        %v3340 = vpop.f32.mrb[0].mxu0
        %v3341 = vadd.f32 0.0, %v3340
        %v3342 = vpop.f32.mrb[0].mxu0
        %v3343 = vpop.f32.mrb[0].mxu0
        %v3344 = vpop.f32.mrb[0].mxu0
        %3345 = vdwg.mxu0
        %3346 = vrot.lane.b32.xlu0 %v464, 104
        %v3347 = vpop.permute.xlu0 %3346
        %v3349 = vsel %vm475, %v3347, 0
        %3351 = vmatprep.subr.bf16.mxu0 0
        %3352 = vmatpush1.bf16.xpose.msra.mxu0 %v3349
        %3353 = vmatprep.subr.bf16.mxu0 0
        %3354 = vmatpush1.bf16.xpose.msra.mxu0 0
        %3355 = vmatprep.subr.bf16.mxu0 0
        %3356 = vmatpush1.bf16.xpose.msra.mxu0 0
        %3357 = vmatprep.subr.bf16.mxu0 0
        %3358 = vmatpush1.bf16.xpose.msra.mxu0 0
        %3359 = vmatprep.subr.bf16.mxu0 0
        %3360 = vmatpush1.bf16.xpose.msra.mxu0 0
        %3361 = vmatprep.subr.bf16.mxu0 0
        %3362 = vmatpush1.bf16.xpose.msra.mxu0 0
        %3363 = vmatprep.subr.bf16.mxu0 0
        %3364 = vmatpush1.bf16.xpose.msra.mxu0 0
        %3365 = vmatprep.subr.bf16.mxu0 0
        %3366 = vmatpush1.bf16.xpose.msra.mxu0 0
        %3367 = vmatprep.subr.bf16.mxu0 0
        %3368 = vmatpush1.bf16.xpose.msra.mxu0 0
        %3369 = vmatprep.subr.bf16.mxu0 0
        %3370 = vmatpush1.bf16.xpose.msra.mxu0 0
        %3371 = vmatprep.subr.bf16.mxu0 0
        %3372 = vmatpush1.bf16.xpose.msra.mxu0 0
        %3373 = vmatprep.subr.bf16.mxu0 0
        %3374 = vmatpush1.bf16.xpose.msra.mxu0 0
        %3375 = vmatprep.subr.bf16.mxu0 0
        %3376 = vmatpush1.bf16.xpose.msra.mxu0 0
        %3377 = vmatprep.subr.bf16.mxu0 0
        %3378 = vmatpush1.bf16.xpose.msra.mxu0 0
        %3379 = vmatprep.subr.bf16.mxu0 0
        %3380 = vmatpush1.bf16.xpose.msra.mxu0 0
        %3381 = vmatprep.subr.bf16.mxu0 0
        %3382 = vmatpush1.bf16.xpose.msra.mxu0 0
        %3383 = vmatprep.mubr.bf16.mxu0 0
        %3384 = vmatmul.mubr.bf16.gmra.mrb[0].mxu0 %v3256
        %v3385 = vpop.f32.mrb[0].mxu0
        %v3386 = vadd.f32 0.0, %v3385
        %v3387 = vpop.f32.mrb[0].mxu0
        %v3388 = vpop.f32.mrb[0].mxu0
        %v3389 = vpop.f32.mrb[0].mxu0
        %3390 = vdwg.mxu0
        %3391 = vrot.lane.b32.xlu0 %v465, 104
        %v3392 = vpop.permute.xlu0 %3391
        %v3394 = vsel %vm475, %v3392, 0
        %3396 = vmatprep.subr.bf16.mxu0 0
        %3397 = vmatpush1.bf16.xpose.msra.mxu0 %v3394
        %3398 = vmatprep.subr.bf16.mxu0 0
        %3399 = vmatpush1.bf16.xpose.msra.mxu0 0
        %3400 = vmatprep.subr.bf16.mxu0 0
        %3401 = vmatpush1.bf16.xpose.msra.mxu0 0
        %3402 = vmatprep.subr.bf16.mxu0 0
        %3403 = vmatpush1.bf16.xpose.msra.mxu0 0
        %3404 = vmatprep.subr.bf16.mxu0 0
        %3405 = vmatpush1.bf16.xpose.msra.mxu0 0
        %3406 = vmatprep.subr.bf16.mxu0 0
        %3407 = vmatpush1.bf16.xpose.msra.mxu0 0
        %3408 = vmatprep.subr.bf16.mxu0 0
        %3409 = vmatpush1.bf16.xpose.msra.mxu0 0
        %3410 = vmatprep.subr.bf16.mxu0 0
        %3411 = vmatpush1.bf16.xpose.msra.mxu0 0
        %3412 = vmatprep.subr.bf16.mxu0 0
        %3413 = vmatpush1.bf16.xpose.msra.mxu0 0
        %3414 = vmatprep.subr.bf16.mxu0 0
        %3415 = vmatpush1.bf16.xpose.msra.mxu0 0
        %3416 = vmatprep.subr.bf16.mxu0 0
        %3417 = vmatpush1.bf16.xpose.msra.mxu0 0
        %3418 = vmatprep.subr.bf16.mxu0 0
        %3419 = vmatpush1.bf16.xpose.msra.mxu0 0
        %3420 = vmatprep.subr.bf16.mxu0 0
        %3421 = vmatpush1.bf16.xpose.msra.mxu0 0
        %3422 = vmatprep.subr.bf16.mxu0 0
        %3423 = vmatpush1.bf16.xpose.msra.mxu0 0
        %3424 = vmatprep.subr.bf16.mxu0 0
        %3425 = vmatpush1.bf16.xpose.msra.mxu0 0
        %3426 = vmatprep.subr.bf16.mxu0 0
        %3427 = vmatpush1.bf16.xpose.msra.mxu0 0
        %3428 = vmatprep.mubr.bf16.mxu0 0
        %3429 = vmatmul.mubr.bf16.gmra.mrb[0].mxu0 %v3256
        %v3430 = vpop.f32.mrb[0].mxu0
        %v3431 = vadd.f32 0.0, %v3430
        %v3432 = vpop.f32.mrb[0].mxu0
        %v3433 = vpop.f32.mrb[0].mxu0
        %v3434 = vpop.f32.mrb[0].mxu0
        %3435 = vdwg.mxu0
        %3436 = vrot.lane.b32.xlu0 %v466, 104
        %v3437 = vpop.permute.xlu0 %3436
        %v3439 = vsel %vm475, %v3437, 0
        %3441 = vmatprep.subr.bf16.mxu0 0
        %3442 = vmatpush1.bf16.xpose.msra.mxu0 %v3439
        %3443 = vmatprep.subr.bf16.mxu0 0
        %3444 = vmatpush1.bf16.xpose.msra.mxu0 0
        %3445 = vmatprep.subr.bf16.mxu0 0
        %3446 = vmatpush1.bf16.xpose.msra.mxu0 0
        %3447 = vmatprep.subr.bf16.mxu0 0
        %3448 = vmatpush1.bf16.xpose.msra.mxu0 0
        %3449 = vmatprep.subr.bf16.mxu0 0
        %3450 = vmatpush1.bf16.xpose.msra.mxu0 0
        %3451 = vmatprep.subr.bf16.mxu0 0
        %3452 = vmatpush1.bf16.xpose.msra.mxu0 0
        %3453 = vmatprep.subr.bf16.mxu0 0
        %3454 = vmatpush1.bf16.xpose.msra.mxu0 0
        %3455 = vmatprep.subr.bf16.mxu0 0
        %3456 = vmatpush1.bf16.xpose.msra.mxu0 0
        %3457 = vmatprep.subr.bf16.mxu0 0
        %3458 = vmatpush1.bf16.xpose.msra.mxu0 0
        %3459 = vmatprep.subr.bf16.mxu0 0
        %3460 = vmatpush1.bf16.xpose.msra.mxu0 0
        %3461 = vmatprep.subr.bf16.mxu0 0
        %3462 = vmatpush1.bf16.xpose.msra.mxu0 0
        %3463 = vmatprep.subr.bf16.mxu0 0
        %3464 = vmatpush1.bf16.xpose.msra.mxu0 0
        %3465 = vmatprep.subr.bf16.mxu0 0
        %3466 = vmatpush1.bf16.xpose.msra.mxu0 0
        %3467 = vmatprep.subr.bf16.mxu0 0
        %3468 = vmatpush1.bf16.xpose.msra.mxu0 0
        %3469 = vmatprep.subr.bf16.mxu0 0
        %3470 = vmatpush1.bf16.xpose.msra.mxu0 0
        %3471 = vmatprep.subr.bf16.mxu0 0
        %3472 = vmatpush1.bf16.xpose.msra.mxu0 0
        %3473 = vmatprep.mubr.bf16.mxu0 0
        %3474 = vmatmul.mubr.bf16.gmra.mrb[0].mxu0 %v3256
        %v3475 = vpop.f32.mrb[0].mxu0
        %v3476 = vadd.f32 0.0, %v3475
        %v3477 = vpop.f32.mrb[0].mxu0
        %v3478 = vpop.f32.mrb[0].mxu0
        %v3479 = vpop.f32.mrb[0].mxu0
        %3480 = vdwg.mxu0
        %3481 = vrot.lane.b32.xlu0 %v467, 104
        %v3482 = vpop.permute.xlu0 %3481
        %v3484 = vsel %vm475, %v3482, 0
        %3486 = vmatprep.subr.bf16.mxu0 0
        %3487 = vmatpush1.bf16.xpose.msra.mxu0 %v3484
        %3488 = vmatprep.subr.bf16.mxu0 0
        %3489 = vmatpush1.bf16.xpose.msra.mxu0 0
        %3490 = vmatprep.subr.bf16.mxu0 0
        %3491 = vmatpush1.bf16.xpose.msra.mxu0 0
        %3492 = vmatprep.subr.bf16.mxu0 0
        %3493 = vmatpush1.bf16.xpose.msra.mxu0 0
        %3494 = vmatprep.subr.bf16.mxu0 0
        %3495 = vmatpush1.bf16.xpose.msra.mxu0 0
        %3496 = vmatprep.subr.bf16.mxu0 0
        %3497 = vmatpush1.bf16.xpose.msra.mxu0 0
        %3498 = vmatprep.subr.bf16.mxu0 0
        %3499 = vmatpush1.bf16.xpose.msra.mxu0 0
        %3500 = vmatprep.subr.bf16.mxu0 0
        %3501 = vmatpush1.bf16.xpose.msra.mxu0 0
        %3502 = vmatprep.subr.bf16.mxu0 0
        %3503 = vmatpush1.bf16.xpose.msra.mxu0 0
        %3504 = vmatprep.subr.bf16.mxu0 0
        %3505 = vmatpush1.bf16.xpose.msra.mxu0 0
        %3506 = vmatprep.subr.bf16.mxu0 0
        %3507 = vmatpush1.bf16.xpose.msra.mxu0 0
        %3508 = vmatprep.subr.bf16.mxu0 0
        %3509 = vmatpush1.bf16.xpose.msra.mxu0 0
        %3510 = vmatprep.subr.bf16.mxu0 0
        %3511 = vmatpush1.bf16.xpose.msra.mxu0 0
        %3512 = vmatprep.subr.bf16.mxu0 0
        %3513 = vmatpush1.bf16.xpose.msra.mxu0 0
        %3514 = vmatprep.subr.bf16.mxu0 0
        %3515 = vmatpush1.bf16.xpose.msra.mxu0 0
        %3516 = vmatprep.subr.bf16.mxu0 0
        %3517 = vmatpush1.bf16.xpose.msra.mxu0 0
        %3518 = vmatprep.mubr.bf16.mxu0 0
        %3519 = vmatmul.mubr.bf16.gmra.mrb[0].mxu0 %v3256
        %v3520 = vpop.f32.mrb[0].mxu0
        %v3521 = vadd.f32 0.0, %v3520
        %v3522 = vpop.f32.mrb[0].mxu0
        %v3523 = vpop.f32.mrb[0].mxu0
        %v3524 = vpop.f32.mrb[0].mxu0
        %3525 = vdwg.mxu0
        %3526 = vrot.lane.b32.xlu0 %v468, 104
        %v3527 = vpop.permute.xlu0 %3526
        %v3529 = vsel %vm475, %v3527, 0
        %3531 = vmatprep.subr.bf16.mxu0 0
        %3532 = vmatpush1.bf16.xpose.msra.mxu0 %v3529
        %3533 = vmatprep.subr.bf16.mxu0 0
        %3534 = vmatpush1.bf16.xpose.msra.mxu0 0
        %3535 = vmatprep.subr.bf16.mxu0 0
        %3536 = vmatpush1.bf16.xpose.msra.mxu0 0
        %3537 = vmatprep.subr.bf16.mxu0 0
        %3538 = vmatpush1.bf16.xpose.msra.mxu0 0
        %3539 = vmatprep.subr.bf16.mxu0 0
        %3540 = vmatpush1.bf16.xpose.msra.mxu0 0
        %3541 = vmatprep.subr.bf16.mxu0 0
        %3542 = vmatpush1.bf16.xpose.msra.mxu0 0
        %3543 = vmatprep.subr.bf16.mxu0 0
        %3544 = vmatpush1.bf16.xpose.msra.mxu0 0
        %3545 = vmatprep.subr.bf16.mxu0 0
        %3546 = vmatpush1.bf16.xpose.msra.mxu0 0
        %3547 = vmatprep.subr.bf16.mxu0 0
        %3548 = vmatpush1.bf16.xpose.msra.mxu0 0
        %3549 = vmatprep.subr.bf16.mxu0 0
        %3550 = vmatpush1.bf16.xpose.msra.mxu0 0
        %3551 = vmatprep.subr.bf16.mxu0 0
        %3552 = vmatpush1.bf16.xpose.msra.mxu0 0
        %3553 = vmatprep.subr.bf16.mxu0 0
        %3554 = vmatpush1.bf16.xpose.msra.mxu0 0
        %3555 = vmatprep.subr.bf16.mxu0 0
        %3556 = vmatpush1.bf16.xpose.msra.mxu0 0
        %3557 = vmatprep.subr.bf16.mxu0 0
        %3558 = vmatpush1.bf16.xpose.msra.mxu0 0
        %3559 = vmatprep.subr.bf16.mxu0 0
        %3560 = vmatpush1.bf16.xpose.msra.mxu0 0
        %3561 = vmatprep.subr.bf16.mxu0 0
        %3562 = vmatpush1.bf16.xpose.msra.mxu0 0
        %3563 = vmatprep.mubr.bf16.mxu0 0
        %3564 = vmatmul.mubr.bf16.gmra.mrb[0].mxu0 %v3256
        %v3565 = vpop.f32.mrb[0].mxu0
        %v3566 = vadd.f32 0.0, %v3565
        %v3567 = vpop.f32.mrb[0].mxu0
        %v3568 = vpop.f32.mrb[0].mxu0
        %v3569 = vpop.f32.mrb[0].mxu0
        %3570 = vdwg.mxu0
        %3571 = vrot.lane.b32.xlu0 %v469, 104
        %v3572 = vpop.permute.xlu0 %3571
        %v3574 = vsel %vm475, %v3572, 0
        %3576 = vmatprep.subr.bf16.mxu0 0
        %3577 = vmatpush1.bf16.xpose.msra.mxu0 %v3574
        %3578 = vmatprep.subr.bf16.mxu0 0
        %3579 = vmatpush1.bf16.xpose.msra.mxu0 0
        %3580 = vmatprep.subr.bf16.mxu0 0
        %3581 = vmatpush1.bf16.xpose.msra.mxu0 0
        %3582 = vmatprep.subr.bf16.mxu0 0
        %3583 = vmatpush1.bf16.xpose.msra.mxu0 0
        %3584 = vmatprep.subr.bf16.mxu0 0
        %3585 = vmatpush1.bf16.xpose.msra.mxu0 0
        %3586 = vmatprep.subr.bf16.mxu0 0
        %3587 = vmatpush1.bf16.xpose.msra.mxu0 0
        %3588 = vmatprep.subr.bf16.mxu0 0
        %3589 = vmatpush1.bf16.xpose.msra.mxu0 0
        %3590 = vmatprep.subr.bf16.mxu0 0
        %3591 = vmatpush1.bf16.xpose.msra.mxu0 0
        %3592 = vmatprep.subr.bf16.mxu0 0
        %3593 = vmatpush1.bf16.xpose.msra.mxu0 0
        %3594 = vmatprep.subr.bf16.mxu0 0
        %3595 = vmatpush1.bf16.xpose.msra.mxu0 0
        %3596 = vmatprep.subr.bf16.mxu0 0
        %3597 = vmatpush1.bf16.xpose.msra.mxu0 0
        %3598 = vmatprep.subr.bf16.mxu0 0
        %3599 = vmatpush1.bf16.xpose.msra.mxu0 0
        %3600 = vmatprep.subr.bf16.mxu0 0
        %3601 = vmatpush1.bf16.xpose.msra.mxu0 0
        %3602 = vmatprep.subr.bf16.mxu0 0
        %3603 = vmatpush1.bf16.xpose.msra.mxu0 0
        %3604 = vmatprep.subr.bf16.mxu0 0
        %3605 = vmatpush1.bf16.xpose.msra.mxu0 0
        %3606 = vmatprep.subr.bf16.mxu0 0
        %3607 = vmatpush1.bf16.xpose.msra.mxu0 0
        %3608 = vmatprep.mubr.bf16.mxu0 0
        %3609 = vmatmul.mubr.bf16.gmra.mrb[0].mxu0 %v3256
        %v3610 = vpop.f32.mrb[0].mxu0
        %v3611 = vadd.f32 0.0, %v3610
        %v3612 = vpop.f32.mrb[0].mxu0
        %v3613 = vpop.f32.mrb[0].mxu0
        %v3614 = vpop.f32.mrb[0].mxu0
        %3615 = vdwg.mxu0
        %v3616 = vsel %vm823, %v3296, -inf
        %3617 = vmax.xlane.f32.xlu0 %v3616
        %v3618 = vpop.xlane.xlu0 %3617
        %v3619 = vsel %vm823, %v3341, -inf
        %3620 = vmax.xlane.f32.xlu0 %v3619
        %v3621 = vpop.xlane.xlu0 %3620
        %v3622 = vsel %vm823, %v3386, -inf
        %3623 = vmax.xlane.f32.xlu0 %v3622
        %v3624 = vpop.xlane.xlu0 %3623
        %v3625 = vsel %vm823, %v3431, -inf
        %3626 = vmax.xlane.f32.xlu0 %v3625
        %v3627 = vpop.xlane.xlu0 %3626
        %v3628 = vsel %vm823, %v3476, -inf
        %3629 = vmax.xlane.f32.xlu0 %v3628
        %v3630 = vpop.xlane.xlu0 %3629
        %v3631 = vsel %vm823, %v3521, -inf
        %3632 = vmax.xlane.f32.xlu0 %v3631
        %v3633 = vpop.xlane.xlu0 %3632
        %v3634 = vsel %vm823, %v3566, -inf
        %3635 = vmax.xlane.f32.xlu0 %v3634
        %v3636 = vpop.xlane.xlu0 %3635
        %v3637 = vsel %vm823, %v3611, -inf
        %3638 = vmax.xlane.f32.xlu0 %v3637
        %v3639 = vpop.xlane.xlu0 %3638
        %v3640 = vsub.f32 %v3296, %v3618
        %v3641 = vsub.f32 %v3341, %v3621
        %v3642 = vsub.f32 %v3386, %v3624
        %v3643 = vsub.f32 %v3431, %v3627
        %v3644 = vsub.f32 %v3476, %v3630
        %v3645 = vsub.f32 %v3521, %v3633
        %v3646 = vsub.f32 %v3566, %v3636
        %v3647 = vsub.f32 %v3611, %v3639
        %v3648 = vmul.f32 %v3640, 1.442695
        %v3649 = vpow.pop %v3648
        %v3650 = vmul.f32 %v3641, 1.442695
        %v3651 = vpow.pop %v3650
        %v3652 = vmul.f32 %v3642, 1.442695
        %v3653 = vpow.pop %v3652
        %v3654 = vmul.f32 %v3643, 1.442695
        %v3655 = vpow.pop %v3654
        %v3656 = vmul.f32 %v3644, 1.442695
        %v3657 = vpow.pop %v3656
        %v3658 = vmul.f32 %v3645, 1.442695
        %v3659 = vpow.pop %v3658
        %v3660 = vmul.f32 %v3646, 1.442695
        %v3661 = vpow.pop %v3660
        %v3662 = vmul.f32 %v3647, 1.442695
        %v3663 = vpow.pop %v3662
        %v3664 = vsel %vm823, %v3649, 0.0
        %3665 = vadd.xlane.f32.xlu0 %v3664
        %v3666 = vpop.xlane.xlu0 %3665
        %v3667 = vsel %vm823, %v3651, 0.0
        %3668 = vadd.xlane.f32.xlu0 %v3667
        %v3669 = vpop.xlane.xlu0 %3668
        %v3670 = vsel %vm823, %v3653, 0.0
        %3671 = vadd.xlane.f32.xlu0 %v3670
        %v3672 = vpop.xlane.xlu0 %3671
        %v3673 = vsel %vm823, %v3655, 0.0
        %3674 = vadd.xlane.f32.xlu0 %v3673
        %v3675 = vpop.xlane.xlu0 %3674
        %v3676 = vsel %vm823, %v3657, 0.0
        %3677 = vadd.xlane.f32.xlu0 %v3676
        %v3678 = vpop.xlane.xlu0 %3677
        %v3679 = vsel %vm823, %v3659, 0.0
        %3680 = vadd.xlane.f32.xlu0 %v3679
        %v3681 = vpop.xlane.xlu0 %3680
        %v3682 = vsel %vm823, %v3661, 0.0
        %3683 = vadd.xlane.f32.xlu0 %v3682
        %v3684 = vpop.xlane.xlu0 %3683
        %v3685 = vsel %vm823, %v3663, 0.0
        %3686 = vadd.xlane.f32.xlu0 %v3685
        %v3687 = vpop.xlane.xlu0 %3686
        %v3688 = vrcp.pop %v3666
        %v3689 = vrcp.pop %v3669
        %v3690 = vrcp.pop %v3672
        %v3691 = vrcp.pop %v3675
        %v3692 = vrcp.pop %v3678
        %v3693 = vrcp.pop %v3681
        %v3694 = vrcp.pop %v3684
        %v3695 = vrcp.pop %v3687
        %v3696 = vmul.f32 %v3649, %v3688
        %v3697 = vmul.f32 %v3651, %v3689
        %v3698 = vmul.f32 %v3653, %v3690
        %v3699 = vmul.f32 %v3655, %v3691
        %v3700 = vmul.f32 %v3657, %v3692
        %v3701 = vmul.f32 %v3659, %v3693
        %v3702 = vmul.f32 %v3661, %v3694
        %v3703 = vmul.f32 %v3663, %v3695
        %v3704 = vpack.c.bf16 %v3696, %v3696
        %v3705 = vpack.c.bf16 %v3697, %v3697
        %v3706 = vpack.c.bf16 %v3698, %v3698
        %v3707 = vpack.c.bf16 %v3699, %v3699
        %v3708 = vpack.c.bf16 %v3700, %v3700
        %v3709 = vpack.c.bf16 %v3701, %v3701
        %v3710 = vpack.c.bf16 %v3702, %v3702
        %v3711 = vpack.c.bf16 %v3703, %v3703
        %3712 = vrot.lane.b32.xlu0 %v462, 72
        %v3713 = vpop.permute.xlu0 %3712
        %v3715 = vsel %vm475, %v3704, 0
        %v3718 = vsel %vm925, %v3713, 0
        %3720 = vmatprep.subr.bf16.mxu0 0
        %3721 = vmatpush1.bf16.msra.mxu0 %v3718
        %3722 = vmatprep.subr.bf16.mxu0 0
        %3723 = vmatpush1.bf16.msra.mxu0 0
        %3724 = vmatprep.subr.bf16.mxu0 0
        %3725 = vmatpush1.bf16.msra.mxu0 0
        %3726 = vmatprep.subr.bf16.mxu0 0
        %3727 = vmatpush1.bf16.msra.mxu0 0
        %3728 = vmatprep.subr.bf16.mxu0 0
        %3729 = vmatpush1.bf16.msra.mxu0 0
        %3730 = vmatprep.subr.bf16.mxu0 0
        %3731 = vmatpush1.bf16.msra.mxu0 0
        %3732 = vmatprep.subr.bf16.mxu0 0
        %3733 = vmatpush1.bf16.msra.mxu0 0
        %3734 = vmatprep.subr.bf16.mxu0 0
        %3735 = vmatpush1.bf16.msra.mxu0 0
        %3736 = vmatprep.subr.bf16.mxu0 0
        %3737 = vmatpush1.bf16.msra.mxu0 0
        %3738 = vmatprep.subr.bf16.mxu0 0
        %3739 = vmatpush1.bf16.msra.mxu0 0
        %3740 = vmatprep.subr.bf16.mxu0 0
        %3741 = vmatpush1.bf16.msra.mxu0 0
        %3742 = vmatprep.subr.bf16.mxu0 0
        %3743 = vmatpush1.bf16.msra.mxu0 0
        %3744 = vmatprep.subr.bf16.mxu0 0
        %3745 = vmatpush1.bf16.msra.mxu0 0
        %3746 = vmatprep.subr.bf16.mxu0 0
        %3747 = vmatpush1.bf16.msra.mxu0 0
        %3748 = vmatprep.subr.bf16.mxu0 0
        %3749 = vmatpush1.bf16.msra.mxu0 0
        %3750 = vmatprep.subr.bf16.mxu0 0
        %3751 = vmatpush1.bf16.msra.mxu0 0
        %3752 = vmatprep.mubr.bf16.mxu0 0
        %3753 = vmatmul.mubr.bf16.gmra.mrb[0].mxu0 %v3715
        %v3754 = vpop.f32.mrb[0].mxu0
        %v3755 = vadd.f32 0.0, %v3754
        %v3756 = vpop.f32.mrb[0].mxu0
        %v3757 = vpop.f32.mrb[0].mxu0
        %v3758 = vpop.f32.mrb[0].mxu0
        %3759 = vdwg.mxu0
        %3760 = vrot.lane.b32.xlu0 %v463, 72
        %v3761 = vpop.permute.xlu0 %3760
        %v3763 = vsel %vm475, %v3705, 0
        %v3766 = vsel %vm925, %v3761, 0
        %3768 = vmatprep.subr.bf16.mxu0 0
        %3769 = vmatpush1.bf16.msra.mxu0 %v3766
        %3770 = vmatprep.subr.bf16.mxu0 0
        %3771 = vmatpush1.bf16.msra.mxu0 0
        %3772 = vmatprep.subr.bf16.mxu0 0
        %3773 = vmatpush1.bf16.msra.mxu0 0
        %3774 = vmatprep.subr.bf16.mxu0 0
        %3775 = vmatpush1.bf16.msra.mxu0 0
        %3776 = vmatprep.subr.bf16.mxu0 0
        %3777 = vmatpush1.bf16.msra.mxu0 0
        %3778 = vmatprep.subr.bf16.mxu0 0
        %3779 = vmatpush1.bf16.msra.mxu0 0
        %3780 = vmatprep.subr.bf16.mxu0 0
        %3781 = vmatpush1.bf16.msra.mxu0 0
        %3782 = vmatprep.subr.bf16.mxu0 0
        %3783 = vmatpush1.bf16.msra.mxu0 0
        %3784 = vmatprep.subr.bf16.mxu0 0
        %3785 = vmatpush1.bf16.msra.mxu0 0
        %3786 = vmatprep.subr.bf16.mxu0 0
        %3787 = vmatpush1.bf16.msra.mxu0 0
        %3788 = vmatprep.subr.bf16.mxu0 0
        %3789 = vmatpush1.bf16.msra.mxu0 0
        %3790 = vmatprep.subr.bf16.mxu0 0
        %3791 = vmatpush1.bf16.msra.mxu0 0
        %3792 = vmatprep.subr.bf16.mxu0 0
        %3793 = vmatpush1.bf16.msra.mxu0 0
        %3794 = vmatprep.subr.bf16.mxu0 0
        %3795 = vmatpush1.bf16.msra.mxu0 0
        %3796 = vmatprep.subr.bf16.mxu0 0
        %3797 = vmatpush1.bf16.msra.mxu0 0
        %3798 = vmatprep.subr.bf16.mxu0 0
        %3799 = vmatpush1.bf16.msra.mxu0 0
        %3800 = vmatprep.mubr.bf16.mxu0 0
        %3801 = vmatmul.mubr.bf16.gmra.mrb[0].mxu0 %v3763
        %v3802 = vpop.f32.mrb[0].mxu0
        %v3803 = vadd.f32 0.0, %v3802
        %v3804 = vpop.f32.mrb[0].mxu0
        %v3805 = vpop.f32.mrb[0].mxu0
        %v3806 = vpop.f32.mrb[0].mxu0
        %3807 = vdwg.mxu0
        %3808 = vrot.lane.b32.xlu0 %v464, 72
        %v3809 = vpop.permute.xlu0 %3808
        %v3811 = vsel %vm475, %v3706, 0
        %v3814 = vsel %vm925, %v3809, 0
        %3816 = vmatprep.subr.bf16.mxu0 0
        %3817 = vmatpush1.bf16.msra.mxu0 %v3814
        %3818 = vmatprep.subr.bf16.mxu0 0
        %3819 = vmatpush1.bf16.msra.mxu0 0
        %3820 = vmatprep.subr.bf16.mxu0 0
        %3821 = vmatpush1.bf16.msra.mxu0 0
        %3822 = vmatprep.subr.bf16.mxu0 0
        %3823 = vmatpush1.bf16.msra.mxu0 0
        %3824 = vmatprep.subr.bf16.mxu0 0
        %3825 = vmatpush1.bf16.msra.mxu0 0
        %3826 = vmatprep.subr.bf16.mxu0 0
        %3827 = vmatpush1.bf16.msra.mxu0 0
        %3828 = vmatprep.subr.bf16.mxu0 0
        %3829 = vmatpush1.bf16.msra.mxu0 0
        %3830 = vmatprep.subr.bf16.mxu0 0
        %3831 = vmatpush1.bf16.msra.mxu0 0
        %3832 = vmatprep.subr.bf16.mxu0 0
        %3833 = vmatpush1.bf16.msra.mxu0 0
        %3834 = vmatprep.subr.bf16.mxu0 0
        %3835 = vmatpush1.bf16.msra.mxu0 0
        %3836 = vmatprep.subr.bf16.mxu0 0
        %3837 = vmatpush1.bf16.msra.mxu0 0
        %3838 = vmatprep.subr.bf16.mxu0 0
        %3839 = vmatpush1.bf16.msra.mxu0 0
        %3840 = vmatprep.subr.bf16.mxu0 0
        %3841 = vmatpush1.bf16.msra.mxu0 0
        %3842 = vmatprep.subr.bf16.mxu0 0
        %3843 = vmatpush1.bf16.msra.mxu0 0
        %3844 = vmatprep.subr.bf16.mxu0 0
        %3845 = vmatpush1.bf16.msra.mxu0 0
        %3846 = vmatprep.subr.bf16.mxu0 0
        %3847 = vmatpush1.bf16.msra.mxu0 0
        %3848 = vmatprep.mubr.bf16.mxu0 0
        %3849 = vmatmul.mubr.bf16.gmra.mrb[0].mxu0 %v3811
        %v3850 = vpop.f32.mrb[0].mxu0
        %v3851 = vadd.f32 0.0, %v3850
        %v3852 = vpop.f32.mrb[0].mxu0
        %v3853 = vpop.f32.mrb[0].mxu0
        %v3854 = vpop.f32.mrb[0].mxu0
        %3855 = vdwg.mxu0
        %3856 = vrot.lane.b32.xlu0 %v465, 72
        %v3857 = vpop.permute.xlu0 %3856
        %v3859 = vsel %vm475, %v3707, 0
        %v3862 = vsel %vm925, %v3857, 0
        %3864 = vmatprep.subr.bf16.mxu0 0
        %3865 = vmatpush1.bf16.msra.mxu0 %v3862
        %3866 = vmatprep.subr.bf16.mxu0 0
        %3867 = vmatpush1.bf16.msra.mxu0 0
        %3868 = vmatprep.subr.bf16.mxu0 0
        %3869 = vmatpush1.bf16.msra.mxu0 0
        %3870 = vmatprep.subr.bf16.mxu0 0
        %3871 = vmatpush1.bf16.msra.mxu0 0
        %3872 = vmatprep.subr.bf16.mxu0 0
        %3873 = vmatpush1.bf16.msra.mxu0 0
        %3874 = vmatprep.subr.bf16.mxu0 0
        %3875 = vmatpush1.bf16.msra.mxu0 0
        %3876 = vmatprep.subr.bf16.mxu0 0
        %3877 = vmatpush1.bf16.msra.mxu0 0
        %3878 = vmatprep.subr.bf16.mxu0 0
        %3879 = vmatpush1.bf16.msra.mxu0 0
        %3880 = vmatprep.subr.bf16.mxu0 0
        %3881 = vmatpush1.bf16.msra.mxu0 0
        %3882 = vmatprep.subr.bf16.mxu0 0
        %3883 = vmatpush1.bf16.msra.mxu0 0
        %3884 = vmatprep.subr.bf16.mxu0 0
        %3885 = vmatpush1.bf16.msra.mxu0 0
        %3886 = vmatprep.subr.bf16.mxu0 0
        %3887 = vmatpush1.bf16.msra.mxu0 0
        %3888 = vmatprep.subr.bf16.mxu0 0
        %3889 = vmatpush1.bf16.msra.mxu0 0
        %3890 = vmatprep.subr.bf16.mxu0 0
        %3891 = vmatpush1.bf16.msra.mxu0 0
        %3892 = vmatprep.subr.bf16.mxu0 0
        %3893 = vmatpush1.bf16.msra.mxu0 0
        %3894 = vmatprep.subr.bf16.mxu0 0
        %3895 = vmatpush1.bf16.msra.mxu0 0
        %3896 = vmatprep.mubr.bf16.mxu0 0
        %3897 = vmatmul.mubr.bf16.gmra.mrb[0].mxu0 %v3859
        %v3898 = vpop.f32.mrb[0].mxu0
        %v3899 = vadd.f32 0.0, %v3898
        %v3900 = vpop.f32.mrb[0].mxu0
        %v3901 = vpop.f32.mrb[0].mxu0
        %v3902 = vpop.f32.mrb[0].mxu0
        %3903 = vdwg.mxu0
        %3904 = vrot.lane.b32.xlu0 %v466, 72
        %v3905 = vpop.permute.xlu0 %3904
        %v3907 = vsel %vm475, %v3708, 0
        %v3910 = vsel %vm925, %v3905, 0
        %3912 = vmatprep.subr.bf16.mxu0 0
        %3913 = vmatpush1.bf16.msra.mxu0 %v3910
        %3914 = vmatprep.subr.bf16.mxu0 0
        %3915 = vmatpush1.bf16.msra.mxu0 0
        %3916 = vmatprep.subr.bf16.mxu0 0
        %3917 = vmatpush1.bf16.msra.mxu0 0
        %3918 = vmatprep.subr.bf16.mxu0 0
        %3919 = vmatpush1.bf16.msra.mxu0 0
        %3920 = vmatprep.subr.bf16.mxu0 0
        %3921 = vmatpush1.bf16.msra.mxu0 0
        %3922 = vmatprep.subr.bf16.mxu0 0
        %3923 = vmatpush1.bf16.msra.mxu0 0
        %3924 = vmatprep.subr.bf16.mxu0 0
        %3925 = vmatpush1.bf16.msra.mxu0 0
        %3926 = vmatprep.subr.bf16.mxu0 0
        %3927 = vmatpush1.bf16.msra.mxu0 0
        %3928 = vmatprep.subr.bf16.mxu0 0
        %3929 = vmatpush1.bf16.msra.mxu0 0
        %3930 = vmatprep.subr.bf16.mxu0 0
        %3931 = vmatpush1.bf16.msra.mxu0 0
        %3932 = vmatprep.subr.bf16.mxu0 0
        %3933 = vmatpush1.bf16.msra.mxu0 0
        %3934 = vmatprep.subr.bf16.mxu0 0
        %3935 = vmatpush1.bf16.msra.mxu0 0
        %3936 = vmatprep.subr.bf16.mxu0 0
        %3937 = vmatpush1.bf16.msra.mxu0 0
        %3938 = vmatprep.subr.bf16.mxu0 0
        %3939 = vmatpush1.bf16.msra.mxu0 0
        %3940 = vmatprep.subr.bf16.mxu0 0
        %3941 = vmatpush1.bf16.msra.mxu0 0
        %3942 = vmatprep.subr.bf16.mxu0 0
        %3943 = vmatpush1.bf16.msra.mxu0 0
        %3944 = vmatprep.mubr.bf16.mxu0 0
        %3945 = vmatmul.mubr.bf16.gmra.mrb[0].mxu0 %v3907
        %v3946 = vpop.f32.mrb[0].mxu0
        %v3947 = vadd.f32 0.0, %v3946
        %v3948 = vpop.f32.mrb[0].mxu0
        %v3949 = vpop.f32.mrb[0].mxu0
        %v3950 = vpop.f32.mrb[0].mxu0
        %3951 = vdwg.mxu0
        %3952 = vrot.lane.b32.xlu0 %v467, 72
        %v3953 = vpop.permute.xlu0 %3952
        %v3955 = vsel %vm475, %v3709, 0
        %v3958 = vsel %vm925, %v3953, 0
        %3960 = vmatprep.subr.bf16.mxu0 0
        %3961 = vmatpush1.bf16.msra.mxu0 %v3958
        %3962 = vmatprep.subr.bf16.mxu0 0
        %3963 = vmatpush1.bf16.msra.mxu0 0
        %3964 = vmatprep.subr.bf16.mxu0 0
        %3965 = vmatpush1.bf16.msra.mxu0 0
        %3966 = vmatprep.subr.bf16.mxu0 0
        %3967 = vmatpush1.bf16.msra.mxu0 0
        %3968 = vmatprep.subr.bf16.mxu0 0
        %3969 = vmatpush1.bf16.msra.mxu0 0
        %3970 = vmatprep.subr.bf16.mxu0 0
        %3971 = vmatpush1.bf16.msra.mxu0 0
        %3972 = vmatprep.subr.bf16.mxu0 0
        %3973 = vmatpush1.bf16.msra.mxu0 0
        %3974 = vmatprep.subr.bf16.mxu0 0
        %3975 = vmatpush1.bf16.msra.mxu0 0
        %3976 = vmatprep.subr.bf16.mxu0 0
        %3977 = vmatpush1.bf16.msra.mxu0 0
        %3978 = vmatprep.subr.bf16.mxu0 0
        %3979 = vmatpush1.bf16.msra.mxu0 0
        %3980 = vmatprep.subr.bf16.mxu0 0
        %3981 = vmatpush1.bf16.msra.mxu0 0
        %3982 = vmatprep.subr.bf16.mxu0 0
        %3983 = vmatpush1.bf16.msra.mxu0 0
        %3984 = vmatprep.subr.bf16.mxu0 0
        %3985 = vmatpush1.bf16.msra.mxu0 0
        %3986 = vmatprep.subr.bf16.mxu0 0
        %3987 = vmatpush1.bf16.msra.mxu0 0
        %3988 = vmatprep.subr.bf16.mxu0 0
        %3989 = vmatpush1.bf16.msra.mxu0 0
        %3990 = vmatprep.subr.bf16.mxu0 0
        %3991 = vmatpush1.bf16.msra.mxu0 0
        %3992 = vmatprep.mubr.bf16.mxu0 0
        %3993 = vmatmul.mubr.bf16.gmra.mrb[0].mxu0 %v3955
        %v3994 = vpop.f32.mrb[0].mxu0
        %v3995 = vadd.f32 0.0, %v3994
        %v3996 = vpop.f32.mrb[0].mxu0
        %v3997 = vpop.f32.mrb[0].mxu0
        %v3998 = vpop.f32.mrb[0].mxu0
        %3999 = vdwg.mxu0
        %4000 = vrot.lane.b32.xlu0 %v468, 72
        %v4001 = vpop.permute.xlu0 %4000
        %v4003 = vsel %vm475, %v3710, 0
        %v4006 = vsel %vm925, %v4001, 0
        %4008 = vmatprep.subr.bf16.mxu0 0
        %4009 = vmatpush1.bf16.msra.mxu0 %v4006
        %4010 = vmatprep.subr.bf16.mxu0 0
        %4011 = vmatpush1.bf16.msra.mxu0 0
        %4012 = vmatprep.subr.bf16.mxu0 0
        %4013 = vmatpush1.bf16.msra.mxu0 0
        %4014 = vmatprep.subr.bf16.mxu0 0
        %4015 = vmatpush1.bf16.msra.mxu0 0
        %4016 = vmatprep.subr.bf16.mxu0 0
        %4017 = vmatpush1.bf16.msra.mxu0 0
        %4018 = vmatprep.subr.bf16.mxu0 0
        %4019 = vmatpush1.bf16.msra.mxu0 0
        %4020 = vmatprep.subr.bf16.mxu0 0
        %4021 = vmatpush1.bf16.msra.mxu0 0
        %4022 = vmatprep.subr.bf16.mxu0 0
        %4023 = vmatpush1.bf16.msra.mxu0 0
        %4024 = vmatprep.subr.bf16.mxu0 0
        %4025 = vmatpush1.bf16.msra.mxu0 0
        %4026 = vmatprep.subr.bf16.mxu0 0
        %4027 = vmatpush1.bf16.msra.mxu0 0
        %4028 = vmatprep.subr.bf16.mxu0 0
        %4029 = vmatpush1.bf16.msra.mxu0 0
        %4030 = vmatprep.subr.bf16.mxu0 0
        %4031 = vmatpush1.bf16.msra.mxu0 0
        %4032 = vmatprep.subr.bf16.mxu0 0
        %4033 = vmatpush1.bf16.msra.mxu0 0
        %4034 = vmatprep.subr.bf16.mxu0 0
        %4035 = vmatpush1.bf16.msra.mxu0 0
        %4036 = vmatprep.subr.bf16.mxu0 0
        %4037 = vmatpush1.bf16.msra.mxu0 0
        %4038 = vmatprep.subr.bf16.mxu0 0
        %4039 = vmatpush1.bf16.msra.mxu0 0
        %4040 = vmatprep.mubr.bf16.mxu0 0
        %4041 = vmatmul.mubr.bf16.gmra.mrb[0].mxu0 %v4003
        %v4042 = vpop.f32.mrb[0].mxu0
        %v4043 = vadd.f32 0.0, %v4042
        %v4044 = vpop.f32.mrb[0].mxu0
        %v4045 = vpop.f32.mrb[0].mxu0
        %v4046 = vpop.f32.mrb[0].mxu0
        %4047 = vdwg.mxu0
        %4048 = vrot.lane.b32.xlu0 %v469, 72
        %v4049 = vpop.permute.xlu0 %4048
        %v4051 = vsel %vm475, %v3711, 0
        %v4054 = vsel %vm925, %v4049, 0
        %4056 = vmatprep.subr.bf16.mxu0 0
        %4057 = vmatpush1.bf16.msra.mxu0 %v4054
        %4058 = vmatprep.subr.bf16.mxu0 0
        %4059 = vmatpush1.bf16.msra.mxu0 0
        %4060 = vmatprep.subr.bf16.mxu0 0
        %4061 = vmatpush1.bf16.msra.mxu0 0
        %4062 = vmatprep.subr.bf16.mxu0 0
        %4063 = vmatpush1.bf16.msra.mxu0 0
        %4064 = vmatprep.subr.bf16.mxu0 0
        %4065 = vmatpush1.bf16.msra.mxu0 0
        %4066 = vmatprep.subr.bf16.mxu0 0
        %4067 = vmatpush1.bf16.msra.mxu0 0
        %4068 = vmatprep.subr.bf16.mxu0 0
        %4069 = vmatpush1.bf16.msra.mxu0 0
        %4070 = vmatprep.subr.bf16.mxu0 0
        %4071 = vmatpush1.bf16.msra.mxu0 0
        %4072 = vmatprep.subr.bf16.mxu0 0
        %4073 = vmatpush1.bf16.msra.mxu0 0
        %4074 = vmatprep.subr.bf16.mxu0 0
        %4075 = vmatpush1.bf16.msra.mxu0 0
        %4076 = vmatprep.subr.bf16.mxu0 0
        %4077 = vmatpush1.bf16.msra.mxu0 0
        %4078 = vmatprep.subr.bf16.mxu0 0
        %4079 = vmatpush1.bf16.msra.mxu0 0
        %4080 = vmatprep.subr.bf16.mxu0 0
        %4081 = vmatpush1.bf16.msra.mxu0 0
        %4082 = vmatprep.subr.bf16.mxu0 0
        %4083 = vmatpush1.bf16.msra.mxu0 0
        %4084 = vmatprep.subr.bf16.mxu0 0
        %4085 = vmatpush1.bf16.msra.mxu0 0
        %4086 = vmatprep.subr.bf16.mxu0 0
        %4087 = vmatpush1.bf16.msra.mxu0 0
        %4088 = vmatprep.mubr.bf16.mxu0 0
        %4089 = vmatmul.mubr.bf16.gmra.mrb[0].mxu0 %v4051
        %v4090 = vpop.f32.mrb[0].mxu0
        %v4091 = vadd.f32 0.0, %v4090
        %v4092 = vpop.f32.mrb[0].mxu0
        %v4093 = vpop.f32.mrb[0].mxu0
        %v4094 = vpop.f32.mrb[0].mxu0
        %4095 = vdwg.mxu0
        %v4096 = vmul.f32 %v3755, 0.35355338
        %v4097 = vmul.f32 %v3803, 0.35355338
        %v4098 = vmul.f32 %v3851, 0.35355338
        %v4099 = vmul.f32 %v3899, 0.35355338
        %v4100 = vmul.f32 %v3947, 0.35355338
        %v4101 = vmul.f32 %v3995, 0.35355338
        %v4102 = vmul.f32 %v4043, 0.35355338
        %v4103 = vmul.f32 %v4091, 0.35355338
        %v4112 = vcombine.low %v4096, %v4097
        %v4113 = vcombine.low %v4098, %v4099
        %v4114 = vcombine.low %v4100, %v4101
        %v4115 = vcombine.low %v4102, %v4103
        %v4120 = vpack.c.bf16 %v4113, %v4112
        %v4121 = vpack.c.bf16 %v4115, %v4114
        %v4123 = vsel %vm475, %v4120, 0
        %v4126 = vsel %vm475, %v4121, 0
        %v4129 = vsel %vm925, %v473, 0
        %4131 = vmatprep.subr.bf16.mxu0 0
        %4132 = vmatpush1.bf16.msra.mxu0 %v4129
        %4133 = vmatprep.subr.bf16.mxu0 0
        %4134 = vmatpush1.bf16.msra.mxu0 0
        %4135 = vmatprep.subr.bf16.mxu0 0
        %4136 = vmatpush1.bf16.msra.mxu0 0
        %4137 = vmatprep.subr.bf16.mxu0 0
        %4138 = vmatpush1.bf16.msra.mxu0 0
        %4139 = vmatprep.subr.bf16.mxu0 0
        %4140 = vmatpush1.bf16.msra.mxu0 0
        %4141 = vmatprep.subr.bf16.mxu0 0
        %4142 = vmatpush1.bf16.msra.mxu0 0
        %4143 = vmatprep.subr.bf16.mxu0 0
        %4144 = vmatpush1.bf16.msra.mxu0 0
        %4145 = vmatprep.subr.bf16.mxu0 0
        %4146 = vmatpush1.bf16.msra.mxu0 0
        %4147 = vmatprep.subr.bf16.mxu0 0
        %4148 = vmatpush1.bf16.msra.mxu0 0
        %4149 = vmatprep.subr.bf16.mxu0 0
        %4150 = vmatpush1.bf16.msra.mxu0 0
        %4151 = vmatprep.subr.bf16.mxu0 0
        %4152 = vmatpush1.bf16.msra.mxu0 0
        %4153 = vmatprep.subr.bf16.mxu0 0
        %4154 = vmatpush1.bf16.msra.mxu0 0
        %4155 = vmatprep.subr.bf16.mxu0 0
        %4156 = vmatpush1.bf16.msra.mxu0 0
        %4157 = vmatprep.subr.bf16.mxu0 0
        %4158 = vmatpush1.bf16.msra.mxu0 0
        %4159 = vmatprep.subr.bf16.mxu0 0
        %4160 = vmatpush1.bf16.msra.mxu0 0
        %4161 = vmatprep.subr.bf16.mxu0 0
        %4162 = vmatpush1.bf16.msra.mxu0 0
        %4163 = vmatprep.mubr.bf16.mxu0 0
        %4164 = vmatmul.mubr.bf16.gmra.mrb[0].mxu0 %v4123
        %v4165 = vpop.f32.mrb[0].mxu0
        %v4166 = vadd.f32 0.0, %v4165
        %v4167 = vpop.f32.mrb[0].mxu0
        %v4168 = vpop.f32.mrb[0].mxu0
        %v4169 = vadd.f32 0.0, %v4168
        %v4170 = vpop.f32.mrb[0].mxu0
        %4171 = vmatprep.mubr.bf16.mxu0 0
        %4172 = vmatmul.mubr.bf16.gmra.mrb[0].mxu0 %v4126
        %v4173 = vpop.f32.mrb[0].mxu0
        %v4174 = vadd.f32 0.0, %v4173
        %v4175 = vpop.f32.mrb[0].mxu0
        %v4176 = vpop.f32.mrb[0].mxu0
        %v4177 = vadd.f32 0.0, %v4176
        %v4178 = vpop.f32.mrb[0].mxu0
        %4179 = vdwg.mxu0
        %v4180 = vadd.f32 %v3247, %v4166
        %v4181 = vadd.f32 %v3248, %v4169
        %v4182 = vadd.f32 %v3249, %v4174
        %v4183 = vadd.f32 %v3250, %v4177
        %v4184 = vld [vmem:[%s5] sm:$0x1]
        %v4186 = vlaneseq
        %v4187 = vshrl.u32 %v4186, 7
        %v4188 = vsub.s32 0, %v4187
        %v4189 = vrot.slane %v4184, %v4188
        %v4191 = vadd.f32 %v4180, %v4189
        %v4192 = vadd.f32 %v4181, %v4189
        %v4193 = vadd.f32 %v4182, %v4189
        %v4194 = vadd.f32 %v4183, %v4189
        %4195 = vst [vmem:[%s313] sm:$0xff] %v4191
        %4196 = vst [vmem:[%s313 + $0x8] sm:$0xff] %v4192
        %4197 = vst [vmem:[%s313 + $0x10] sm:$0xff] %v4193
        %4198 = vst [vmem:[%s313 + $0x18] sm:$0xff] %v4194
        %s4199 = sand.u32 %s164, 1
        %s4200 = scalar_lea.sflag [#allocation4], %s4199
        %s4201 = sand.u32 %s164, 1
        %s4202 = smul.addr %s4201, 32
        %s4203 = scalar_lea.vmem [#allocation10], %s4202
        // Predicated region
        $region61: #{tpu_custom_call.1} parent=43 // pred_check
          %p4204 = pneg %p174
        $region62: #{tpu_custom_call.1} parent=43 // pred_check_branch
          %4206 = sbr.rel (%p4204) target = $region64
        $region63: #{tpu_custom_call.1} parent=43 // pred_region
          %s4207 = smul.u32 4, %s25
          %s4209 = ssub.s32 512, 512
          %4210 = vsyncadd %s4200, %s4209
          %s4211 = smul.addr %s4207, 128
          %s4212 = scalar_lea.hbm %s6, %s4211
          %s4213 = sshll.u32 %s4203, 4
          %s4214 = int_to_ptr.vmem [resolvable:$true] %s4213
          %4219 = dma.vmem_to_hbm [thread:$0]  %s4214, 512, %s4212, %s4200, 128, 128, 8
        $region64: #{tpu_custom_call.1} parent=43 // pred_fallthru
          _
      $region44: #{tpu_custom_call.1} parent=5 // pred_fallthru
        _
      %p4220 = scmp.le.s32.totalorder 2, %s20
      // Predicated region
      $region65: #{tpu_custom_call.1} parent=5 // pred_check
        %p4221 = pneg %p4220
      $region66: #{tpu_custom_call.1} parent=5 // pred_check_branch
        %4223 = sbr.rel (%p4221) target = $region68
      $region67: #{tpu_custom_call.1} parent=5 // pred_region
        %s4224 = ssub.s32 %s20, 2
        // Predicated region
        $region69: #{tpu_custom_call.1} parent=67 // pred_check
          %p4225 = pneg %p180
        $region70: #{tpu_custom_call.1} parent=67 // pred_check_branch
          %4227 = sbr.rel (%p4225) target = $region72
        $region71: #{tpu_custom_call.1} parent=67 // pred_region
          %s4228 = sand.u32 %s165, 1
          %s4229 = scalar_lea.sflag [#allocation4], %s4228
          %s4230 = sand.u32 %s165, 1
          %s4231 = smul.addr %s4230, 32
          %s4232 = scalar_lea.vmem [#allocation10], %s4231
          %4233 = dma.done %s4229, 512
        $region72: #{tpu_custom_call.1} parent=67 // pred_fallthru
          _
      $region68: #{tpu_custom_call.1} parent=5 // pred_fallthru
        _
    $region6: #{tpu_custom_call.1} parent=1 // loop_footer
      %s24 = sadd.s32 1, %s20
    $region7: #{tpu_custom_call.1} parent=1 // loop_footer_branch
      %19 = sbr.rel target = $region3
    $region8: #{tpu_custom_call.1} parent=1 // loop_exit
      _
    %4234 = vsyncpa [#allocation3], 1
    %s4235 = scalar_lea.sflag [#allocation3], 1
    %4236 = vsyncpa %s4235, 1
    %4237 = vsyncpa [#allocation6], 1
    %4238 = vsyncpa [#allocation9], 1
    %4239 = vsyncpa [#allocation4], 1
    %s4240 = scalar_lea.sflag [#allocation4], 1
    %4241 = vsyncpa %s4240, 1

</llo_original>
